<compile_context>
chip_gen: v5e
topology: v5e:2x2
jax: 0.10.0
libtpu: 0.0.40
codegen_flags: <defaults>
</compile_context>

<pallas_src>
import functools
import math

import jax
import jax.numpy as jnp
from jax import lax
from jax.experimental import pallas as pl
from jax.experimental.pallas import tpu as pltpu

IN_DIM = 132      # GRU input size and Linear output size (fixed by the module)
OUT_PAD = 256     # lane-dense padding of the 132-wide head output (2 * 128)
CHUNK = 8         # time-loop chunk = one sublane tile


# ----------------------------------------------------------------------------
# Fused kernel: all GRU layers + Linear head for one batch tile.
# ----------------------------------------------------------------------------
def _refinenet_kernel(*refs, n_layers, seq, hid, b_tile):
    # refs layout:
    #   [x, h0,
    #    (w_ih, w_hh, b_gi, b_hn) * n_layers,
    #    lin_w, lin_b,
    #    out, h_out,
    #    gi_scr, y_scr, ych_scr]
    x_ref, h0_ref = refs[0], refs[1]
    idx = 2
    layer_refs = []
    for _ in range(n_layers):
        layer_refs.append(refs[idx:idx + 4])
        idx += 4
    lin_w_ref, lin_b_ref = refs[idx], refs[idx + 1]
    out_ref, hout_ref = refs[idx + 2], refs[idx + 3]
    gi_ref, y_ref, ych_ref = refs[idx + 4], refs[idx + 5], refs[idx + 6]

    H = hid
    B = b_tile
    n_chunks = seq // CHUNK

    # Layer-0 input viewed as a 2-D (B*S, in_dim) slab (pure relabel when
    # seq % 8 == 0, which is the common/tested case).
    inp2 = x_ref[...].reshape(B * seq, IN_DIM)

    for layer in range(n_layers):
        w_ih_ref, w_hh_ref, b_gi_ref, b_hn_ref = layer_refs[layer]

        # Hoisted input projection: ONE packed MXU matmul over the whole
        # (batch-tile x sequence) slab; r/z biases (input + hidden) pre-folded.
        gi2 = (jnp.dot(inp2, w_ih_ref[...], preferred_element_type=jnp.float32)
               + b_gi_ref[...])                                    # (B*S, 3H)
        gi_ref[...] = gi2.reshape(B, seq, 3 * H)

        # Per-layer constants hoisted out of the serial recurrence.
        w_hh = w_hh_ref[...]                                       # (H, 3H)
        b_hn = jnp.broadcast_to(b_hn_ref[...], (B, H))             # hoisted bcast

        def gru_cell(gi_t, h):
            # Serial critical path: ONE (B,H)@(H,3H) MXU push + gate math.
            hh = jnp.dot(h, w_hh, preferred_element_type=jnp.float32)  # (B, 3H)
            rz = jax.nn.sigmoid(gi_t[:, :2 * H] + hh[:, :2 * H])       # r|z, 1 EUP pass
            r, z = rz[:, :H], rz[:, H:]
            n = jnp.tanh(gi_t[:, 2 * H:] + r * (hh[:, 2 * H:] + b_hn))
            return (1.0 - z) * n + z * h

        def run_chunk(base, h):
            # One aligned (B, CHUNK, 3H) gi tile load, CHUNK static inner steps
            # (static sublane slices), then one aligned (B, CHUNK, H) store of
            # the buffered hidden states into the layer output sequence.
            gi_c = gi_ref[:, pl.ds(base, CHUNK), :]
            for i in range(CHUNK):
                h = gru_cell(gi_c[:, i, :], h)
                ych_ref[:, pl.ds(i, 1), :] = h.reshape(B, 1, H)
            y_ref[:, pl.ds(base, CHUNK), :] = ych_ref[...]
            return h

        h = h0_ref[layer:layer + 1, :, :].reshape(B, H)            # (B, H)
        if 0 < n_chunks <= 2:
            for c in range(n_chunks):                              # bounded unroll
                h = run_chunk(c * CHUNK, h)
        elif n_chunks > 2:
            h = lax.fori_loop(
                0, n_chunks,
                lambda c, hc: run_chunk(pl.multiple_of(c * CHUNK, CHUNK), hc),
                h)
        for t in range(n_chunks * CHUNK, seq):                     # seq % 8 tail
            h = gru_cell(gi_ref[:, pl.ds(t, 1), :].reshape(B, 3 * H), h)
            y_ref[:, pl.ds(t, 1), :] = h.reshape(B, 1, H)

        hout_ref[layer:layer + 1, :, :] = h.reshape(1, B, H)       # final hidden, once
        inp2 = y_ref[...].reshape(B * seq, H)                      # next layer / head input

    # Fused, lane-dense (256-wide) Linear head on the resident last-layer output.
    out2 = (jnp.dot(inp2, lin_w_ref[...], preferred_element_type=jnp.float32)
            + lin_b_ref[...])                                      # (B*S, 256)
    out_ref[...] = out2.reshape(B, seq, OUT_PAD)


# ----------------------------------------------------------------------------
# Parameters (gate-packed [r | z | n] on the last axis, MXU-ready layout)
# ----------------------------------------------------------------------------
def init_refinenet_params(key, n_layers, hidden_dim):
    params = {"gru": [], "n_layers": n_layers, "hidden": hidden_dim}
    scale = 1.0 / math.sqrt(hidden_dim)
    for layer in range(n_layers):
        in_dim = IN_DIM if layer == 0 else hidden_dim
        key, k1, k2, k3, k4 = jax.random.split(key, 5)
        params["gru"].append({
            "w_ih": jax.random.uniform(k1, (in_dim, 3 * hidden_dim),
                                       jnp.float32, -scale, scale),
            "w_hh": jax.random.uniform(k2, (hidden_dim, 3 * hidden_dim),
                                       jnp.float32, -scale, scale),
            "b_ih": jax.random.uniform(k3, (1, 3 * hidden_dim),
                                       jnp.float32, -scale, scale),
            "b_hh": jax.random.uniform(k4, (1, 3 * hidden_dim),
                                       jnp.float32, -scale, scale),
        })
    key, k1, k2 = jax.random.split(key, 3)
    params["lin_w"] = jax.random.uniform(k1, (hidden_dim, IN_DIM),
                                         jnp.float32, -scale, scale)
    params["lin_b"] = jax.random.uniform(k2, (1, IN_DIM),
                                         jnp.float32, -scale, scale)
    return params


def _pick_batch_tile(bs):
    # Whole batch for small bs; otherwise an 8-row tile (sublane-aligned).
    if bs <= 8 or bs % 8 != 0:
        return bs
    return 8


# ----------------------------------------------------------------------------
# Wrapper: one fused pallas_call over batch tiles
# ----------------------------------------------------------------------------
def refinenet_forward(params, x, hidden):
    """x: (bs, seq, 132); hidden: (n_layers, bs, H) or None.

    Returns (out (bs, seq, 132), new_hidden (n_layers, bs, H))."""
    bs, seq, _ = x.shape
    n_layers, hid = params["n_layers"], params["hidden"]
    if hidden is None:
        # Matches PyTorch: init_hidden's result is discarded; nn.GRU uses zeros.
        hidden = jnp.zeros((n_layers, bs, hid), jnp.float32)

    b_tile = _pick_batch_tile(bs)
    n_btiles = bs // b_tile

    args = [x, hidden]
    in_specs = [
        pl.BlockSpec((b_tile, seq, IN_DIM), lambda b: (b, 0, 0)),      # x tile
        pl.BlockSpec((n_layers, b_tile, hid), lambda b: (0, b, 0)),    # h0 tile
    ]
    for layer in range(n_layers):
        p = params["gru"][layer]
        in_dim_l = IN_DIM if layer == 0 else hid
        # r/z biases (input + hidden) folded into the hoisted projection bias;
        # only b_hn stays on the serial path.
        b_gi = jnp.concatenate(
            [p["b_ih"][:, :2 * hid] + p["b_hh"][:, :2 * hid],
             p["b_ih"][:, 2 * hid:]], axis=1)
        b_hn = p["b_hh"][:, 2 * hid:]
        args += [p["w_ih"], p["w_hh"], b_gi, b_hn]
        in_specs += [
            pl.BlockSpec((in_dim_l, 3 * hid), lambda b: (0, 0)),
            pl.BlockSpec((hid, 3 * hid), lambda b: (0, 0)),
            pl.BlockSpec((1, 3 * hid), lambda b: (0, 0)),
            pl.BlockSpec((1, hid), lambda b: (0, 0)),
        ]
    # Lane-dense head: zero-pad 132 -> 256 output columns; slice back outside.
    lin_w_pad = jnp.pad(params["lin_w"], ((0, 0), (0, OUT_PAD - IN_DIM)))
    lin_b_pad = jnp.pad(params["lin_b"], ((0, 0), (0, OUT_PAD - IN_DIM)))
    args += [lin_w_pad, lin_b_pad]
    in_specs += [
        pl.BlockSpec((hid, OUT_PAD), lambda b: (0, 0)),
        pl.BlockSpec((1, OUT_PAD), lambda b: (0, 0)),
    ]

    kernel = functools.partial(_refinenet_kernel, n_layers=n_layers, seq=seq,
                               hid=hid, b_tile=b_tile)
    out_pad, h_out = pl.pallas_call(
        kernel,
        out_shape=(
            jax.ShapeDtypeStruct((bs, seq, OUT_PAD), jnp.float32),
            jax.ShapeDtypeStruct((n_layers, bs, hid), jnp.float32),
        ),
        grid_spec=pltpu.PrefetchScalarGridSpec(
            num_scalar_prefetch=0,
            grid=(n_btiles,),
            in_specs=in_specs,
            out_specs=[
                pl.BlockSpec((b_tile, seq, OUT_PAD), lambda b: (b, 0, 0)),
                pl.BlockSpec((n_layers, b_tile, hid), lambda b: (0, b, 0)),
            ],
            # VMEM scratch scales as b_tile*seq*(4H)*4B -- keep well under the
            # scoped limit when growing b_tile/seq (v7x has only 64 MiB VMEM).
            scratch_shapes=[
                pltpu.VMEM((b_tile, seq, 3 * hid), jnp.float32),   # packed gi
                pltpu.VMEM((b_tile, seq, hid), jnp.float32),       # layer output seq
                pltpu.VMEM((b_tile, CHUNK, hid), jnp.float32),     # per-chunk h buffer
            ],
        ),
        # Batch tiles are independent.
        # TODO(synk): on v7x verify the 2-TC split; switch to pltpu.CORE_PARALLEL
        # (or pl.core_map over create_tensorcore_mesh) if "parallel" doesn't shard.
        compiler_params=pltpu.CompilerParams(
            dimension_semantics=("parallel",)),
    )(*args)
    return out_pad[..., :IN_DIM], h_out


# ----------------------------------------------------------------------------
# Pure-JAX reference (for correctness check)
# ----------------------------------------------------------------------------
def refinenet_ref(params, x, hidden):
    bs, seq, _ = x.shape
    n_layers, hid = params["n_layers"], params["hidden"]
    if hidden is None:
        hidden = jnp.zeros((n_layers, bs, hid), jnp.float32)
    inp = x
    new_hidden = []
    for layer in range(n_layers):
        p = params["gru"][layer]
        w_ih, w_hh, b_ih, b_hh = p["w_ih"], p["w_hh"], p["b_ih"], p["b_hh"]

        def step(h, x_t, w_ih=w_ih, w_hh=w_hh, b_ih=b_ih, b_hh=b_hh):
            gi = x_t @ w_ih + b_ih
            gh = h @ w_hh + b_hh
            r = jax.nn.sigmoid(gi[:, :hid] + gh[:, :hid])
            z = jax.nn.sigmoid(gi[:, hid:2 * hid] + gh[:, hid:2 * hid])
            n = jnp.tanh(gi[:, 2 * hid:] + r * gh[:, 2 * hid:])
            h_new = (1.0 - z) * n + z * h
            return h_new, h_new

        h_T, ys = lax.scan(step, hidden[layer], jnp.transpose(inp, (1, 0, 2)))
        inp = jnp.transpose(ys, (1, 0, 2))
        new_hidden.append(h_T)
    out = inp @ params["lin_w"] + params["lin_b"]
    return out, jnp.stack(new_hidden, axis=0)


if __name__ == "__main__":
    n_layers, hidden_dim = 2, 32
    bs, seq = 2, 8

    key = jax.random.PRNGKey(0)
    kp, kx, kh = jax.random.split(key, 3)
    params = init_refinenet_params(kp, n_layers, hidden_dim)
    x = jax.random.normal(kx, (bs, seq, IN_DIM), jnp.float32)
    hidden = jax.random.normal(kh, (n_layers, bs, hidden_dim), jnp.float32)

    out, h_out = refinenet_forward(params, x, hidden)
    out = jax.block_until_ready(out)
    h_out = jax.block_until_ready(h_out)

    out_ref, h_ref = refinenet_ref(params, x, hidden)
    assert out.shape == (bs, seq, IN_DIM) and h_out.shape == (n_layers, bs, hidden_dim)
    assert jnp.allclose(out, out_ref, atol=1e-4, rtol=1e-4)
    assert jnp.allclose(h_out, h_ref, atol=1e-4, rtol=1e-4)

    # Also exercise the hidden=None path (nn.GRU defaults to zeros internally).
    out2, h2 = refinenet_forward(params, x, None)
    out2 = jax.block_until_ready(out2)
    out2_ref, h2_ref = refinenet_ref(params, x, None)
    assert jnp.allclose(out2, out2_ref, atol=1e-4, rtol=1e-4)
    assert jnp.allclose(h2, h2_ref, atol=1e-4, rtol=1e-4)

    print("KERNEL_OK")
</pallas_src>

<mosaic_0001>
module attributes {stable_mosaic.version = 11 : i64} {
  func.func @_refinenet_kernel(%arg0: i32, %arg1: memref<2x8x132xf32, #tpu.memory_space<vmem>>, %arg2: memref<2x2x32xf32, #tpu.memory_space<vmem>>, %arg3: memref<132x96xf32, #tpu.memory_space<vmem>>, %arg4: memref<32x96xf32, #tpu.memory_space<vmem>>, %arg5: memref<1x96xf32, #tpu.memory_space<vmem>>, %arg6: memref<1x32xf32, #tpu.memory_space<vmem>>, %arg7: memref<32x96xf32, #tpu.memory_space<vmem>>, %arg8: memref<32x96xf32, #tpu.memory_space<vmem>>, %arg9: memref<1x96xf32, #tpu.memory_space<vmem>>, %arg10: memref<1x32xf32, #tpu.memory_space<vmem>>, %arg11: memref<32x256xf32, #tpu.memory_space<vmem>>, %arg12: memref<1x256xf32, #tpu.memory_space<vmem>>, %arg13: memref<2x8x256xf32, #tpu.memory_space<vmem>>, %arg14: memref<2x2x32xf32, #tpu.memory_space<vmem>>, %arg15: memref<2x8x96xf32, #tpu.memory_space<vmem>>, %arg16: memref<2x8x32xf32, #tpu.memory_space<vmem>>, %arg17: memref<2x8x32xf32, #tpu.memory_space<vmem>>) attributes {dimension_semantics = [#tpu.dimension_semantics<parallel>], iteration_bounds = array<i64: 1>, scalar_prefetch = 0 : i64, scratch_operands = 3 : i64, tpu.core_type = #tpu.core_type<tc>, window_params = [{transform_indices = @transform_0, window_bounds = array<i64: 2, 8, 132>}, {transform_indices = @transform_1, window_bounds = array<i64: 2, 2, 32>}, {pipeline_mode = #tpu.pipeline_mode<synchronous>, transform_indices = @transform_2, window_bounds = array<i64: 132, 96>}, {pipeline_mode = #tpu.pipeline_mode<synchronous>, transform_indices = @transform_3, window_bounds = array<i64: 32, 96>}, {pipeline_mode = #tpu.pipeline_mode<synchronous>, transform_indices = @transform_4, window_bounds = array<i64: 1, 96>}, {pipeline_mode = #tpu.pipeline_mode<synchronous>, transform_indices = @transform_5, window_bounds = array<i64: 1, 32>}, {pipeline_mode = #tpu.pipeline_mode<synchronous>, transform_indices = @transform_6, window_bounds = array<i64: 32, 96>}, {pipeline_mode = #tpu.pipeline_mode<synchronous>, transform_indices = @transform_7, window_bounds = array<i64: 32, 96>}, {pipeline_mode = #tpu.pipeline_mode<synchronous>, transform_indices = @transform_8, window_bounds = array<i64: 1, 96>}, {pipeline_mode = #tpu.pipeline_mode<synchronous>, transform_indices = @transform_9, window_bounds = array<i64: 1, 32>}, {pipeline_mode = #tpu.pipeline_mode<synchronous>, transform_indices = @transform_10, window_bounds = array<i64: 32, 256>}, {pipeline_mode = #tpu.pipeline_mode<synchronous>, transform_indices = @transform_11, window_bounds = array<i64: 1, 256>}, {transform_indices = @transform_12, window_bounds = array<i64: 2, 8, 256>}, {transform_indices = @transform_13, window_bounds = array<i64: 2, 2, 32>}]} {
    %c0 = arith.constant 0 : index
    %c0_0 = arith.constant 0 : index
    %c0_1 = arith.constant 0 : index
    %0 = vector.load %arg1[%c0, %c0_0, %c0_1] : memref<2x8x132xf32, #tpu.memory_space<vmem>>, vector<2x8x132xf32>
    %1 = vector.shape_cast %0 : vector<2x8x132xf32> to vector<16x132xf32>
    %c0_2 = arith.constant 0 : index
    %c0_3 = arith.constant 0 : index
    %2 = vector.load %arg3[%c0_2, %c0_3] : memref<132x96xf32, #tpu.memory_space<vmem>>, vector<132x96xf32>
    %cst = arith.constant dense<0.000000e+00> : vector<16x96xf32>
    %3 = tpu.matmul %1, %2, %cst {dimension_numbers = #tpu.dot_dimension_numbers<[1], [0], [0], [1], [0, 0, 1, 1], [], []>} : vector<16x132xf32>, vector<132x96xf32>, vector<16x96xf32> -> vector<16x96xf32>
    %c0_4 = arith.constant 0 : index
    %c0_5 = arith.constant 0 : index
    %4 = vector.load %arg5[%c0_4, %c0_5] : memref<1x96xf32, #tpu.memory_space<vmem>>, vector<1x96xf32>
    %5 = vector.broadcast %4 : vector<1x96xf32> to vector<16x96xf32>
    %6 = arith.addf %3, %5 : vector<16x96xf32>
    %7 = vector.shape_cast %6 : vector<16x96xf32> to vector<2x8x96xf32>
    %c0_6 = arith.constant 0 : index
    %c0_7 = arith.constant 0 : index
    %c0_8 = arith.constant 0 : index
    %8 = vector.load %arg15[%c0_6, %c0_7, %c0_8] : memref<2x8x96xf32, #tpu.memory_space<vmem>>, vector<2x8x96xf32>
    tpu.vector_store %arg15[%c0_6, %c0_7, %c0_8], %7 {strides = array<i32>} : memref<2x8x96xf32, #tpu.memory_space<vmem>>, vector<2x8x96xf32>,
    %c0_9 = arith.constant 0 : index
    %c0_10 = arith.constant 0 : index
    %9 = vector.load %arg4[%c0_9, %c0_10] : memref<32x96xf32, #tpu.memory_space<vmem>>, vector<32x96xf32>
    %c0_11 = arith.constant 0 : index
    %c0_12 = arith.constant 0 : index
    %10 = vector.load %arg6[%c0_11, %c0_12] : memref<1x32xf32, #tpu.memory_space<vmem>>, vector<1x32xf32>
    %11 = vector.shape_cast %10 : vector<1x32xf32> to vector<1x32xf32>
    %12 = vector.broadcast %11 : vector<1x32xf32> to vector<2x32xf32>
    %c0_13 = arith.constant 0 : index
    %c0_14 = arith.constant 0 : index
    %c0_15 = arith.constant 0 : index
    %13 = vector.load %arg2[%c0_13, %c0_14, %c0_15] : memref<2x2x32xf32, #tpu.memory_space<vmem>>, vector<1x2x32xf32>
    %14 = vector.shape_cast %13 : vector<1x2x32xf32> to vector<2x32xf32>
    %c0_16 = arith.constant 0 : index
    %c0_17 = arith.constant 0 : index
    %c0_18 = arith.constant 0 : index
    %15 = vector.load %arg15[%c0_16, %c0_17, %c0_18] : memref<2x8x96xf32, #tpu.memory_space<vmem>>, vector<2x8x96xf32>
    %16 = vector.extract_strided_slice %15 {offsets = [0, 0, 0], sizes = [2, 1, 96], strides = [1, 1, 1]} : vector<2x8x96xf32> to vector<2x1x96xf32>
    %17 = vector.shape_cast %16 : vector<2x1x96xf32> to vector<2x96xf32>
    %cst_19 = arith.constant dense<0.000000e+00> : vector<2x96xf32>
    %18 = tpu.matmul %14, %9, %cst_19 {dimension_numbers = #tpu.dot_dimension_numbers<[1], [0], [0], [1], [0, 0, 1, 1], [], []>} : vector<2x32xf32>, vector<32x96xf32>, vector<2x96xf32> -> vector<2x96xf32>
    %19 = vector.extract_strided_slice %17 {offsets = [0, 0], sizes = [2, 64], strides = [1, 1]} : vector<2x96xf32> to vector<2x64xf32>
    %20 = vector.extract_strided_slice %18 {offsets = [0, 0], sizes = [2, 64], strides = [1, 1]} : vector<2x96xf32> to vector<2x64xf32>
    %21 = arith.addf %19, %20 : vector<2x64xf32>
    %22 = arith.negf %21 : vector<2x64xf32>
    %23 = math.exp %22 : vector<2x64xf32>
    %cst_20 = arith.constant 1.000000e+00 : f32
    %24 = vector.broadcast %cst_20 : f32 to vector<2x64xf32>
    %25 = arith.addf %24, %23 : vector<2x64xf32>
    %26 = arith.divf %24, %25 : vector<2x64xf32>
    %27 = vector.extract_strided_slice %26 {offsets = [0, 0], sizes = [2, 32], strides = [1, 1]} : vector<2x64xf32> to vector<2x32xf32>
    %28 = vector.extract_strided_slice %26 {offsets = [0, 32], sizes = [2, 32], strides = [1, 1]} : vector<2x64xf32> to vector<2x32xf32>
    %29 = vector.extract_strided_slice %17 {offsets = [0, 64], sizes = [2, 32], strides = [1, 1]} : vector<2x96xf32> to vector<2x32xf32>
    %30 = vector.extract_strided_slice %18 {offsets = [0, 64], sizes = [2, 32], strides = [1, 1]} : vector<2x96xf32> to vector<2x32xf32>
    %31 = arith.addf %30, %12 : vector<2x32xf32>
    %32 = arith.mulf %27, %31 : vector<2x32xf32>
    %33 = arith.addf %29, %32 : vector<2x32xf32>
    %34 = math.tanh %33 : vector<2x32xf32>
    %cst_21 = arith.constant 1.000000e+00 : f32
    %35 = vector.broadcast %cst_21 : f32 to vector<2x32xf32>
    %36 = arith.subf %35, %28 : vector<2x32xf32>
    %37 = arith.mulf %36, %34 : vector<2x32xf32>
    %38 = arith.mulf %28, %14 : vector<2x32xf32>
    %39 = arith.addf %37, %38 : vector<2x32xf32>
    %40 = vector.shape_cast %39 : vector<2x32xf32> to vector<2x1x32xf32>
    %c0_22 = arith.constant 0 : index
    %c0_23 = arith.constant 0 : index
    %c0_24 = arith.constant 0 : index
    %41 = vector.load %arg17[%c0_22, %c0_23, %c0_24] : memref<2x8x32xf32, #tpu.memory_space<vmem>>, vector<2x1x32xf32>
    tpu.vector_store %arg17[%c0_22, %c0_23, %c0_24], %40 {strides = array<i32>} : memref<2x8x32xf32, #tpu.memory_space<vmem>>, vector<2x1x32xf32>,
    %42 = vector.extract_strided_slice %15 {offsets = [0, 1, 0], sizes = [2, 1, 96], strides = [1, 1, 1]} : vector<2x8x96xf32> to vector<2x1x96xf32>
    %43 = vector.shape_cast %42 : vector<2x1x96xf32> to vector<2x96xf32>
    %cst_25 = arith.constant dense<0.000000e+00> : vector<2x96xf32>
    %44 = tpu.matmul %39, %9, %cst_25 {dimension_numbers = #tpu.dot_dimension_numbers<[1], [0], [0], [1], [0, 0, 1, 1], [], []>} : vector<2x32xf32>, vector<32x96xf32>, vector<2x96xf32> -> vector<2x96xf32>
    %45 = vector.extract_strided_slice %43 {offsets = [0, 0], sizes = [2, 64], strides = [1, 1]} : vector<2x96xf32> to vector<2x64xf32>
    %46 = vector.extract_strided_slice %44 {offsets = [0, 0], sizes = [2, 64], strides = [1, 1]} : vector<2x96xf32> to vector<2x64xf32>
    %47 = arith.addf %45, %46 : vector<2x64xf32>
    %48 = arith.negf %47 : vector<2x64xf32>
    %49 = math.exp %48 : vector<2x64xf32>
    %cst_26 = arith.constant 1.000000e+00 : f32
    %50 = vector.broadcast %cst_26 : f32 to vector<2x64xf32>
    %51 = arith.addf %50, %49 : vector<2x64xf32>
    %52 = arith.divf %50, %51 : vector<2x64xf32>
    %53 = vector.extract_strided_slice %52 {offsets = [0, 0], sizes = [2, 32], strides = [1, 1]} : vector<2x64xf32> to vector<2x32xf32>
    %54 = vector.extract_strided_slice %52 {offsets = [0, 32], sizes = [2, 32], strides = [1, 1]} : vector<2x64xf32> to vector<2x32xf32>
    %55 = vector.extract_strided_slice %43 {offsets = [0, 64], sizes = [2, 32], strides = [1, 1]} : vector<2x96xf32> to vector<2x32xf32>
    %56 = vector.extract_strided_slice %44 {offsets = [0, 64], sizes = [2, 32], strides = [1, 1]} : vector<2x96xf32> to vector<2x32xf32>
    %57 = arith.addf %56, %12 : vector<2x32xf32>
    %58 = arith.mulf %53, %57 : vector<2x32xf32>
    %59 = arith.addf %55, %58 : vector<2x32xf32>
    %60 = math.tanh %59 : vector<2x32xf32>
    %cst_27 = arith.constant 1.000000e+00 : f32
    %61 = vector.broadcast %cst_27 : f32 to vector<2x32xf32>
    %62 = arith.subf %61, %54 : vector<2x32xf32>
    %63 = arith.mulf %62, %60 : vector<2x32xf32>
    %64 = arith.mulf %54, %39 : vector<2x32xf32>
    %65 = arith.addf %63, %64 : vector<2x32xf32>
    %66 = vector.shape_cast %65 : vector<2x32xf32> to vector<2x1x32xf32>
    %c0_28 = arith.constant 0 : index
    %c1 = arith.constant 1 : index
    %c0_29 = arith.constant 0 : index
    %67 = vector.load %arg17[%c0_28, %c1, %c0_29] : memref<2x8x32xf32, #tpu.memory_space<vmem>>, vector<2x1x32xf32>
    tpu.vector_store %arg17[%c0_28, %c1, %c0_29], %66 {strides = array<i32>} : memref<2x8x32xf32, #tpu.memory_space<vmem>>, vector<2x1x32xf32>,
    %68 = vector.extract_strided_slice %15 {offsets = [0, 2, 0], sizes = [2, 1, 96], strides = [1, 1, 1]} : vector<2x8x96xf32> to vector<2x1x96xf32>
    %69 = vector.shape_cast %68 : vector<2x1x96xf32> to vector<2x96xf32>
    %cst_30 = arith.constant dense<0.000000e+00> : vector<2x96xf32>
    %70 = tpu.matmul %65, %9, %cst_30 {dimension_numbers = #tpu.dot_dimension_numbers<[1], [0], [0], [1], [0, 0, 1, 1], [], []>} : vector<2x32xf32>, vector<32x96xf32>, vector<2x96xf32> -> vector<2x96xf32>
    %71 = vector.extract_strided_slice %69 {offsets = [0, 0], sizes = [2, 64], strides = [1, 1]} : vector<2x96xf32> to vector<2x64xf32>
    %72 = vector.extract_strided_slice %70 {offsets = [0, 0], sizes = [2, 64], strides = [1, 1]} : vector<2x96xf32> to vector<2x64xf32>
    %73 = arith.addf %71, %72 : vector<2x64xf32>
    %74 = arith.negf %73 : vector<2x64xf32>
    %75 = math.exp %74 : vector<2x64xf32>
    %cst_31 = arith.constant 1.000000e+00 : f32
    %76 = vector.broadcast %cst_31 : f32 to vector<2x64xf32>
    %77 = arith.addf %76, %75 : vector<2x64xf32>
    %78 = arith.divf %76, %77 : vector<2x64xf32>
    %79 = vector.extract_strided_slice %78 {offsets = [0, 0], sizes = [2, 32], strides = [1, 1]} : vector<2x64xf32> to vector<2x32xf32>
    %80 = vector.extract_strided_slice %78 {offsets = [0, 32], sizes = [2, 32], strides = [1, 1]} : vector<2x64xf32> to vector<2x32xf32>
    %81 = vector.extract_strided_slice %69 {offsets = [0, 64], sizes = [2, 32], strides = [1, 1]} : vector<2x96xf32> to vector<2x32xf32>
    %82 = vector.extract_strided_slice %70 {offsets = [0, 64], sizes = [2, 32], strides = [1, 1]} : vector<2x96xf32> to vector<2x32xf32>
    %83 = arith.addf %82, %12 : vector<2x32xf32>
    %84 = arith.mulf %79, %83 : vector<2x32xf32>
    %85 = arith.addf %81, %84 : vector<2x32xf32>
    %86 = math.tanh %85 : vector<2x32xf32>
    %cst_32 = arith.constant 1.000000e+00 : f32
    %87 = vector.broadcast %cst_32 : f32 to vector<2x32xf32>
    %88 = arith.subf %87, %80 : vector<2x32xf32>
    %89 = arith.mulf %88, %86 : vector<2x32xf32>
    %90 = arith.mulf %80, %65 : vector<2x32xf32>
    %91 = arith.addf %89, %90 : vector<2x32xf32>
    %92 = vector.shape_cast %91 : vector<2x32xf32> to vector<2x1x32xf32>
    %c0_33 = arith.constant 0 : index
    %c2 = arith.constant 2 : index
    %c0_34 = arith.constant 0 : index
    %93 = vector.load %arg17[%c0_33, %c2, %c0_34] : memref<2x8x32xf32, #tpu.memory_space<vmem>>, vector<2x1x32xf32>
    tpu.vector_store %arg17[%c0_33, %c2, %c0_34], %92 {strides = array<i32>} : memref<2x8x32xf32, #tpu.memory_space<vmem>>, vector<2x1x32xf32>,
    %94 = vector.extract_strided_slice %15 {offsets = [0, 3, 0], sizes = [2, 1, 96], strides = [1, 1, 1]} : vector<2x8x96xf32> to vector<2x1x96xf32>
    %95 = vector.shape_cast %94 : vector<2x1x96xf32> to vector<2x96xf32>
    %cst_35 = arith.constant dense<0.000000e+00> : vector<2x96xf32>
    %96 = tpu.matmul %91, %9, %cst_35 {dimension_numbers = #tpu.dot_dimension_numbers<[1], [0], [0], [1], [0, 0, 1, 1], [], []>} : vector<2x32xf32>, vector<32x96xf32>, vector<2x96xf32> -> vector<2x96xf32>
    %97 = vector.extract_strided_slice %95 {offsets = [0, 0], sizes = [2, 64], strides = [1, 1]} : vector<2x96xf32> to vector<2x64xf32>
    %98 = vector.extract_strided_slice %96 {offsets = [0, 0], sizes = [2, 64], strides = [1, 1]} : vector<2x96xf32> to vector<2x64xf32>
    %99 = arith.addf %97, %98 : vector<2x64xf32>
    %100 = arith.negf %99 : vector<2x64xf32>
    %101 = math.exp %100 : vector<2x64xf32>
    %cst_36 = arith.constant 1.000000e+00 : f32
    %102 = vector.broadcast %cst_36 : f32 to vector<2x64xf32>
    %103 = arith.addf %102, %101 : vector<2x64xf32>
    %104 = arith.divf %102, %103 : vector<2x64xf32>
    %105 = vector.extract_strided_slice %104 {offsets = [0, 0], sizes = [2, 32], strides = [1, 1]} : vector<2x64xf32> to vector<2x32xf32>
    %106 = vector.extract_strided_slice %104 {offsets = [0, 32], sizes = [2, 32], strides = [1, 1]} : vector<2x64xf32> to vector<2x32xf32>
    %107 = vector.extract_strided_slice %95 {offsets = [0, 64], sizes = [2, 32], strides = [1, 1]} : vector<2x96xf32> to vector<2x32xf32>
    %108 = vector.extract_strided_slice %96 {offsets = [0, 64], sizes = [2, 32], strides = [1, 1]} : vector<2x96xf32> to vector<2x32xf32>
    %109 = arith.addf %108, %12 : vector<2x32xf32>
    %110 = arith.mulf %105, %109 : vector<2x32xf32>
    %111 = arith.addf %107, %110 : vector<2x32xf32>
    %112 = math.tanh %111 : vector<2x32xf32>
    %cst_37 = arith.constant 1.000000e+00 : f32
    %113 = vector.broadcast %cst_37 : f32 to vector<2x32xf32>
    %114 = arith.subf %113, %106 : vector<2x32xf32>
    %115 = arith.mulf %114, %112 : vector<2x32xf32>
    %116 = arith.mulf %106, %91 : vector<2x32xf32>
    %117 = arith.addf %115, %116 : vector<2x32xf32>
    %118 = vector.shape_cast %117 : vector<2x32xf32> to vector<2x1x32xf32>
    %c0_38 = arith.constant 0 : index
    %c3 = arith.constant 3 : index
    %c0_39 = arith.constant 0 : index
    %119 = vector.load %arg17[%c0_38, %c3, %c0_39] : memref<2x8x32xf32, #tpu.memory_space<vmem>>, vector<2x1x32xf32>
    tpu.vector_store %arg17[%c0_38, %c3, %c0_39], %118 {strides = array<i32>} : memref<2x8x32xf32, #tpu.memory_space<vmem>>, vector<2x1x32xf32>,
    %120 = vector.extract_strided_slice %15 {offsets = [0, 4, 0], sizes = [2, 1, 96], strides = [1, 1, 1]} : vector<2x8x96xf32> to vector<2x1x96xf32>
    %121 = vector.shape_cast %120 : vector<2x1x96xf32> to vector<2x96xf32>
    %cst_40 = arith.constant dense<0.000000e+00> : vector<2x96xf32>
    %122 = tpu.matmul %117, %9, %cst_40 {dimension_numbers = #tpu.dot_dimension_numbers<[1], [0], [0], [1], [0, 0, 1, 1], [], []>} : vector<2x32xf32>, vector<32x96xf32>, vector<2x96xf32> -> vector<2x96xf32>
    %123 = vector.extract_strided_slice %121 {offsets = [0, 0], sizes = [2, 64], strides = [1, 1]} : vector<2x96xf32> to vector<2x64xf32>
    %124 = vector.extract_strided_slice %122 {offsets = [0, 0], sizes = [2, 64], strides = [1, 1]} : vector<2x96xf32> to vector<2x64xf32>
    %125 = arith.addf %123, %124 : vector<2x64xf32>
    %126 = arith.negf %125 : vector<2x64xf32>
    %127 = math.exp %126 : vector<2x64xf32>
    %cst_41 = arith.constant 1.000000e+00 : f32
    %128 = vector.broadcast %cst_41 : f32 to vector<2x64xf32>
    %129 = arith.addf %128, %127 : vector<2x64xf32>
    %130 = arith.divf %128, %129 : vector<2x64xf32>
    %131 = vector.extract_strided_slice %130 {offsets = [0, 0], sizes = [2, 32], strides = [1, 1]} : vector<2x64xf32> to vector<2x32xf32>
    %132 = vector.extract_strided_slice %130 {offsets = [0, 32], sizes = [2, 32], strides = [1, 1]} : vector<2x64xf32> to vector<2x32xf32>
    %133 = vector.extract_strided_slice %121 {offsets = [0, 64], sizes = [2, 32], strides = [1, 1]} : vector<2x96xf32> to vector<2x32xf32>
    %134 = vector.extract_strided_slice %122 {offsets = [0, 64], sizes = [2, 32], strides = [1, 1]} : vector<2x96xf32> to vector<2x32xf32>
    %135 = arith.addf %134, %12 : vector<2x32xf32>
    %136 = arith.mulf %131, %135 : vector<2x32xf32>
    %137 = arith.addf %133, %136 : vector<2x32xf32>
    %138 = math.tanh %137 : vector<2x32xf32>
    %cst_42 = arith.constant 1.000000e+00 : f32
    %139 = vector.broadcast %cst_42 : f32 to vector<2x32xf32>
    %140 = arith.subf %139, %132 : vector<2x32xf32>
    %141 = arith.mulf %140, %138 : vector<2x32xf32>
    %142 = arith.mulf %132, %117 : vector<2x32xf32>
    %143 = arith.addf %141, %142 : vector<2x32xf32>
    %144 = vector.shape_cast %143 : vector<2x32xf32> to vector<2x1x32xf32>
    %c0_43 = arith.constant 0 : index
    %c4 = arith.constant 4 : index
    %c0_44 = arith.constant 0 : index
    %145 = vector.load %arg17[%c0_43, %c4, %c0_44] : memref<2x8x32xf32, #tpu.memory_space<vmem>>, vector<2x1x32xf32>
    tpu.vector_store %arg17[%c0_43, %c4, %c0_44], %144 {strides = array<i32>} : memref<2x8x32xf32, #tpu.memory_space<vmem>>, vector<2x1x32xf32>,
    %146 = vector.extract_strided_slice %15 {offsets = [0, 5, 0], sizes = [2, 1, 96], strides = [1, 1, 1]} : vector<2x8x96xf32> to vector<2x1x96xf32>
    %147 = vector.shape_cast %146 : vector<2x1x96xf32> to vector<2x96xf32>
    %cst_45 = arith.constant dense<0.000000e+00> : vector<2x96xf32>
    %148 = tpu.matmul %143, %9, %cst_45 {dimension_numbers = #tpu.dot_dimension_numbers<[1], [0], [0], [1], [0, 0, 1, 1], [], []>} : vector<2x32xf32>, vector<32x96xf32>, vector<2x96xf32> -> vector<2x96xf32>
    %149 = vector.extract_strided_slice %147 {offsets = [0, 0], sizes = [2, 64], strides = [1, 1]} : vector<2x96xf32> to vector<2x64xf32>
    %150 = vector.extract_strided_slice %148 {offsets = [0, 0], sizes = [2, 64], strides = [1, 1]} : vector<2x96xf32> to vector<2x64xf32>
    %151 = arith.addf %149, %150 : vector<2x64xf32>
    %152 = arith.negf %151 : vector<2x64xf32>
    %153 = math.exp %152 : vector<2x64xf32>
    %cst_46 = arith.constant 1.000000e+00 : f32
    %154 = vector.broadcast %cst_46 : f32 to vector<2x64xf32>
    %155 = arith.addf %154, %153 : vector<2x64xf32>
    %156 = arith.divf %154, %155 : vector<2x64xf32>
    %157 = vector.extract_strided_slice %156 {offsets = [0, 0], sizes = [2, 32], strides = [1, 1]} : vector<2x64xf32> to vector<2x32xf32>
    %158 = vector.extract_strided_slice %156 {offsets = [0, 32], sizes = [2, 32], strides = [1, 1]} : vector<2x64xf32> to vector<2x32xf32>
    %159 = vector.extract_strided_slice %147 {offsets = [0, 64], sizes = [2, 32], strides = [1, 1]} : vector<2x96xf32> to vector<2x32xf32>
    %160 = vector.extract_strided_slice %148 {offsets = [0, 64], sizes = [2, 32], strides = [1, 1]} : vector<2x96xf32> to vector<2x32xf32>
    %161 = arith.addf %160, %12 : vector<2x32xf32>
    %162 = arith.mulf %157, %161 : vector<2x32xf32>
    %163 = arith.addf %159, %162 : vector<2x32xf32>
    %164 = math.tanh %163 : vector<2x32xf32>
    %cst_47 = arith.constant 1.000000e+00 : f32
    %165 = vector.broadcast %cst_47 : f32 to vector<2x32xf32>
    %166 = arith.subf %165, %158 : vector<2x32xf32>
    %167 = arith.mulf %166, %164 : vector<2x32xf32>
    %168 = arith.mulf %158, %143 : vector<2x32xf32>
    %169 = arith.addf %167, %168 : vector<2x32xf32>
    %170 = vector.shape_cast %169 : vector<2x32xf32> to vector<2x1x32xf32>
    %c0_48 = arith.constant 0 : index
    %c5 = arith.constant 5 : index
    %c0_49 = arith.constant 0 : index
    %171 = vector.load %arg17[%c0_48, %c5, %c0_49] : memref<2x8x32xf32, #tpu.memory_space<vmem>>, vector<2x1x32xf32>
    tpu.vector_store %arg17[%c0_48, %c5, %c0_49], %170 {strides = array<i32>} : memref<2x8x32xf32, #tpu.memory_space<vmem>>, vector<2x1x32xf32>,
    %172 = vector.extract_strided_slice %15 {offsets = [0, 6, 0], sizes = [2, 1, 96], strides = [1, 1, 1]} : vector<2x8x96xf32> to vector<2x1x96xf32>
    %173 = vector.shape_cast %172 : vector<2x1x96xf32> to vector<2x96xf32>
    %cst_50 = arith.constant dense<0.000000e+00> : vector<2x96xf32>
    %174 = tpu.matmul %169, %9, %cst_50 {dimension_numbers = #tpu.dot_dimension_numbers<[1], [0], [0], [1], [0, 0, 1, 1], [], []>} : vector<2x32xf32>, vector<32x96xf32>, vector<2x96xf32> -> vector<2x96xf32>
    %175 = vector.extract_strided_slice %173 {offsets = [0, 0], sizes = [2, 64], strides = [1, 1]} : vector<2x96xf32> to vector<2x64xf32>
    %176 = vector.extract_strided_slice %174 {offsets = [0, 0], sizes = [2, 64], strides = [1, 1]} : vector<2x96xf32> to vector<2x64xf32>
    %177 = arith.addf %175, %176 : vector<2x64xf32>
    %178 = arith.negf %177 : vector<2x64xf32>
    %179 = math.exp %178 : vector<2x64xf32>
    %cst_51 = arith.constant 1.000000e+00 : f32
    %180 = vector.broadcast %cst_51 : f32 to vector<2x64xf32>
    %181 = arith.addf %180, %179 : vector<2x64xf32>
    %182 = arith.divf %180, %181 : vector<2x64xf32>
    %183 = vector.extract_strided_slice %182 {offsets = [0, 0], sizes = [2, 32], strides = [1, 1]} : vector<2x64xf32> to vector<2x32xf32>
    %184 = vector.extract_strided_slice %182 {offsets = [0, 32], sizes = [2, 32], strides = [1, 1]} : vector<2x64xf32> to vector<2x32xf32>
    %185 = vector.extract_strided_slice %173 {offsets = [0, 64], sizes = [2, 32], strides = [1, 1]} : vector<2x96xf32> to vector<2x32xf32>
    %186 = vector.extract_strided_slice %174 {offsets = [0, 64], sizes = [2, 32], strides = [1, 1]} : vector<2x96xf32> to vector<2x32xf32>
    %187 = arith.addf %186, %12 : vector<2x32xf32>
    %188 = arith.mulf %183, %187 : vector<2x32xf32>
    %189 = arith.addf %185, %188 : vector<2x32xf32>
    %190 = math.tanh %189 : vector<2x32xf32>
    %cst_52 = arith.constant 1.000000e+00 : f32
    %191 = vector.broadcast %cst_52 : f32 to vector<2x32xf32>
    %192 = arith.subf %191, %184 : vector<2x32xf32>
    %193 = arith.mulf %192, %190 : vector<2x32xf32>
    %194 = arith.mulf %184, %169 : vector<2x32xf32>
    %195 = arith.addf %193, %194 : vector<2x32xf32>
    %196 = vector.shape_cast %195 : vector<2x32xf32> to vector<2x1x32xf32>
    %c0_53 = arith.constant 0 : index
    %c6 = arith.constant 6 : index
    %c0_54 = arith.constant 0 : index
    %197 = vector.load %arg17[%c0_53, %c6, %c0_54] : memref<2x8x32xf32, #tpu.memory_space<vmem>>, vector<2x1x32xf32>
    tpu.vector_store %arg17[%c0_53, %c6, %c0_54], %196 {strides = array<i32>} : memref<2x8x32xf32, #tpu.memory_space<vmem>>, vector<2x1x32xf32>,
    %198 = vector.extract_strided_slice %15 {offsets = [0, 7, 0], sizes = [2, 1, 96], strides = [1, 1, 1]} : vector<2x8x96xf32> to vector<2x1x96xf32>
    %199 = vector.shape_cast %198 : vector<2x1x96xf32> to vector<2x96xf32>
    %cst_55 = arith.constant dense<0.000000e+00> : vector<2x96xf32>
    %200 = tpu.matmul %195, %9, %cst_55 {dimension_numbers = #tpu.dot_dimension_numbers<[1], [0], [0], [1], [0, 0, 1, 1], [], []>} : vector<2x32xf32>, vector<32x96xf32>, vector<2x96xf32> -> vector<2x96xf32>
    %201 = vector.extract_strided_slice %199 {offsets = [0, 0], sizes = [2, 64], strides = [1, 1]} : vector<2x96xf32> to vector<2x64xf32>
    %202 = vector.extract_strided_slice %200 {offsets = [0, 0], sizes = [2, 64], strides = [1, 1]} : vector<2x96xf32> to vector<2x64xf32>
    %203 = arith.addf %201, %202 : vector<2x64xf32>
    %204 = arith.negf %203 : vector<2x64xf32>
    %205 = math.exp %204 : vector<2x64xf32>
    %cst_56 = arith.constant 1.000000e+00 : f32
    %206 = vector.broadcast %cst_56 : f32 to vector<2x64xf32>
    %207 = arith.addf %206, %205 : vector<2x64xf32>
    %208 = arith.divf %206, %207 : vector<2x64xf32>
    %209 = vector.extract_strided_slice %208 {offsets = [0, 0], sizes = [2, 32], strides = [1, 1]} : vector<2x64xf32> to vector<2x32xf32>
    %210 = vector.extract_strided_slice %208 {offsets = [0, 32], sizes = [2, 32], strides = [1, 1]} : vector<2x64xf32> to vector<2x32xf32>
    %211 = vector.extract_strided_slice %199 {offsets = [0, 64], sizes = [2, 32], strides = [1, 1]} : vector<2x96xf32> to vector<2x32xf32>
    %212 = vector.extract_strided_slice %200 {offsets = [0, 64], sizes = [2, 32], strides = [1, 1]} : vector<2x96xf32> to vector<2x32xf32>
    %213 = arith.addf %212, %12 : vector<2x32xf32>
    %214 = arith.mulf %209, %213 : vector<2x32xf32>
    %215 = arith.addf %211, %214 : vector<2x32xf32>
    %216 = math.tanh %215 : vector<2x32xf32>
    %cst_57 = arith.constant 1.000000e+00 : f32
    %217 = vector.broadcast %cst_57 : f32 to vector<2x32xf32>
    %218 = arith.subf %217, %210 : vector<2x32xf32>
    %219 = arith.mulf %218, %216 : vector<2x32xf32>
    %220 = arith.mulf %210, %195 : vector<2x32xf32>
    %221 = arith.addf %219, %220 : vector<2x32xf32>
    %222 = vector.shape_cast %221 : vector<2x32xf32> to vector<2x1x32xf32>
    %c0_58 = arith.constant 0 : index
    %c7 = arith.constant 7 : index
    %c0_59 = arith.constant 0 : index
    %223 = vector.load %arg17[%c0_58, %c7, %c0_59] : memref<2x8x32xf32, #tpu.memory_space<vmem>>, vector<2x1x32xf32>
    tpu.vector_store %arg17[%c0_58, %c7, %c0_59], %222 {strides = array<i32>} : memref<2x8x32xf32, #tpu.memory_space<vmem>>, vector<2x1x32xf32>,
    %c0_60 = arith.constant 0 : index
    %c0_61 = arith.constant 0 : index
    %c0_62 = arith.constant 0 : index
    %224 = vector.load %arg17[%c0_60, %c0_61, %c0_62] : memref<2x8x32xf32, #tpu.memory_space<vmem>>, vector<2x8x32xf32>
    %c0_63 = arith.constant 0 : index
    %c0_64 = arith.constant 0 : index
    %c0_65 = arith.constant 0 : index
    %225 = vector.load %arg16[%c0_63, %c0_64, %c0_65] : memref<2x8x32xf32, #tpu.memory_space<vmem>>, vector<2x8x32xf32>
    tpu.vector_store %arg16[%c0_63, %c0_64, %c0_65], %224 {strides = array<i32>} : memref<2x8x32xf32, #tpu.memory_space<vmem>>, vector<2x8x32xf32>,
    %226 = vector.shape_cast %221 : vector<2x32xf32> to vector<1x2x32xf32>
    %c0_66 = arith.constant 0 : index
    %c0_67 = arith.constant 0 : index
    %c0_68 = arith.constant 0 : index
    %227 = vector.load %arg14[%c0_66, %c0_67, %c0_68] : memref<2x2x32xf32, #tpu.memory_space<vmem>>, vector<1x2x32xf32>
    tpu.vector_store %arg14[%c0_66, %c0_67, %c0_68], %226 {strides = array<i32>} : memref<2x2x32xf32, #tpu.memory_space<vmem>>, vector<1x2x32xf32>,
    %c0_69 = arith.constant 0 : index
    %c0_70 = arith.constant 0 : index
    %c0_71 = arith.constant 0 : index
    %228 = vector.load %arg16[%c0_69, %c0_70, %c0_71] : memref<2x8x32xf32, #tpu.memory_space<vmem>>, vector<2x8x32xf32>
    %229 = vector.shape_cast %228 : vector<2x8x32xf32> to vector<16x32xf32>
    %c0_72 = arith.constant 0 : index
    %c0_73 = arith.constant 0 : index
    %230 = vector.load %arg7[%c0_72, %c0_73] : memref<32x96xf32, #tpu.memory_space<vmem>>, vector<32x96xf32>
    %cst_74 = arith.constant dense<0.000000e+00> : vector<16x96xf32>
    %231 = tpu.matmul %229, %230, %cst_74 {dimension_numbers = #tpu.dot_dimension_numbers<[1], [0], [0], [1], [0, 0, 1, 1], [], []>} : vector<16x32xf32>, vector<32x96xf32>, vector<16x96xf32> -> vector<16x96xf32>
    %c0_75 = arith.constant 0 : index
    %c0_76 = arith.constant 0 : index
    %232 = vector.load %arg9[%c0_75, %c0_76] : memref<1x96xf32, #tpu.memory_space<vmem>>, vector<1x96xf32>
    %233 = vector.broadcast %232 : vector<1x96xf32> to vector<16x96xf32>
    %234 = arith.addf %231, %233 : vector<16x96xf32>
    %235 = vector.shape_cast %234 : vector<16x96xf32> to vector<2x8x96xf32>
    %c0_77 = arith.constant 0 : index
    %c0_78 = arith.constant 0 : index
    %c0_79 = arith.constant 0 : index
    %236 = vector.load %arg15[%c0_77, %c0_78, %c0_79] : memref<2x8x96xf32, #tpu.memory_space<vmem>>, vector<2x8x96xf32>
    tpu.vector_store %arg15[%c0_77, %c0_78, %c0_79], %235 {strides = array<i32>} : memref<2x8x96xf32, #tpu.memory_space<vmem>>, vector<2x8x96xf32>,
    %c0_80 = arith.constant 0 : index
    %c0_81 = arith.constant 0 : index
    %237 = vector.load %arg8[%c0_80, %c0_81] : memref<32x96xf32, #tpu.memory_space<vmem>>, vector<32x96xf32>
    %c0_82 = arith.constant 0 : index
    %c0_83 = arith.constant 0 : index
    %238 = vector.load %arg10[%c0_82, %c0_83] : memref<1x32xf32, #tpu.memory_space<vmem>>, vector<1x32xf32>
    %239 = vector.shape_cast %238 : vector<1x32xf32> to vector<1x32xf32>
    %240 = vector.broadcast %239 : vector<1x32xf32> to vector<2x32xf32>
    %c1_84 = arith.constant 1 : index
    %c0_85 = arith.constant 0 : index
    %c0_86 = arith.constant 0 : index
    %241 = vector.load %arg2[%c1_84, %c0_85, %c0_86] : memref<2x2x32xf32, #tpu.memory_space<vmem>>, vector<1x2x32xf32>
    %242 = vector.shape_cast %241 : vector<1x2x32xf32> to vector<2x32xf32>
    %c0_87 = arith.constant 0 : index
    %c0_88 = arith.constant 0 : index
    %c0_89 = arith.constant 0 : index
    %243 = vector.load %arg15[%c0_87, %c0_88, %c0_89] : memref<2x8x96xf32, #tpu.memory_space<vmem>>, vector<2x8x96xf32>
    %244 = vector.extract_strided_slice %243 {offsets = [0, 0, 0], sizes = [2, 1, 96], strides = [1, 1, 1]} : vector<2x8x96xf32> to vector<2x1x96xf32>
    %245 = vector.shape_cast %244 : vector<2x1x96xf32> to vector<2x96xf32>
    %cst_90 = arith.constant dense<0.000000e+00> : vector<2x96xf32>
    %246 = tpu.matmul %242, %237, %cst_90 {dimension_numbers = #tpu.dot_dimension_numbers<[1], [0], [0], [1], [0, 0, 1, 1], [], []>} : vector<2x32xf32>, vector<32x96xf32>, vector<2x96xf32> -> vector<2x96xf32>
    %247 = vector.extract_strided_slice %245 {offsets = [0, 0], sizes = [2, 64], strides = [1, 1]} : vector<2x96xf32> to vector<2x64xf32>
    %248 = vector.extract_strided_slice %246 {offsets = [0, 0], sizes = [2, 64], strides = [1, 1]} : vector<2x96xf32> to vector<2x64xf32>
    %249 = arith.addf %247, %248 : vector<2x64xf32>
    %250 = arith.negf %249 : vector<2x64xf32>
    %251 = math.exp %250 : vector<2x64xf32>
    %cst_91 = arith.constant 1.000000e+00 : f32
    %252 = vector.broadcast %cst_91 : f32 to vector<2x64xf32>
    %253 = arith.addf %252, %251 : vector<2x64xf32>
    %254 = arith.divf %252, %253 : vector<2x64xf32>
    %255 = vector.extract_strided_slice %254 {offsets = [0, 0], sizes = [2, 32], strides = [1, 1]} : vector<2x64xf32> to vector<2x32xf32>
    %256 = vector.extract_strided_slice %254 {offsets = [0, 32], sizes = [2, 32], strides = [1, 1]} : vector<2x64xf32> to vector<2x32xf32>
    %257 = vector.extract_strided_slice %245 {offsets = [0, 64], sizes = [2, 32], strides = [1, 1]} : vector<2x96xf32> to vector<2x32xf32>
    %258 = vector.extract_strided_slice %246 {offsets = [0, 64], sizes = [2, 32], strides = [1, 1]} : vector<2x96xf32> to vector<2x32xf32>
    %259 = arith.addf %258, %240 : vector<2x32xf32>
    %260 = arith.mulf %255, %259 : vector<2x32xf32>
    %261 = arith.addf %257, %260 : vector<2x32xf32>
    %262 = math.tanh %261 : vector<2x32xf32>
    %cst_92 = arith.constant 1.000000e+00 : f32
    %263 = vector.broadcast %cst_92 : f32 to vector<2x32xf32>
    %264 = arith.subf %263, %256 : vector<2x32xf32>
    %265 = arith.mulf %264, %262 : vector<2x32xf32>
    %266 = arith.mulf %256, %242 : vector<2x32xf32>
    %267 = arith.addf %265, %266 : vector<2x32xf32>
    %268 = vector.shape_cast %267 : vector<2x32xf32> to vector<2x1x32xf32>
    %c0_93 = arith.constant 0 : index
    %c0_94 = arith.constant 0 : index
    %c0_95 = arith.constant 0 : index
    %269 = vector.load %arg17[%c0_93, %c0_94, %c0_95] : memref<2x8x32xf32, #tpu.memory_space<vmem>>, vector<2x1x32xf32>
    tpu.vector_store %arg17[%c0_93, %c0_94, %c0_95], %268 {strides = array<i32>} : memref<2x8x32xf32, #tpu.memory_space<vmem>>, vector<2x1x32xf32>,
    %270 = vector.extract_strided_slice %243 {offsets = [0, 1, 0], sizes = [2, 1, 96], strides = [1, 1, 1]} : vector<2x8x96xf32> to vector<2x1x96xf32>
    %271 = vector.shape_cast %270 : vector<2x1x96xf32> to vector<2x96xf32>
    %cst_96 = arith.constant dense<0.000000e+00> : vector<2x96xf32>
    %272 = tpu.matmul %267, %237, %cst_96 {dimension_numbers = #tpu.dot_dimension_numbers<[1], [0], [0], [1], [0, 0, 1, 1], [], []>} : vector<2x32xf32>, vector<32x96xf32>, vector<2x96xf32> -> vector<2x96xf32>
    %273 = vector.extract_strided_slice %271 {offsets = [0, 0], sizes = [2, 64], strides = [1, 1]} : vector<2x96xf32> to vector<2x64xf32>
    %274 = vector.extract_strided_slice %272 {offsets = [0, 0], sizes = [2, 64], strides = [1, 1]} : vector<2x96xf32> to vector<2x64xf32>
    %275 = arith.addf %273, %274 : vector<2x64xf32>
    %276 = arith.negf %275 : vector<2x64xf32>
    %277 = math.exp %276 : vector<2x64xf32>
    %cst_97 = arith.constant 1.000000e+00 : f32
    %278 = vector.broadcast %cst_97 : f32 to vector<2x64xf32>
    %279 = arith.addf %278, %277 : vector<2x64xf32>
    %280 = arith.divf %278, %279 : vector<2x64xf32>
    %281 = vector.extract_strided_slice %280 {offsets = [0, 0], sizes = [2, 32], strides = [1, 1]} : vector<2x64xf32> to vector<2x32xf32>
    %282 = vector.extract_strided_slice %280 {offsets = [0, 32], sizes = [2, 32], strides = [1, 1]} : vector<2x64xf32> to vector<2x32xf32>
    %283 = vector.extract_strided_slice %271 {offsets = [0, 64], sizes = [2, 32], strides = [1, 1]} : vector<2x96xf32> to vector<2x32xf32>
    %284 = vector.extract_strided_slice %272 {offsets = [0, 64], sizes = [2, 32], strides = [1, 1]} : vector<2x96xf32> to vector<2x32xf32>
    %285 = arith.addf %284, %240 : vector<2x32xf32>
    %286 = arith.mulf %281, %285 : vector<2x32xf32>
    %287 = arith.addf %283, %286 : vector<2x32xf32>
    %288 = math.tanh %287 : vector<2x32xf32>
    %cst_98 = arith.constant 1.000000e+00 : f32
    %289 = vector.broadcast %cst_98 : f32 to vector<2x32xf32>
    %290 = arith.subf %289, %282 : vector<2x32xf32>
    %291 = arith.mulf %290, %288 : vector<2x32xf32>
    %292 = arith.mulf %282, %267 : vector<2x32xf32>
    %293 = arith.addf %291, %292 : vector<2x32xf32>
    %294 = vector.shape_cast %293 : vector<2x32xf32> to vector<2x1x32xf32>
    %c0_99 = arith.constant 0 : index
    %c1_100 = arith.constant 1 : index
    %c0_101 = arith.constant 0 : index
    %295 = vector.load %arg17[%c0_99, %c1_100, %c0_101] : memref<2x8x32xf32, #tpu.memory_space<vmem>>, vector<2x1x32xf32>
    tpu.vector_store %arg17[%c0_99, %c1_100, %c0_101], %294 {strides = array<i32>} : memref<2x8x32xf32, #tpu.memory_space<vmem>>, vector<2x1x32xf32>,
    %296 = vector.extract_strided_slice %243 {offsets = [0, 2, 0], sizes = [2, 1, 96], strides = [1, 1, 1]} : vector<2x8x96xf32> to vector<2x1x96xf32>
    %297 = vector.shape_cast %296 : vector<2x1x96xf32> to vector<2x96xf32>
    %cst_102 = arith.constant dense<0.000000e+00> : vector<2x96xf32>
    %298 = tpu.matmul %293, %237, %cst_102 {dimension_numbers = #tpu.dot_dimension_numbers<[1], [0], [0], [1], [0, 0, 1, 1], [], []>} : vector<2x32xf32>, vector<32x96xf32>, vector<2x96xf32> -> vector<2x96xf32>
    %299 = vector.extract_strided_slice %297 {offsets = [0, 0], sizes = [2, 64], strides = [1, 1]} : vector<2x96xf32> to vector<2x64xf32>
    %300 = vector.extract_strided_slice %298 {offsets = [0, 0], sizes = [2, 64], strides = [1, 1]} : vector<2x96xf32> to vector<2x64xf32>
    %301 = arith.addf %299, %300 : vector<2x64xf32>
    %302 = arith.negf %301 : vector<2x64xf32>
    %303 = math.exp %302 : vector<2x64xf32>
    %cst_103 = arith.constant 1.000000e+00 : f32
    %304 = vector.broadcast %cst_103 : f32 to vector<2x64xf32>
    %305 = arith.addf %304, %303 : vector<2x64xf32>
    %306 = arith.divf %304, %305 : vector<2x64xf32>
    %307 = vector.extract_strided_slice %306 {offsets = [0, 0], sizes = [2, 32], strides = [1, 1]} : vector<2x64xf32> to vector<2x32xf32>
    %308 = vector.extract_strided_slice %306 {offsets = [0, 32], sizes = [2, 32], strides = [1, 1]} : vector<2x64xf32> to vector<2x32xf32>
    %309 = vector.extract_strided_slice %297 {offsets = [0, 64], sizes = [2, 32], strides = [1, 1]} : vector<2x96xf32> to vector<2x32xf32>
    %310 = vector.extract_strided_slice %298 {offsets = [0, 64], sizes = [2, 32], strides = [1, 1]} : vector<2x96xf32> to vector<2x32xf32>
    %311 = arith.addf %310, %240 : vector<2x32xf32>
    %312 = arith.mulf %307, %311 : vector<2x32xf32>
    %313 = arith.addf %309, %312 : vector<2x32xf32>
    %314 = math.tanh %313 : vector<2x32xf32>
    %cst_104 = arith.constant 1.000000e+00 : f32
    %315 = vector.broadcast %cst_104 : f32 to vector<2x32xf32>
    %316 = arith.subf %315, %308 : vector<2x32xf32>
    %317 = arith.mulf %316, %314 : vector<2x32xf32>
    %318 = arith.mulf %308, %293 : vector<2x32xf32>
    %319 = arith.addf %317, %318 : vector<2x32xf32>
    %320 = vector.shape_cast %319 : vector<2x32xf32> to vector<2x1x32xf32>
    %c0_105 = arith.constant 0 : index
    %c2_106 = arith.constant 2 : index
    %c0_107 = arith.constant 0 : index
    %321 = vector.load %arg17[%c0_105, %c2_106, %c0_107] : memref<2x8x32xf32, #tpu.memory_space<vmem>>, vector<2x1x32xf32>
    tpu.vector_store %arg17[%c0_105, %c2_106, %c0_107], %320 {strides = array<i32>} : memref<2x8x32xf32, #tpu.memory_space<vmem>>, vector<2x1x32xf32>,
    %322 = vector.extract_strided_slice %243 {offsets = [0, 3, 0], sizes = [2, 1, 96], strides = [1, 1, 1]} : vector<2x8x96xf32> to vector<2x1x96xf32>
    %323 = vector.shape_cast %322 : vector<2x1x96xf32> to vector<2x96xf32>
    %cst_108 = arith.constant dense<0.000000e+00> : vector<2x96xf32>
    %324 = tpu.matmul %319, %237, %cst_108 {dimension_numbers = #tpu.dot_dimension_numbers<[1], [0], [0], [1], [0, 0, 1, 1], [], []>} : vector<2x32xf32>, vector<32x96xf32>, vector<2x96xf32> -> vector<2x96xf32>
    %325 = vector.extract_strided_slice %323 {offsets = [0, 0], sizes = [2, 64], strides = [1, 1]} : vector<2x96xf32> to vector<2x64xf32>
    %326 = vector.extract_strided_slice %324 {offsets = [0, 0], sizes = [2, 64], strides = [1, 1]} : vector<2x96xf32> to vector<2x64xf32>
    %327 = arith.addf %325, %326 : vector<2x64xf32>
    %328 = arith.negf %327 : vector<2x64xf32>
    %329 = math.exp %328 : vector<2x64xf32>
    %cst_109 = arith.constant 1.000000e+00 : f32
    %330 = vector.broadcast %cst_109 : f32 to vector<2x64xf32>
    %331 = arith.addf %330, %329 : vector<2x64xf32>
    %332 = arith.divf %330, %331 : vector<2x64xf32>
    %333 = vector.extract_strided_slice %332 {offsets = [0, 0], sizes = [2, 32], strides = [1, 1]} : vector<2x64xf32> to vector<2x32xf32>
    %334 = vector.extract_strided_slice %332 {offsets = [0, 32], sizes = [2, 32], strides = [1, 1]} : vector<2x64xf32> to vector<2x32xf32>
    %335 = vector.extract_strided_slice %323 {offsets = [0, 64], sizes = [2, 32], strides = [1, 1]} : vector<2x96xf32> to vector<2x32xf32>
    %336 = vector.extract_strided_slice %324 {offsets = [0, 64], sizes = [2, 32], strides = [1, 1]} : vector<2x96xf32> to vector<2x32xf32>
    %337 = arith.addf %336, %240 : vector<2x32xf32>
    %338 = arith.mulf %333, %337 : vector<2x32xf32>
    %339 = arith.addf %335, %338 : vector<2x32xf32>
    %340 = math.tanh %339 : vector<2x32xf32>
    %cst_110 = arith.constant 1.000000e+00 : f32
    %341 = vector.broadcast %cst_110 : f32 to vector<2x32xf32>
    %342 = arith.subf %341, %334 : vector<2x32xf32>
    %343 = arith.mulf %342, %340 : vector<2x32xf32>
    %344 = arith.mulf %334, %319 : vector<2x32xf32>
    %345 = arith.addf %343, %344 : vector<2x32xf32>
    %346 = vector.shape_cast %345 : vector<2x32xf32> to vector<2x1x32xf32>
    %c0_111 = arith.constant 0 : index
    %c3_112 = arith.constant 3 : index
    %c0_113 = arith.constant 0 : index
    %347 = vector.load %arg17[%c0_111, %c3_112, %c0_113] : memref<2x8x32xf32, #tpu.memory_space<vmem>>, vector<2x1x32xf32>
    tpu.vector_store %arg17[%c0_111, %c3_112, %c0_113], %346 {strides = array<i32>} : memref<2x8x32xf32, #tpu.memory_space<vmem>>, vector<2x1x32xf32>,
    %348 = vector.extract_strided_slice %243 {offsets = [0, 4, 0], sizes = [2, 1, 96], strides = [1, 1, 1]} : vector<2x8x96xf32> to vector<2x1x96xf32>
    %349 = vector.shape_cast %348 : vector<2x1x96xf32> to vector<2x96xf32>
    %cst_114 = arith.constant dense<0.000000e+00> : vector<2x96xf32>
    %350 = tpu.matmul %345, %237, %cst_114 {dimension_numbers = #tpu.dot_dimension_numbers<[1], [0], [0], [1], [0, 0, 1, 1], [], []>} : vector<2x32xf32>, vector<32x96xf32>, vector<2x96xf32> -> vector<2x96xf32>
    %351 = vector.extract_strided_slice %349 {offsets = [0, 0], sizes = [2, 64], strides = [1, 1]} : vector<2x96xf32> to vector<2x64xf32>
    %352 = vector.extract_strided_slice %350 {offsets = [0, 0], sizes = [2, 64], strides = [1, 1]} : vector<2x96xf32> to vector<2x64xf32>
    %353 = arith.addf %351, %352 : vector<2x64xf32>
    %354 = arith.negf %353 : vector<2x64xf32>
    %355 = math.exp %354 : vector<2x64xf32>
    %cst_115 = arith.constant 1.000000e+00 : f32
    %356 = vector.broadcast %cst_115 : f32 to vector<2x64xf32>
    %357 = arith.addf %356, %355 : vector<2x64xf32>
    %358 = arith.divf %356, %357 : vector<2x64xf32>
    %359 = vector.extract_strided_slice %358 {offsets = [0, 0], sizes = [2, 32], strides = [1, 1]} : vector<2x64xf32> to vector<2x32xf32>
    %360 = vector.extract_strided_slice %358 {offsets = [0, 32], sizes = [2, 32], strides = [1, 1]} : vector<2x64xf32> to vector<2x32xf32>
    %361 = vector.extract_strided_slice %349 {offsets = [0, 64], sizes = [2, 32], strides = [1, 1]} : vector<2x96xf32> to vector<2x32xf32>
    %362 = vector.extract_strided_slice %350 {offsets = [0, 64], sizes = [2, 32], strides = [1, 1]} : vector<2x96xf32> to vector<2x32xf32>
    %363 = arith.addf %362, %240 : vector<2x32xf32>
    %364 = arith.mulf %359, %363 : vector<2x32xf32>
    %365 = arith.addf %361, %364 : vector<2x32xf32>
    %366 = math.tanh %365 : vector<2x32xf32>
    %cst_116 = arith.constant 1.000000e+00 : f32
    %367 = vector.broadcast %cst_116 : f32 to vector<2x32xf32>
    %368 = arith.subf %367, %360 : vector<2x32xf32>
    %369 = arith.mulf %368, %366 : vector<2x32xf32>
    %370 = arith.mulf %360, %345 : vector<2x32xf32>
    %371 = arith.addf %369, %370 : vector<2x32xf32>
    %372 = vector.shape_cast %371 : vector<2x32xf32> to vector<2x1x32xf32>
    %c0_117 = arith.constant 0 : index
    %c4_118 = arith.constant 4 : index
    %c0_119 = arith.constant 0 : index
    %373 = vector.load %arg17[%c0_117, %c4_118, %c0_119] : memref<2x8x32xf32, #tpu.memory_space<vmem>>, vector<2x1x32xf32>
    tpu.vector_store %arg17[%c0_117, %c4_118, %c0_119], %372 {strides = array<i32>} : memref<2x8x32xf32, #tpu.memory_space<vmem>>, vector<2x1x32xf32>,
    %374 = vector.extract_strided_slice %243 {offsets = [0, 5, 0], sizes = [2, 1, 96], strides = [1, 1, 1]} : vector<2x8x96xf32> to vector<2x1x96xf32>
    %375 = vector.shape_cast %374 : vector<2x1x96xf32> to vector<2x96xf32>
    %cst_120 = arith.constant dense<0.000000e+00> : vector<2x96xf32>
    %376 = tpu.matmul %371, %237, %cst_120 {dimension_numbers = #tpu.dot_dimension_numbers<[1], [0], [0], [1], [0, 0, 1, 1], [], []>} : vector<2x32xf32>, vector<32x96xf32>, vector<2x96xf32> -> vector<2x96xf32>
    %377 = vector.extract_strided_slice %375 {offsets = [0, 0], sizes = [2, 64], strides = [1, 1]} : vector<2x96xf32> to vector<2x64xf32>
    %378 = vector.extract_strided_slice %376 {offsets = [0, 0], sizes = [2, 64], strides = [1, 1]} : vector<2x96xf32> to vector<2x64xf32>
    %379 = arith.addf %377, %378 : vector<2x64xf32>
    %380 = arith.negf %379 : vector<2x64xf32>
    %381 = math.exp %380 : vector<2x64xf32>
    %cst_121 = arith.constant 1.000000e+00 : f32
    %382 = vector.broadcast %cst_121 : f32 to vector<2x64xf32>
    %383 = arith.addf %382, %381 : vector<2x64xf32>
    %384 = arith.divf %382, %383 : vector<2x64xf32>
    %385 = vector.extract_strided_slice %384 {offsets = [0, 0], sizes = [2, 32], strides = [1, 1]} : vector<2x64xf32> to vector<2x32xf32>
    %386 = vector.extract_strided_slice %384 {offsets = [0, 32], sizes = [2, 32], strides = [1, 1]} : vector<2x64xf32> to vector<2x32xf32>
    %387 = vector.extract_strided_slice %375 {offsets = [0, 64], sizes = [2, 32], strides = [1, 1]} : vector<2x96xf32> to vector<2x32xf32>
    %388 = vector.extract_strided_slice %376 {offsets = [0, 64], sizes = [2, 32], strides = [1, 1]} : vector<2x96xf32> to vector<2x32xf32>
    %389 = arith.addf %388, %240 : vector<2x32xf32>
    %390 = arith.mulf %385, %389 : vector<2x32xf32>
    %391 = arith.addf %387, %390 : vector<2x32xf32>
    %392 = math.tanh %391 : vector<2x32xf32>
    %cst_122 = arith.constant 1.000000e+00 : f32
    %393 = vector.broadcast %cst_122 : f32 to vector<2x32xf32>
    %394 = arith.subf %393, %386 : vector<2x32xf32>
    %395 = arith.mulf %394, %392 : vector<2x32xf32>
    %396 = arith.mulf %386, %371 : vector<2x32xf32>
    %397 = arith.addf %395, %396 : vector<2x32xf32>
    %398 = vector.shape_cast %397 : vector<2x32xf32> to vector<2x1x32xf32>
    %c0_123 = arith.constant 0 : index
    %c5_124 = arith.constant 5 : index
    %c0_125 = arith.constant 0 : index
    %399 = vector.load %arg17[%c0_123, %c5_124, %c0_125] : memref<2x8x32xf32, #tpu.memory_space<vmem>>, vector<2x1x32xf32>
    tpu.vector_store %arg17[%c0_123, %c5_124, %c0_125], %398 {strides = array<i32>} : memref<2x8x32xf32, #tpu.memory_space<vmem>>, vector<2x1x32xf32>,
    %400 = vector.extract_strided_slice %243 {offsets = [0, 6, 0], sizes = [2, 1, 96], strides = [1, 1, 1]} : vector<2x8x96xf32> to vector<2x1x96xf32>
    %401 = vector.shape_cast %400 : vector<2x1x96xf32> to vector<2x96xf32>
    %cst_126 = arith.constant dense<0.000000e+00> : vector<2x96xf32>
    %402 = tpu.matmul %397, %237, %cst_126 {dimension_numbers = #tpu.dot_dimension_numbers<[1], [0], [0], [1], [0, 0, 1, 1], [], []>} : vector<2x32xf32>, vector<32x96xf32>, vector<2x96xf32> -> vector<2x96xf32>
    %403 = vector.extract_strided_slice %401 {offsets = [0, 0], sizes = [2, 64], strides = [1, 1]} : vector<2x96xf32> to vector<2x64xf32>
    %404 = vector.extract_strided_slice %402 {offsets = [0, 0], sizes = [2, 64], strides = [1, 1]} : vector<2x96xf32> to vector<2x64xf32>
    %405 = arith.addf %403, %404 : vector<2x64xf32>
    %406 = arith.negf %405 : vector<2x64xf32>
    %407 = math.exp %406 : vector<2x64xf32>
    %cst_127 = arith.constant 1.000000e+00 : f32
    %408 = vector.broadcast %cst_127 : f32 to vector<2x64xf32>
    %409 = arith.addf %408, %407 : vector<2x64xf32>
    %410 = arith.divf %408, %409 : vector<2x64xf32>
    %411 = vector.extract_strided_slice %410 {offsets = [0, 0], sizes = [2, 32], strides = [1, 1]} : vector<2x64xf32> to vector<2x32xf32>
    %412 = vector.extract_strided_slice %410 {offsets = [0, 32], sizes = [2, 32], strides = [1, 1]} : vector<2x64xf32> to vector<2x32xf32>
    %413 = vector.extract_strided_slice %401 {offsets = [0, 64], sizes = [2, 32], strides = [1, 1]} : vector<2x96xf32> to vector<2x32xf32>
    %414 = vector.extract_strided_slice %402 {offsets = [0, 64], sizes = [2, 32], strides = [1, 1]} : vector<2x96xf32> to vector<2x32xf32>
    %415 = arith.addf %414, %240 : vector<2x32xf32>
    %416 = arith.mulf %411, %415 : vector<2x32xf32>
    %417 = arith.addf %413, %416 : vector<2x32xf32>
    %418 = math.tanh %417 : vector<2x32xf32>
    %cst_128 = arith.constant 1.000000e+00 : f32
    %419 = vector.broadcast %cst_128 : f32 to vector<2x32xf32>
    %420 = arith.subf %419, %412 : vector<2x32xf32>
    %421 = arith.mulf %420, %418 : vector<2x32xf32>
    %422 = arith.mulf %412, %397 : vector<2x32xf32>
    %423 = arith.addf %421, %422 : vector<2x32xf32>
    %424 = vector.shape_cast %423 : vector<2x32xf32> to vector<2x1x32xf32>
    %c0_129 = arith.constant 0 : index
    %c6_130 = arith.constant 6 : index
    %c0_131 = arith.constant 0 : index
    %425 = vector.load %arg17[%c0_129, %c6_130, %c0_131] : memref<2x8x32xf32, #tpu.memory_space<vmem>>, vector<2x1x32xf32>
    tpu.vector_store %arg17[%c0_129, %c6_130, %c0_131], %424 {strides = array<i32>} : memref<2x8x32xf32, #tpu.memory_space<vmem>>, vector<2x1x32xf32>,
    %426 = vector.extract_strided_slice %243 {offsets = [0, 7, 0], sizes = [2, 1, 96], strides = [1, 1, 1]} : vector<2x8x96xf32> to vector<2x1x96xf32>
    %427 = vector.shape_cast %426 : vector<2x1x96xf32> to vector<2x96xf32>
    %cst_132 = arith.constant dense<0.000000e+00> : vector<2x96xf32>
    %428 = tpu.matmul %423, %237, %cst_132 {dimension_numbers = #tpu.dot_dimension_numbers<[1], [0], [0], [1], [0, 0, 1, 1], [], []>} : vector<2x32xf32>, vector<32x96xf32>, vector<2x96xf32> -> vector<2x96xf32>
    %429 = vector.extract_strided_slice %427 {offsets = [0, 0], sizes = [2, 64], strides = [1, 1]} : vector<2x96xf32> to vector<2x64xf32>
    %430 = vector.extract_strided_slice %428 {offsets = [0, 0], sizes = [2, 64], strides = [1, 1]} : vector<2x96xf32> to vector<2x64xf32>
    %431 = arith.addf %429, %430 : vector<2x64xf32>
    %432 = arith.negf %431 : vector<2x64xf32>
    %433 = math.exp %432 : vector<2x64xf32>
    %cst_133 = arith.constant 1.000000e+00 : f32
    %434 = vector.broadcast %cst_133 : f32 to vector<2x64xf32>
    %435 = arith.addf %434, %433 : vector<2x64xf32>
    %436 = arith.divf %434, %435 : vector<2x64xf32>
    %437 = vector.extract_strided_slice %436 {offsets = [0, 0], sizes = [2, 32], strides = [1, 1]} : vector<2x64xf32> to vector<2x32xf32>
    %438 = vector.extract_strided_slice %436 {offsets = [0, 32], sizes = [2, 32], strides = [1, 1]} : vector<2x64xf32> to vector<2x32xf32>
    %439 = vector.extract_strided_slice %427 {offsets = [0, 64], sizes = [2, 32], strides = [1, 1]} : vector<2x96xf32> to vector<2x32xf32>
    %440 = vector.extract_strided_slice %428 {offsets = [0, 64], sizes = [2, 32], strides = [1, 1]} : vector<2x96xf32> to vector<2x32xf32>
    %441 = arith.addf %440, %240 : vector<2x32xf32>
    %442 = arith.mulf %437, %441 : vector<2x32xf32>
    %443 = arith.addf %439, %442 : vector<2x32xf32>
    %444 = math.tanh %443 : vector<2x32xf32>
    %cst_134 = arith.constant 1.000000e+00 : f32
    %445 = vector.broadcast %cst_134 : f32 to vector<2x32xf32>
    %446 = arith.subf %445, %438 : vector<2x32xf32>
    %447 = arith.mulf %446, %444 : vector<2x32xf32>
    %448 = arith.mulf %438, %423 : vector<2x32xf32>
    %449 = arith.addf %447, %448 : vector<2x32xf32>
    %450 = vector.shape_cast %449 : vector<2x32xf32> to vector<2x1x32xf32>
    %c0_135 = arith.constant 0 : index
    %c7_136 = arith.constant 7 : index
    %c0_137 = arith.constant 0 : index
    %451 = vector.load %arg17[%c0_135, %c7_136, %c0_137] : memref<2x8x32xf32, #tpu.memory_space<vmem>>, vector<2x1x32xf32>
    tpu.vector_store %arg17[%c0_135, %c7_136, %c0_137], %450 {strides = array<i32>} : memref<2x8x32xf32, #tpu.memory_space<vmem>>, vector<2x1x32xf32>,
    %c0_138 = arith.constant 0 : index
    %c0_139 = arith.constant 0 : index
    %c0_140 = arith.constant 0 : index
    %452 = vector.load %arg17[%c0_138, %c0_139, %c0_140] : memref<2x8x32xf32, #tpu.memory_space<vmem>>, vector<2x8x32xf32>
    %c0_141 = arith.constant 0 : index
    %c0_142 = arith.constant 0 : index
    %c0_143 = arith.constant 0 : index
    %453 = vector.load %arg16[%c0_141, %c0_142, %c0_143] : memref<2x8x32xf32, #tpu.memory_space<vmem>>, vector<2x8x32xf32>
    tpu.vector_store %arg16[%c0_141, %c0_142, %c0_143], %452 {strides = array<i32>} : memref<2x8x32xf32, #tpu.memory_space<vmem>>, vector<2x8x32xf32>,
    %454 = vector.shape_cast %449 : vector<2x32xf32> to vector<1x2x32xf32>
    %c1_144 = arith.constant 1 : index
    %c0_145 = arith.constant 0 : index
    %c0_146 = arith.constant 0 : index
    %455 = vector.load %arg14[%c1_144, %c0_145, %c0_146] : memref<2x2x32xf32, #tpu.memory_space<vmem>>, vector<1x2x32xf32>
    tpu.vector_store %arg14[%c1_144, %c0_145, %c0_146], %454 {strides = array<i32>} : memref<2x2x32xf32, #tpu.memory_space<vmem>>, vector<1x2x32xf32>,
    %c0_147 = arith.constant 0 : index
    %c0_148 = arith.constant 0 : index
    %c0_149 = arith.constant 0 : index
    %456 = vector.load %arg16[%c0_147, %c0_148, %c0_149] : memref<2x8x32xf32, #tpu.memory_space<vmem>>, vector<2x8x32xf32>
    %457 = vector.shape_cast %456 : vector<2x8x32xf32> to vector<16x32xf32>
    %c0_150 = arith.constant 0 : index
    %c0_151 = arith.constant 0 : index
    %458 = vector.load %arg11[%c0_150, %c0_151] : memref<32x256xf32, #tpu.memory_space<vmem>>, vector<32x256xf32>
    %cst_152 = arith.constant dense<0.000000e+00> : vector<16x256xf32>
    %459 = tpu.matmul %457, %458, %cst_152 {dimension_numbers = #tpu.dot_dimension_numbers<[1], [0], [0], [1], [0, 0, 1, 1], [], []>} : vector<16x32xf32>, vector<32x256xf32>, vector<16x256xf32> -> vector<16x256xf32>
    %c0_153 = arith.constant 0 : index
    %c0_154 = arith.constant 0 : index
    %460 = vector.load %arg12[%c0_153, %c0_154] : memref<1x256xf32, #tpu.memory_space<vmem>>, vector<1x256xf32>
    %461 = vector.broadcast %460 : vector<1x256xf32> to vector<16x256xf32>
    %462 = arith.addf %459, %461 : vector<16x256xf32>
    %463 = vector.shape_cast %462 : vector<16x256xf32> to vector<2x8x256xf32>
    %c0_155 = arith.constant 0 : index
    %c0_156 = arith.constant 0 : index
    %c0_157 = arith.constant 0 : index
    %464 = vector.load %arg13[%c0_155, %c0_156, %c0_157] : memref<2x8x256xf32, #tpu.memory_space<vmem>>, vector<2x8x256xf32>
    tpu.vector_store %arg13[%c0_155, %c0_156, %c0_157], %463 {strides = array<i32>} : memref<2x8x256xf32, #tpu.memory_space<vmem>>, vector<2x8x256xf32>,
    return
  }
  func.func @transform_0(%arg0: i32) -> (i32, i32, i32) {
    %c0_i32 = arith.constant 0 : i32
    %c0_i32_0 = arith.constant 0 : i32
    %c0_i32_1 = arith.constant 0 : i32
    return %arg0, %c0_i32, %c0_i32_0 : i32, i32, i32
  }
  func.func @transform_1(%arg0: i32) -> (i32, i32, i32) {
    %c0_i32 = arith.constant 0 : i32
    %c0_i32_0 = arith.constant 0 : i32
    %c0_i32_1 = arith.constant 0 : i32
    return %c0_i32, %arg0, %c0_i32_0 : i32, i32, i32
  }
  func.func @transform_2(%arg0: i32) -> (i32, i32) {
    %c0_i32 = arith.constant 0 : i32
    %c0_i32_0 = arith.constant 0 : i32
    %c0_i32_1 = arith.constant 0 : i32
    return %c0_i32, %c0_i32_0 : i32, i32
  }
  func.func @transform_3(%arg0: i32) -> (i32, i32) {
    %c0_i32 = arith.constant 0 : i32
    %c0_i32_0 = arith.constant 0 : i32
    %c0_i32_1 = arith.constant 0 : i32
    return %c0_i32, %c0_i32_0 : i32, i32
  }
  func.func @transform_4(%arg0: i32) -> (i32, i32) {
    %c0_i32 = arith.constant 0 : i32
    %c0_i32_0 = arith.constant 0 : i32
    %c0_i32_1 = arith.constant 0 : i32
    return %c0_i32, %c0_i32_0 : i32, i32
  }
  func.func @transform_5(%arg0: i32) -> (i32, i32) {
    %c0_i32 = arith.constant 0 : i32
    %c0_i32_0 = arith.constant 0 : i32
    %c0_i32_1 = arith.constant 0 : i32
    return %c0_i32, %c0_i32_0 : i32, i32
  }
  func.func @transform_6(%arg0: i32) -> (i32, i32) {
    %c0_i32 = arith.constant 0 : i32
    %c0_i32_0 = arith.constant 0 : i32
    %c0_i32_1 = arith.constant 0 : i32
    return %c0_i32, %c0_i32_0 : i32, i32
  }
  func.func @transform_7(%arg0: i32) -> (i32, i32) {
    %c0_i32 = arith.constant 0 : i32
    %c0_i32_0 = arith.constant 0 : i32
    %c0_i32_1 = arith.constant 0 : i32
    return %c0_i32, %c0_i32_0 : i32, i32
  }
  func.func @transform_8(%arg0: i32) -> (i32, i32) {
    %c0_i32 = arith.constant 0 : i32
    %c0_i32_0 = arith.constant 0 : i32
    %c0_i32_1 = arith.constant 0 : i32
    return %c0_i32, %c0_i32_0 : i32, i32
  }
  func.func @transform_9(%arg0: i32) -> (i32, i32) {
    %c0_i32 = arith.constant 0 : i32
    %c0_i32_0 = arith.constant 0 : i32
    %c0_i32_1 = arith.constant 0 : i32
    return %c0_i32, %c0_i32_0 : i32, i32
  }
  func.func @transform_10(%arg0: i32) -> (i32, i32) {
    %c0_i32 = arith.constant 0 : i32
    %c0_i32_0 = arith.constant 0 : i32
    %c0_i32_1 = arith.constant 0 : i32
    return %c0_i32, %c0_i32_0 : i32, i32
  }
  func.func @transform_11(%arg0: i32) -> (i32, i32) {
    %c0_i32 = arith.constant 0 : i32
    %c0_i32_0 = arith.constant 0 : i32
    %c0_i32_1 = arith.constant 0 : i32
    return %c0_i32, %c0_i32_0 : i32, i32
  }
  func.func @transform_12(%arg0: i32) -> (i32, i32, i32) {
    %c0_i32 = arith.constant 0 : i32
    %c0_i32_0 = arith.constant 0 : i32
    %c0_i32_1 = arith.constant 0 : i32
    return %arg0, %c0_i32, %c0_i32_0 : i32, i32, i32
  }
  func.func @transform_13(%arg0: i32) -> (i32, i32, i32) {
    %c0_i32 = arith.constant 0 : i32
    %c0_i32_0 = arith.constant 0 : i32
    %c0_i32_1 = arith.constant 0 : i32
    return %c0_i32, %arg0, %c0_i32_0 : i32, i32, i32
  }
}

</mosaic_0001>

<llo_original>
// kernel: tpu_custom_call.1
$region0: #{tpu_custom_call.1}
  #allocation0 [shape = 'u32[]', space=smem, size = 0x4, offset = 0x4, fixed_abs, tag = 'smem constant byte address 0x4 - core index']
  #allocation1 [shape = 'u32[72,128]{1,0:T(1,128)}', space=vmem, size = 0x9000, scoped, tag = 'internal scratch']
  #allocation2 [shape = 'f32[2,8,96]{2,1,0:T(8,128)}', space=vmem, size = 0x2000, scoped, tag = 'scratch operand']
  #allocation3 [shape = 'f32[2,8,32]{2,1,0:T(8,128)}', space=vmem, size = 0x2000, scoped, tag = 'scratch operand']
  #allocation4 [shape = 'f32[2,8,32]{2,1,0:T(8,128)}', space=vmem, size = 0x2000, scoped, tag = 'scratch operand']
  %s0 = inlined_call_operand.hbm [shape: f32[2,8,132], index: 0, kind: input, shape index: {}]
  %s1 = inlined_call_operand.hbm [shape: f32[2,2,32], index: 1, kind: input, shape index: {}]
  %s2 = inlined_call_operand.hbm [shape: f32[132,96], index: 2, kind: input, shape index: {}]
  %s3 = inlined_call_operand.hbm [shape: f32[32,96], index: 3, kind: input, shape index: {}]
  %s4 = inlined_call_operand.vmem [shape: f32[1,96], index: 4, kind: input, shape index: {}]
  %s5 = inlined_call_operand.vmem [shape: f32[1,32], index: 5, kind: input, shape index: {}]
  %s6 = inlined_call_operand.hbm [shape: f32[32,96], index: 6, kind: input, shape index: {}]
  %s7 = inlined_call_operand.hbm [shape: f32[32,96], index: 7, kind: input, shape index: {}]
  %s8 = inlined_call_operand.vmem [shape: f32[1,96], index: 8, kind: input, shape index: {}]
  %s9 = inlined_call_operand.vmem [shape: f32[1,32], index: 9, kind: input, shape index: {}]
  %s10 = inlined_call_operand.hbm [shape: f32[32,256], index: 10, kind: input, shape index: {}]
  %s11 = inlined_call_operand.vmem [shape: f32[1,256], index: 11, kind: input, shape index: {}]
  %s12 = inlined_call_operand.hbm [shape: f32[2,8,256], index: 12, kind: output, shape index: {0}]
  %s13 = inlined_call_operand.hbm [shape: f32[2,2,32], index: 13, kind: output, shape index: {1}]
  %14 = xla_tuple %s12, %s13
  %s15 = sld [smem:[#allocation0]]
  $region94: #{tpu_custom_call.1} parent=0
    _
  %s17 = ssub.s32 1, %s15
  %s18 = scalar_select 0, %s17, %s15
  $region1: #{tpu_custom_call.1} parent=0
    #allocation5 [shape = 'u8[16384]{0}', space=vmem, size = 0x4000, scoped, tag = 'input window, operand 0, single buffered']
    #allocation6 [shape = 's32[1]{0}', space=sflag, size = 0x4, scoped, tag = 'scoped memory for tpu_custom_call.1']
    #allocation7 [shape = 's32[1]{0}', space=sflag, size = 0x4, scoped, tag = 'scoped memory for tpu_custom_call.1']
    #allocation8 [shape = 'u8[2048]{0}', space=vmem, size = 0x800, scoped, tag = 'input window, operand 1, single buffered']
    #allocation9 [shape = 's32[1]{0}', space=sflag, size = 0x4, scoped, tag = 'scoped memory for tpu_custom_call.1']
    #allocation10 [shape = 'u8[69632]{0}', space=vmem, size = 0x11000, scoped, tag = 'input window, operand 2, single buffered']
    #allocation11 [shape = 'u8[16384]{0}', space=vmem, size = 0x4000, scoped, tag = 'input window, operand 3, single buffered']
    #allocation12 [shape = 's32[1]{0}', space=sflag, size = 0x4, scoped, tag = 'scoped memory for tpu_custom_call.1']
    #allocation13 [shape = 'u8[16384]{0}', space=vmem, size = 0x4000, scoped, tag = 'input window, operand 6, single buffered']
    #allocation14 [shape = 'u8[16384]{0}', space=vmem, size = 0x4000, scoped, tag = 'input window, operand 7, single buffered']
    #allocation15 [shape = 's32[1]{0}', space=sflag, size = 0x4, scoped, tag = 'scoped memory for tpu_custom_call.1']
    #allocation16 [shape = 'u8[32768]{0}', space=vmem, size = 0x8000, scoped, tag = 'input window, operand 10, single buffered']
    #allocation17 [shape = 'u8[16384]{0}', space=vmem, size = 0x4000, scoped, tag = 'output window, operand 0, single buffered']
    #allocation18 [shape = 'u8[2048]{0}', space=vmem, size = 0x800, scoped, tag = 'output window, operand 1, single buffered']
    #allocation19 [shape = 's32[1]{0}', space=sflag, size = 0x4, scoped, tag = 'scoped memory for tpu_custom_call.1']
    %19 = vsyncpa [#allocation6], 0
    %20 = vsyncpa [#allocation9], 0
    %21 = vsyncpa [#allocation12], 0
    %22 = vsyncpa [#allocation15], 0
    %23 = vsyncpa [#allocation7], 0
    %24 = vsyncpa [#allocation19], 0
    // Predicated region
    $region2: #{tpu_custom_call.1} parent=1 // pred_check
      _
    $region3: #{tpu_custom_call.1} parent=1 // pred_check_branch
      %26 = sbr.rel (0) target = $region5
    $region4: #{tpu_custom_call.1} parent=1 // pred_region
      %28 = vsyncadd [#allocation6], 0
      %s29 = sshll.u32 %s0, 4
      %s30 = int_to_ptr.hbm [resolvable:$true] %s29
      %s31 = sshll.u32 [#allocation5], 4
      %s32 = int_to_ptr.vmem [resolvable:$true] %s31
      %37 = dma.hbm_to_vmem [thread:$0]  %s30, 512, %s32, [#allocation6], 256, 256, 16
    $region5: #{tpu_custom_call.1} parent=1 // pred_fallthru
      _
    // Predicated region
    $region6: #{tpu_custom_call.1} parent=1 // pred_check
      _
    $region7: #{tpu_custom_call.1} parent=1 // pred_check_branch
      %39 = sbr.rel (0) target = $region9
    $region8: #{tpu_custom_call.1} parent=1 // pred_region
      %41 = vsyncadd [#allocation9], 0
      %s42 = sshll.u32 %s1, 4
      %s43 = int_to_ptr.hbm [resolvable:$true] %s42
      %s44 = sshll.u32 [#allocation8], 4
      %s45 = int_to_ptr.vmem [resolvable:$true] %s44
      %50 = dma.hbm_to_vmem [thread:$0]  %s43, 64, %s45, [#allocation9], 32, 32, 2
    $region9: #{tpu_custom_call.1} parent=1 // pred_fallthru
      _
    // Predicated region
    $region10: #{tpu_custom_call.1} parent=1 // pred_check
      _
    $region11: #{tpu_custom_call.1} parent=1 // pred_check_branch
      %52 = sbr.rel (0) target = $region13
    $region12: #{tpu_custom_call.1} parent=1 // pred_region
      %54 = vsyncadd [#allocation9], 0
      %s55 = sshll.u32 %s2, 4
      %s56 = int_to_ptr.hbm [resolvable:$true] %s55
      %s57 = sshll.u32 [#allocation10], 4
      %s58 = int_to_ptr.vmem [resolvable:$true] %s57
      %63 = dma.hbm_to_vmem [thread:$0]  %s56, 2176, %s58, [#allocation9], 128, 128, 8
    $region13: #{tpu_custom_call.1} parent=1 // pred_fallthru
      _
    // Predicated region
    $region14: #{tpu_custom_call.1} parent=1 // pred_check
      _
    $region15: #{tpu_custom_call.1} parent=1 // pred_check_branch
      %65 = sbr.rel (0) target = $region17
    $region16: #{tpu_custom_call.1} parent=1 // pred_region
      %67 = vsyncadd [#allocation12], 0
      %s68 = sshll.u32 %s3, 4
      %s69 = int_to_ptr.hbm [resolvable:$true] %s68
      %s70 = sshll.u32 [#allocation11], 4
      %s71 = int_to_ptr.vmem [resolvable:$true] %s70
      %76 = dma.hbm_to_vmem [thread:$0]  %s69, 512, %s71, [#allocation12], 128, 128, 8
    $region17: #{tpu_custom_call.1} parent=1 // pred_fallthru
      _
    // Predicated region
    $region18: #{tpu_custom_call.1} parent=1 // pred_check
      _
    $region19: #{tpu_custom_call.1} parent=1 // pred_check_branch
      %78 = sbr.rel (0) target = $region21
    $region20: #{tpu_custom_call.1} parent=1 // pred_region
      _
    $region21: #{tpu_custom_call.1} parent=1 // pred_fallthru
      _
    // Predicated region
    $region22: #{tpu_custom_call.1} parent=1 // pred_check
      _
    $region23: #{tpu_custom_call.1} parent=1 // pred_check_branch
      %80 = sbr.rel (0) target = $region25
    $region24: #{tpu_custom_call.1} parent=1 // pred_region
      _
    $region25: #{tpu_custom_call.1} parent=1 // pred_fallthru
      _
    // Predicated region
    $region26: #{tpu_custom_call.1} parent=1 // pred_check
      _
    $region27: #{tpu_custom_call.1} parent=1 // pred_check_branch
      %82 = sbr.rel (0) target = $region29
    $region28: #{tpu_custom_call.1} parent=1 // pred_region
      %84 = vsyncadd [#allocation12], 0
      %s85 = sshll.u32 %s6, 4
      %s86 = int_to_ptr.hbm [resolvable:$true] %s85
      %s87 = sshll.u32 [#allocation13], 4
      %s88 = int_to_ptr.vmem [resolvable:$true] %s87
      %93 = dma.hbm_to_vmem [thread:$0]  %s86, 512, %s88, [#allocation12], 128, 128, 8
    $region29: #{tpu_custom_call.1} parent=1 // pred_fallthru
      _
    // Predicated region
    $region30: #{tpu_custom_call.1} parent=1 // pred_check
      _
    $region31: #{tpu_custom_call.1} parent=1 // pred_check_branch
      %95 = sbr.rel (0) target = $region33
    $region32: #{tpu_custom_call.1} parent=1 // pred_region
      %97 = vsyncadd [#allocation15], 0
      %s98 = sshll.u32 %s7, 4
      %s99 = int_to_ptr.hbm [resolvable:$true] %s98
      %s100 = sshll.u32 [#allocation14], 4
      %s101 = int_to_ptr.vmem [resolvable:$true] %s100
      %106 = dma.hbm_to_vmem [thread:$0]  %s99, 512, %s101, [#allocation15], 128, 128, 8
    $region33: #{tpu_custom_call.1} parent=1 // pred_fallthru
      _
    // Predicated region
    $region34: #{tpu_custom_call.1} parent=1 // pred_check
      _
    $region35: #{tpu_custom_call.1} parent=1 // pred_check_branch
      %108 = sbr.rel (0) target = $region37
    $region36: #{tpu_custom_call.1} parent=1 // pred_region
      _
    $region37: #{tpu_custom_call.1} parent=1 // pred_fallthru
      _
    // Predicated region
    $region38: #{tpu_custom_call.1} parent=1 // pred_check
      _
    $region39: #{tpu_custom_call.1} parent=1 // pred_check_branch
      %110 = sbr.rel (0) target = $region41
    $region40: #{tpu_custom_call.1} parent=1 // pred_region
      _
    $region41: #{tpu_custom_call.1} parent=1 // pred_fallthru
      _
    // Predicated region
    $region42: #{tpu_custom_call.1} parent=1 // pred_check
      _
    $region43: #{tpu_custom_call.1} parent=1 // pred_check_branch
      %112 = sbr.rel (0) target = $region45
    $region44: #{tpu_custom_call.1} parent=1 // pred_region
      %114 = vsyncadd [#allocation15], 0
      %s115 = sshll.u32 %s10, 4
      %s116 = int_to_ptr.hbm [resolvable:$true] %s115
      %s117 = sshll.u32 [#allocation16], 4
      %s118 = int_to_ptr.vmem [resolvable:$true] %s117
      %123 = dma.hbm_to_vmem [thread:$0]  %s116, 1024, %s118, [#allocation15], 256, 256, 16
    $region45: #{tpu_custom_call.1} parent=1 // pred_fallthru
      _
    // Predicated region
    $region46: #{tpu_custom_call.1} parent=1 // pred_check
      _
    $region47: #{tpu_custom_call.1} parent=1 // pred_check_branch
      %125 = sbr.rel (0) target = $region49
    $region48: #{tpu_custom_call.1} parent=1 // pred_region
      _
    $region49: #{tpu_custom_call.1} parent=1 // pred_fallthru
      _
    // Predicated region
    $region50: #{tpu_custom_call.1} parent=1 // pred_check
      _
    $region51: #{tpu_custom_call.1} parent=1 // pred_check_branch
      %127 = sbr.rel (0) target = $region53
    $region52: #{tpu_custom_call.1} parent=1 // pred_region
      %129 = dma.done [#allocation6], 512
    $region53: #{tpu_custom_call.1} parent=1 // pred_fallthru
      _
    // Predicated region
    $region54: #{tpu_custom_call.1} parent=1 // pred_check
      _
    $region55: #{tpu_custom_call.1} parent=1 // pred_check_branch
      %131 = sbr.rel (0) target = $region57
    $region56: #{tpu_custom_call.1} parent=1 // pred_region
      %133 = dma.done [#allocation9], 64
    $region57: #{tpu_custom_call.1} parent=1 // pred_fallthru
      _
    // Predicated region
    $region58: #{tpu_custom_call.1} parent=1 // pred_check
      _
    $region59: #{tpu_custom_call.1} parent=1 // pred_check_branch
      %135 = sbr.rel (0) target = $region61
    $region60: #{tpu_custom_call.1} parent=1 // pred_region
      %137 = dma.done [#allocation9], 2176
    $region61: #{tpu_custom_call.1} parent=1 // pred_fallthru
      _
    // Predicated region
    $region62: #{tpu_custom_call.1} parent=1 // pred_check
      _
    $region63: #{tpu_custom_call.1} parent=1 // pred_check_branch
      %139 = sbr.rel (0) target = $region65
    $region64: #{tpu_custom_call.1} parent=1 // pred_region
      %141 = dma.done [#allocation12], 512
    $region65: #{tpu_custom_call.1} parent=1 // pred_fallthru
      _
    // Predicated region
    $region66: #{tpu_custom_call.1} parent=1 // pred_check
      _
    $region67: #{tpu_custom_call.1} parent=1 // pred_check_branch
      %143 = sbr.rel (0) target = $region69
    $region68: #{tpu_custom_call.1} parent=1 // pred_region
      %145 = dma.done [#allocation12], 512
    $region69: #{tpu_custom_call.1} parent=1 // pred_fallthru
      _
    // Predicated region
    $region70: #{tpu_custom_call.1} parent=1 // pred_check
      _
    $region71: #{tpu_custom_call.1} parent=1 // pred_check_branch
      %147 = sbr.rel (0) target = $region73
    $region72: #{tpu_custom_call.1} parent=1 // pred_region
      %149 = dma.done [#allocation15], 512
    $region73: #{tpu_custom_call.1} parent=1 // pred_fallthru
      _
    // Predicated region
    $region74: #{tpu_custom_call.1} parent=1 // pred_check
      _
    $region75: #{tpu_custom_call.1} parent=1 // pred_check_branch
      %151 = sbr.rel (0) target = $region77
    $region76: #{tpu_custom_call.1} parent=1 // pred_region
      %153 = dma.done [#allocation15], 1024
    $region77: #{tpu_custom_call.1} parent=1 // pred_fallthru
      _
    %v154 = vld [vmem:[#allocation5] sm:$0xff]
    %v155 = vld [vmem:[#allocation5 + $0x8] sm:$0xff]
    %v156 = vld [vmem:[#allocation5 + $0x10] sm:$0xff]
    %v157 = vld [vmem:[#allocation5 + $0x18] sm:$0xff]
    %v158 = vld [vmem:[#allocation10] sm:$0xff]
    %v159 = vld [vmem:[#allocation10 + $0x8] sm:$0xff]
    %v160 = vld [vmem:[#allocation10 + $0x10] sm:$0xff]
    %v161 = vld [vmem:[#allocation10 + $0x18] sm:$0xff]
    %v162 = vld [vmem:[#allocation10 + $0x20] sm:$0xff]
    %v163 = vld [vmem:[#allocation10 + $0x28] sm:$0xff]
    %v164 = vld [vmem:[#allocation10 + $0x30] sm:$0xff]
    %v165 = vld [vmem:[#allocation10 + $0x38] sm:$0xff]
    %v166 = vld [vmem:[#allocation10 + $0x40] sm:$0xff]
    %v167 = vld [vmem:[#allocation10 + $0x48] sm:$0xff]
    %v168 = vld [vmem:[#allocation10 + $0x50] sm:$0xff]
    %v169 = vld [vmem:[#allocation10 + $0x58] sm:$0xff]
    %v170 = vld [vmem:[#allocation10 + $0x60] sm:$0xff]
    %v171 = vld [vmem:[#allocation10 + $0x68] sm:$0xff]
    %v172 = vld [vmem:[#allocation10 + $0x70] sm:$0xff]
    %v173 = vld [vmem:[#allocation10 + $0x78] sm:$0xff]
    %v174 = vld [vmem:[#allocation10 + $0x80] sm:$0xf]
    %v175 = vld [vmem:[%s4] sm:$0x1]
    %v177 = vperm.slane %v175, 0
    %vm179 = vcmask 31744
    %v181 = vsel %vm179, %v155, 0
    %v184 = vsel %vm179, %v157, 0
    %vm186 = vcmask 1043456
    %v188 = vsel %vm186, %v174, 0
    %190 = vmatpush.msra.mxu0 %v173
    %191 = vmatpush.msra.mxu0 %v172
    %192 = vmatpush.msra.mxu0 %v171
    %193 = vmatpush.msra.mxu0 %v170
    %194 = vmatpush.msra.mxu0 %v169
    %195 = vmatpush.msra.mxu0 %v168
    %196 = vmatpush.msra.mxu0 %v167
    %197 = vmatpush.msra.mxu0 %v166
    %198 = vmatpush.msra.mxu0 %v165
    %199 = vmatpush.msra.mxu0 %v164
    %200 = vmatpush.msra.mxu0 %v163
    %201 = vmatpush.msra.mxu0 %v162
    %202 = vmatpush.msra.mxu0 %v161
    %203 = vmatpush.msra.mxu0 %v160
    %204 = vmatpush.msra.mxu0 %v159
    %205 = vmatpush.msra.mxu0 %v158
    %206 = vmatmul.f32.gmra.mxu0 %v154
    %v207 = vpop.f32.mrf.mxu0
    %v208 = vadd.f32 %v177, %v207
    %209 = vmatmul.f32.gmra.mxu0 %v156
    %v210 = vpop.f32.mrf.mxu0
    %v211 = vadd.f32 %v177, %v210
    %212 = vdwg.mxu0
    %213 = vmatpush.msra.mxu0 0.0
    %214 = vmatpush.msra.mxu0 0.0
    %215 = vmatpush.msra.mxu0 0.0
    %216 = vmatpush.msra.mxu0 0.0
    %217 = vmatpush.msra.mxu0 0.0
    %218 = vmatpush.msra.mxu0 0.0
    %219 = vmatpush.msra.mxu0 0.0
    %220 = vmatpush.msra.mxu0 0.0
    %221 = vmatpush.msra.mxu0 0.0
    %222 = vmatpush.msra.mxu0 0.0
    %223 = vmatpush.msra.mxu0 0.0
    %224 = vmatpush.msra.mxu0 0.0
    %225 = vmatpush.msra.mxu0 0.0
    %226 = vmatpush.msra.mxu0 0.0
    %227 = vmatpush.msra.mxu0 0.0
    %228 = vmatpush.msra.mxu0 %v188
    %229 = vmatmul.f32.gmra.mxu0 %v181
    %v230 = vpop.f32.mrf.mxu0
    %v231 = vadd.f32 %v208, %v230
    %232 = vmatmul.f32.gmra.mxu0 %v184
    %v233 = vpop.f32.mrf.mxu0
    %v234 = vadd.f32 %v211, %v233
    %235 = vdwg.mxu0
    %vm236 = vcmask 785408
    %237 = vst.msk [vmem:[#allocation2] sm:$0xff] %vm236, %v231
    %238 = vst.msk [vmem:[#allocation2 + $0x8] sm:$0xff] %vm236, %v234
    %v239 = vld [vmem:[#allocation11] sm:$0xff]
    %v240 = vld [vmem:[#allocation11 + $0x8] sm:$0xff]
    %v241 = vld [vmem:[#allocation11 + $0x10] sm:$0xff]
    %v242 = vld [vmem:[#allocation11 + $0x18] sm:$0xff]
    %v243 = vld [vmem:[%s5] sm:$0x1]
    %v245 = vperm.slane %v243, 0
    %v246 = vld [vmem:[#allocation8] sm:$0x3]
    %v247 = vld [vmem:[#allocation2] sm:$0xff]
    %v248 = vld [vmem:[#allocation2 + $0x8] sm:$0xff]
    %vm249 = vcmask 261120
    %v251 = vsel %vm249, %v246, 0
    %253 = vmatpush.msra.mxu0 0.0
    %254 = vmatpush.msra.mxu0 0.0
    %255 = vmatpush.msra.mxu0 0.0
    %256 = vmatpush.msra.mxu0 0.0
    %257 = vmatpush.msra.mxu0 0.0
    %258 = vmatpush.msra.mxu0 0.0
    %259 = vmatpush.msra.mxu0 0.0
    %260 = vmatpush.msra.mxu0 0.0
    %261 = vmatpush.msra.mxu0 0.0
    %262 = vmatpush.msra.mxu0 0.0
    %263 = vmatpush.msra.mxu0 0.0
    %264 = vmatpush.msra.mxu0 0.0
    %265 = vmatpush.msra.mxu0 %v242
    %266 = vmatpush.msra.mxu0 %v241
    %267 = vmatpush.msra.mxu0 %v240
    %268 = vmatpush.msra.mxu0 %v239
    %269 = vmatmul.f32.gmra.mxu0 %v251
    %v270 = vpop.f32.mrf.mxu0
    %v271 = vadd.f32 0.0, %v270
    %272 = vdwg.mxu0
    %v274 = vrot.slane %v271, 1
    %v277 = vadd.f32 %v247, %v271
    %v278 = vadd.f32 %v248, %v274
    %v279 = vxor.u32 %v277, 2147483648
    %v280 = vxor.u32 %v278, 2147483648
    %v281 = vmul.f32 %v279, 1.442695
    %v282 = vpow.pop %v281
    %v283 = vmul.f32 %v280, 1.442695
    %v284 = vpow.pop %v283
    %v285 = vadd.f32 %v282, 1.0
    %v286 = vadd.f32 %v284, 1.0
    %v287 = vrcp.pop %v285
    %v288 = vmul.f32 %v285, %v287
    %v289 = vsub.f32 1.0, %v288
    %v290 = vmul.f32 %v287, %v289
    %v291 = vadd.f32 %v287, %v290
    %vm292 = vweird.f32 %v285
    %vm293 = vweird.f32 %v287
    %vm294 = vmor %vm292, %vm293
    %v295 = vsel %vm294, %v287, %v291
    %v296 = vand.u32 2147483647, %v285
    %vm297 = vcmp.eq.f32.partialorder %v296, 8.507059e+37
    %v298 = vand.u32 %v285, 2147483648
    %v299 = vor.u32 1.1754944e-38, %v298
    %v300 = vsel %vm297, %v299, %v295
    %v301 = vmul.f32 1.0, %v300
    %v302 = vrcp.pop %v286
    %v303 = vmul.f32 %v286, %v302
    %v304 = vsub.f32 1.0, %v303
    %v305 = vmul.f32 %v302, %v304
    %v306 = vadd.f32 %v302, %v305
    %vm307 = vweird.f32 %v286
    %vm308 = vweird.f32 %v302
    %vm309 = vmor %vm307, %vm308
    %v310 = vsel %vm309, %v302, %v306
    %v311 = vand.u32 2147483647, %v286
    %vm312 = vcmp.eq.f32.partialorder %v311, 8.507059e+37
    %v313 = vand.u32 %v286, 2147483648
    %v314 = vor.u32 1.1754944e-38, %v313
    %v315 = vsel %vm312, %v314, %v310
    %v316 = vmul.f32 1.0, %v315
    %317 = vrot.lane.b32.xlu0 %v245, 64
    %v318 = vpop.permute.xlu0 %317
    %v320 = vadd.f32 %v271, %v318
    %v322 = vrot.slane %v320, 1
    %323 = vrot.lane.b32.xlu0 %v320, 64
    %v324 = vpop.permute.xlu0 %323
    %325 = vrot.lane.b32.xlu0 %v322, 64
    %v326 = vpop.permute.xlu0 %325
    %v329 = vmul.f32 %v301, %v324
    %v330 = vmul.f32 %v316, %v326
    %333 = vrot.lane.b32.xlu0 %v329, 64
    %v334 = vpop.permute.xlu0 %333
    %335 = vrot.lane.b32.xlu0 %v330, 64
    %v336 = vpop.permute.xlu0 %335
    %v339 = vadd.f32 %v247, %v334
    %v340 = vadd.f32 %v248, %v336
    %v341 = vtanh.pop %v339
    %v342 = vtanh.pop %v340
    %v343 = vsub.f32 1.0, %v301
    %v344 = vsub.f32 1.0, %v316
    %347 = vrot.lane.b32.xlu0 %v341, 96
    %v348 = vpop.permute.xlu0 %347
    %349 = vrot.lane.b32.xlu0 %v342, 96
    %v350 = vpop.permute.xlu0 %349
    %v353 = vmul.f32 %v343, %v348
    %v354 = vmul.f32 %v344, %v350
    %v355 = vrot.slane %v246, 1
    %356 = vrot.lane.b32.xlu0 %v246, 32
    %v357 = vpop.permute.xlu0 %356
    %358 = vrot.lane.b32.xlu0 %v355, 32
    %v359 = vpop.permute.xlu0 %358
    %v362 = vmul.f32 %v301, %v357
    %v363 = vmul.f32 %v316, %v359
    %v364 = vadd.f32 %v353, %v362
    %v365 = vadd.f32 %v354, %v363
    %368 = vrot.lane.b32.xlu0 %v364, 96
    %v369 = vpop.permute.xlu0 %368
    %370 = vrot.lane.b32.xlu0 %v365, 96
    %v371 = vpop.permute.xlu0 %370
    %vm374 = vcmask 253952
    %375 = vst.msk [vmem:[#allocation4] sm:$0x1] %vm374, %v369
    %376 = vst.msk [vmem:[#allocation4 + $0x8] sm:$0x1] %vm374, %v371
    %v377 = vrot.slane %v365, 7
    %vm378 = vcmask 1041409
    %v379 = vsel %vm378, %v377, %v364
    %380 = vrot.lane.b32.xlu0 %v379, 96
    %v381 = vpop.permute.xlu0 %380
    %v382 = vsel %vm249, %v381, 0
    %384 = vmatpush.msra.mxu0 0.0
    %385 = vmatpush.msra.mxu0 0.0
    %386 = vmatpush.msra.mxu0 0.0
    %387 = vmatpush.msra.mxu0 0.0
    %388 = vmatpush.msra.mxu0 0.0
    %389 = vmatpush.msra.mxu0 0.0
    %390 = vmatpush.msra.mxu0 0.0
    %391 = vmatpush.msra.mxu0 0.0
    %392 = vmatpush.msra.mxu0 0.0
    %393 = vmatpush.msra.mxu0 0.0
    %394 = vmatpush.msra.mxu0 0.0
    %395 = vmatpush.msra.mxu0 0.0
    %396 = vmatpush.msra.mxu0 %v242
    %397 = vmatpush.msra.mxu0 %v241
    %398 = vmatpush.msra.mxu0 %v240
    %399 = vmatpush.msra.mxu0 %v239
    %400 = vmatmul.f32.gmra.mxu0 %v382
    %v401 = vpop.f32.mrf.mxu0
    %v402 = vadd.f32 0.0, %v401
    %403 = vdwg.mxu0
    %v405 = vrot.slane %v402, 7
    %v408 = vadd.f32 %v247, %v405
    %v409 = vadd.f32 %v248, %v402
    %v410 = vxor.u32 %v408, 2147483648
    %v411 = vxor.u32 %v409, 2147483648
    %v412 = vmul.f32 %v410, 1.442695
    %v413 = vpow.pop %v412
    %v414 = vmul.f32 %v411, 1.442695
    %v415 = vpow.pop %v414
    %v416 = vadd.f32 %v413, 1.0
    %v417 = vadd.f32 %v415, 1.0
    %v418 = vrcp.pop %v416
    %v419 = vmul.f32 %v416, %v418
    %v420 = vsub.f32 1.0, %v419
    %v421 = vmul.f32 %v418, %v420
    %v422 = vadd.f32 %v418, %v421
    %vm423 = vweird.f32 %v416
    %vm424 = vweird.f32 %v418
    %vm425 = vmor %vm423, %vm424
    %v426 = vsel %vm425, %v418, %v422
    %v427 = vand.u32 2147483647, %v416
    %vm428 = vcmp.eq.f32.partialorder %v427, 8.507059e+37
    %v429 = vand.u32 %v416, 2147483648
    %v430 = vor.u32 1.1754944e-38, %v429
    %v431 = vsel %vm428, %v430, %v426
    %v432 = vmul.f32 1.0, %v431
    %v433 = vrcp.pop %v417
    %v434 = vmul.f32 %v417, %v433
    %v435 = vsub.f32 1.0, %v434
    %v436 = vmul.f32 %v433, %v435
    %v437 = vadd.f32 %v433, %v436
    %vm438 = vweird.f32 %v417
    %vm439 = vweird.f32 %v433
    %vm440 = vmor %vm438, %vm439
    %v441 = vsel %vm440, %v433, %v437
    %v442 = vand.u32 2147483647, %v417
    %vm443 = vcmp.eq.f32.partialorder %v442, 8.507059e+37
    %v444 = vand.u32 %v417, 2147483648
    %v445 = vor.u32 1.1754944e-38, %v444
    %v446 = vsel %vm443, %v445, %v441
    %v447 = vmul.f32 1.0, %v446
    %v448 = vadd.f32 %v402, %v318
    %v450 = vrot.slane %v448, 7
    %451 = vrot.lane.b32.xlu0 %v450, 64
    %v452 = vpop.permute.xlu0 %451
    %453 = vrot.lane.b32.xlu0 %v448, 64
    %v454 = vpop.permute.xlu0 %453
    %v457 = vmul.f32 %v432, %v452
    %v458 = vmul.f32 %v447, %v454
    %461 = vrot.lane.b32.xlu0 %v457, 64
    %v462 = vpop.permute.xlu0 %461
    %463 = vrot.lane.b32.xlu0 %v458, 64
    %v464 = vpop.permute.xlu0 %463
    %v467 = vadd.f32 %v247, %v462
    %v468 = vadd.f32 %v248, %v464
    %v469 = vtanh.pop %v467
    %v470 = vtanh.pop %v468
    %v471 = vsub.f32 1.0, %v432
    %v472 = vsub.f32 1.0, %v447
    %475 = vrot.lane.b32.xlu0 %v469, 96
    %v476 = vpop.permute.xlu0 %475
    %477 = vrot.lane.b32.xlu0 %v470, 96
    %v478 = vpop.permute.xlu0 %477
    %v481 = vmul.f32 %v471, %v476
    %v482 = vmul.f32 %v472, %v478
    %v483 = vrot.slane %v364, 7
    %v486 = vmul.f32 %v432, %v483
    %v487 = vmul.f32 %v447, %v377
    %v488 = vadd.f32 %v481, %v486
    %v489 = vadd.f32 %v482, %v487
    %492 = vrot.lane.b32.xlu0 %v488, 96
    %v493 = vpop.permute.xlu0 %492
    %494 = vrot.lane.b32.xlu0 %v489, 96
    %v495 = vpop.permute.xlu0 %494
    %vm498 = vcmask 254977
    %499 = vst.msk [vmem:[#allocation4] sm:$0x2] %vm498, %v493
    %500 = vst.msk [vmem:[#allocation4 + $0x8] sm:$0x2] %vm498, %v495
    %v501 = vrot.slane %v488, 1
    %v502 = vsel %vm378, %v489, %v501
    %503 = vrot.lane.b32.xlu0 %v502, 96
    %v504 = vpop.permute.xlu0 %503
    %v505 = vsel %vm249, %v504, 0
    %507 = vmatpush.msra.mxu0 0.0
    %508 = vmatpush.msra.mxu0 0.0
    %509 = vmatpush.msra.mxu0 0.0
    %510 = vmatpush.msra.mxu0 0.0
    %511 = vmatpush.msra.mxu0 0.0
    %512 = vmatpush.msra.mxu0 0.0
    %513 = vmatpush.msra.mxu0 0.0
    %514 = vmatpush.msra.mxu0 0.0
    %515 = vmatpush.msra.mxu0 0.0
    %516 = vmatpush.msra.mxu0 0.0
    %517 = vmatpush.msra.mxu0 0.0
    %518 = vmatpush.msra.mxu0 0.0
    %519 = vmatpush.msra.mxu0 %v242
    %520 = vmatpush.msra.mxu0 %v241
    %521 = vmatpush.msra.mxu0 %v240
    %522 = vmatpush.msra.mxu0 %v239
    %523 = vmatmul.f32.gmra.mxu0 %v505
    %v524 = vpop.f32.mrf.mxu0
    %v525 = vadd.f32 0.0, %v524
    %526 = vdwg.mxu0
    %v528 = vrot.slane %v525, 6
    %v529 = vrot.slane %v525, 7
    %v532 = vadd.f32 %v247, %v528
    %v533 = vadd.f32 %v248, %v529
    %v534 = vxor.u32 %v532, 2147483648
    %v535 = vxor.u32 %v533, 2147483648
    %v536 = vmul.f32 %v534, 1.442695
    %v537 = vpow.pop %v536
    %v538 = vmul.f32 %v535, 1.442695
    %v539 = vpow.pop %v538
    %v540 = vadd.f32 %v537, 1.0
    %v541 = vadd.f32 %v539, 1.0
    %v542 = vrcp.pop %v540
    %v543 = vmul.f32 %v540, %v542
    %v544 = vsub.f32 1.0, %v543
    %v545 = vmul.f32 %v542, %v544
    %v546 = vadd.f32 %v542, %v545
    %vm547 = vweird.f32 %v540
    %vm548 = vweird.f32 %v542
    %vm549 = vmor %vm547, %vm548
    %v550 = vsel %vm549, %v542, %v546
    %v551 = vand.u32 2147483647, %v540
    %vm552 = vcmp.eq.f32.partialorder %v551, 8.507059e+37
    %v553 = vand.u32 %v540, 2147483648
    %v554 = vor.u32 1.1754944e-38, %v553
    %v555 = vsel %vm552, %v554, %v550
    %v556 = vmul.f32 1.0, %v555
    %v557 = vrcp.pop %v541
    %v558 = vmul.f32 %v541, %v557
    %v559 = vsub.f32 1.0, %v558
    %v560 = vmul.f32 %v557, %v559
    %v561 = vadd.f32 %v557, %v560
    %vm562 = vweird.f32 %v541
    %vm563 = vweird.f32 %v557
    %vm564 = vmor %vm562, %vm563
    %v565 = vsel %vm564, %v557, %v561
    %v566 = vand.u32 2147483647, %v541
    %vm567 = vcmp.eq.f32.partialorder %v566, 8.507059e+37
    %v568 = vand.u32 %v541, 2147483648
    %v569 = vor.u32 1.1754944e-38, %v568
    %v570 = vsel %vm567, %v569, %v565
    %v571 = vmul.f32 1.0, %v570
    %v572 = vadd.f32 %v525, %v318
    %v574 = vrot.slane %v572, 6
    %v575 = vrot.slane %v572, 7
    %576 = vrot.lane.b32.xlu0 %v574, 64
    %v577 = vpop.permute.xlu0 %576
    %578 = vrot.lane.b32.xlu0 %v575, 64
    %v579 = vpop.permute.xlu0 %578
    %v582 = vmul.f32 %v556, %v577
    %v583 = vmul.f32 %v571, %v579
    %586 = vrot.lane.b32.xlu0 %v582, 64
    %v587 = vpop.permute.xlu0 %586
    %588 = vrot.lane.b32.xlu0 %v583, 64
    %v589 = vpop.permute.xlu0 %588
    %v592 = vadd.f32 %v247, %v587
    %v593 = vadd.f32 %v248, %v589
    %v594 = vtanh.pop %v592
    %v595 = vtanh.pop %v593
    %v596 = vsub.f32 1.0, %v556
    %v597 = vsub.f32 1.0, %v571
    %600 = vrot.lane.b32.xlu0 %v594, 96
    %v601 = vpop.permute.xlu0 %600
    %602 = vrot.lane.b32.xlu0 %v595, 96
    %v603 = vpop.permute.xlu0 %602
    %v606 = vmul.f32 %v596, %v601
    %v607 = vmul.f32 %v597, %v603
    %v608 = vrot.slane %v488, 7
    %v609 = vrot.slane %v489, 7
    %v612 = vmul.f32 %v556, %v608
    %v613 = vmul.f32 %v571, %v609
    %v614 = vadd.f32 %v606, %v612
    %v615 = vadd.f32 %v607, %v613
    %618 = vrot.lane.b32.xlu0 %v614, 96
    %v619 = vpop.permute.xlu0 %618
    %620 = vrot.lane.b32.xlu0 %v615, 96
    %v621 = vpop.permute.xlu0 %620
    %vm624 = vcmask 256002
    %625 = vst.msk [vmem:[#allocation4] sm:$0x4] %vm624, %v619
    %626 = vst.msk [vmem:[#allocation4 + $0x8] sm:$0x4] %vm624, %v621
    %v627 = vrot.slane %v614, 2
    %v628 = vrot.slane %v615, 1
    %v629 = vsel %vm378, %v628, %v627
    %630 = vrot.lane.b32.xlu0 %v629, 96
    %v631 = vpop.permute.xlu0 %630
    %v632 = vsel %vm249, %v631, 0
    %634 = vmatpush.msra.mxu0 0.0
    %635 = vmatpush.msra.mxu0 0.0
    %636 = vmatpush.msra.mxu0 0.0
    %637 = vmatpush.msra.mxu0 0.0
    %638 = vmatpush.msra.mxu0 0.0
    %639 = vmatpush.msra.mxu0 0.0
    %640 = vmatpush.msra.mxu0 0.0
    %641 = vmatpush.msra.mxu0 0.0
    %642 = vmatpush.msra.mxu0 0.0
    %643 = vmatpush.msra.mxu0 0.0
    %644 = vmatpush.msra.mxu0 0.0
    %645 = vmatpush.msra.mxu0 0.0
    %646 = vmatpush.msra.mxu0 %v242
    %647 = vmatpush.msra.mxu0 %v241
    %648 = vmatpush.msra.mxu0 %v240
    %649 = vmatpush.msra.mxu0 %v239
    %650 = vmatmul.f32.gmra.mxu0 %v632
    %v651 = vpop.f32.mrf.mxu0
    %v652 = vadd.f32 0.0, %v651
    %653 = vdwg.mxu0
    %v655 = vrot.slane %v652, 5
    %v656 = vrot.slane %v652, 6
    %v659 = vadd.f32 %v247, %v655
    %v660 = vadd.f32 %v248, %v656
    %v661 = vxor.u32 %v659, 2147483648
    %v662 = vxor.u32 %v660, 2147483648
    %v663 = vmul.f32 %v661, 1.442695
    %v664 = vpow.pop %v663
    %v665 = vmul.f32 %v662, 1.442695
    %v666 = vpow.pop %v665
    %v667 = vadd.f32 %v664, 1.0
    %v668 = vadd.f32 %v666, 1.0
    %v669 = vrcp.pop %v667
    %v670 = vmul.f32 %v667, %v669
    %v671 = vsub.f32 1.0, %v670
    %v672 = vmul.f32 %v669, %v671
    %v673 = vadd.f32 %v669, %v672
    %vm674 = vweird.f32 %v667
    %vm675 = vweird.f32 %v669
    %vm676 = vmor %vm674, %vm675
    %v677 = vsel %vm676, %v669, %v673
    %v678 = vand.u32 2147483647, %v667
    %vm679 = vcmp.eq.f32.partialorder %v678, 8.507059e+37
    %v680 = vand.u32 %v667, 2147483648
    %v681 = vor.u32 1.1754944e-38, %v680
    %v682 = vsel %vm679, %v681, %v677
    %v683 = vmul.f32 1.0, %v682
    %v684 = vrcp.pop %v668
    %v685 = vmul.f32 %v668, %v684
    %v686 = vsub.f32 1.0, %v685
    %v687 = vmul.f32 %v684, %v686
    %v688 = vadd.f32 %v684, %v687
    %vm689 = vweird.f32 %v668
    %vm690 = vweird.f32 %v684
    %vm691 = vmor %vm689, %vm690
    %v692 = vsel %vm691, %v684, %v688
    %v693 = vand.u32 2147483647, %v668
    %vm694 = vcmp.eq.f32.partialorder %v693, 8.507059e+37
    %v695 = vand.u32 %v668, 2147483648
    %v696 = vor.u32 1.1754944e-38, %v695
    %v697 = vsel %vm694, %v696, %v692
    %v698 = vmul.f32 1.0, %v697
    %v699 = vadd.f32 %v652, %v318
    %v701 = vrot.slane %v699, 5
    %v702 = vrot.slane %v699, 6
    %703 = vrot.lane.b32.xlu0 %v701, 64
    %v704 = vpop.permute.xlu0 %703
    %705 = vrot.lane.b32.xlu0 %v702, 64
    %v706 = vpop.permute.xlu0 %705
    %v709 = vmul.f32 %v683, %v704
    %v710 = vmul.f32 %v698, %v706
    %713 = vrot.lane.b32.xlu0 %v709, 64
    %v714 = vpop.permute.xlu0 %713
    %715 = vrot.lane.b32.xlu0 %v710, 64
    %v716 = vpop.permute.xlu0 %715
    %v719 = vadd.f32 %v247, %v714
    %v720 = vadd.f32 %v248, %v716
    %v721 = vtanh.pop %v719
    %v722 = vtanh.pop %v720
    %v723 = vsub.f32 1.0, %v683
    %v724 = vsub.f32 1.0, %v698
    %727 = vrot.lane.b32.xlu0 %v721, 96
    %v728 = vpop.permute.xlu0 %727
    %729 = vrot.lane.b32.xlu0 %v722, 96
    %v730 = vpop.permute.xlu0 %729
    %v733 = vmul.f32 %v723, %v728
    %v734 = vmul.f32 %v724, %v730
    %v735 = vrot.slane %v614, 7
    %v736 = vrot.slane %v615, 7
    %v739 = vmul.f32 %v683, %v735
    %v740 = vmul.f32 %v698, %v736
    %v741 = vadd.f32 %v733, %v739
    %v742 = vadd.f32 %v734, %v740
    %745 = vrot.lane.b32.xlu0 %v741, 96
    %v746 = vpop.permute.xlu0 %745
    %747 = vrot.lane.b32.xlu0 %v742, 96
    %v748 = vpop.permute.xlu0 %747
    %vm751 = vcmask 257027
    %752 = vst.msk [vmem:[#allocation4] sm:$0x8] %vm751, %v746
    %753 = vst.msk [vmem:[#allocation4 + $0x8] sm:$0x8] %vm751, %v748
    %v754 = vrot.slane %v741, 3
    %v755 = vrot.slane %v742, 2
    %v756 = vsel %vm378, %v755, %v754
    %757 = vrot.lane.b32.xlu0 %v756, 96
    %v758 = vpop.permute.xlu0 %757
    %v759 = vsel %vm249, %v758, 0
    %761 = vmatpush.msra.mxu0 0.0
    %762 = vmatpush.msra.mxu0 0.0
    %763 = vmatpush.msra.mxu0 0.0
    %764 = vmatpush.msra.mxu0 0.0
    %765 = vmatpush.msra.mxu0 0.0
    %766 = vmatpush.msra.mxu0 0.0
    %767 = vmatpush.msra.mxu0 0.0
    %768 = vmatpush.msra.mxu0 0.0
    %769 = vmatpush.msra.mxu0 0.0
    %770 = vmatpush.msra.mxu0 0.0
    %771 = vmatpush.msra.mxu0 0.0
    %772 = vmatpush.msra.mxu0 0.0
    %773 = vmatpush.msra.mxu0 %v242
    %774 = vmatpush.msra.mxu0 %v241
    %775 = vmatpush.msra.mxu0 %v240
    %776 = vmatpush.msra.mxu0 %v239
    %777 = vmatmul.f32.gmra.mxu0 %v759
    %v778 = vpop.f32.mrf.mxu0
    %v779 = vadd.f32 0.0, %v778
    %780 = vdwg.mxu0
    %v782 = vrot.slane %v779, 4
    %v783 = vrot.slane %v779, 5
    %v786 = vadd.f32 %v247, %v782
    %v787 = vadd.f32 %v248, %v783
    %v788 = vxor.u32 %v786, 2147483648
    %v789 = vxor.u32 %v787, 2147483648
    %v790 = vmul.f32 %v788, 1.442695
    %v791 = vpow.pop %v790
    %v792 = vmul.f32 %v789, 1.442695
    %v793 = vpow.pop %v792
    %v794 = vadd.f32 %v791, 1.0
    %v795 = vadd.f32 %v793, 1.0
    %v796 = vrcp.pop %v794
    %v797 = vmul.f32 %v794, %v796
    %v798 = vsub.f32 1.0, %v797
    %v799 = vmul.f32 %v796, %v798
    %v800 = vadd.f32 %v796, %v799
    %vm801 = vweird.f32 %v794
    %vm802 = vweird.f32 %v796
    %vm803 = vmor %vm801, %vm802
    %v804 = vsel %vm803, %v796, %v800
    %v805 = vand.u32 2147483647, %v794
    %vm806 = vcmp.eq.f32.partialorder %v805, 8.507059e+37
    %v807 = vand.u32 %v794, 2147483648
    %v808 = vor.u32 1.1754944e-38, %v807
    %v809 = vsel %vm806, %v808, %v804
    %v810 = vmul.f32 1.0, %v809
    %v811 = vrcp.pop %v795
    %v812 = vmul.f32 %v795, %v811
    %v813 = vsub.f32 1.0, %v812
    %v814 = vmul.f32 %v811, %v813
    %v815 = vadd.f32 %v811, %v814
    %vm816 = vweird.f32 %v795
    %vm817 = vweird.f32 %v811
    %vm818 = vmor %vm816, %vm817
    %v819 = vsel %vm818, %v811, %v815
    %v820 = vand.u32 2147483647, %v795
    %vm821 = vcmp.eq.f32.partialorder %v820, 8.507059e+37
    %v822 = vand.u32 %v795, 2147483648
    %v823 = vor.u32 1.1754944e-38, %v822
    %v824 = vsel %vm821, %v823, %v819
    %v825 = vmul.f32 1.0, %v824
    %v826 = vadd.f32 %v779, %v318
    %v828 = vrot.slane %v826, 4
    %v829 = vrot.slane %v826, 5
    %830 = vrot.lane.b32.xlu0 %v828, 64
    %v831 = vpop.permute.xlu0 %830
    %832 = vrot.lane.b32.xlu0 %v829, 64
    %v833 = vpop.permute.xlu0 %832
    %v836 = vmul.f32 %v810, %v831
    %v837 = vmul.f32 %v825, %v833
    %840 = vrot.lane.b32.xlu0 %v836, 64
    %v841 = vpop.permute.xlu0 %840
    %842 = vrot.lane.b32.xlu0 %v837, 64
    %v843 = vpop.permute.xlu0 %842
    %v846 = vadd.f32 %v247, %v841
    %v847 = vadd.f32 %v248, %v843
    %v848 = vtanh.pop %v846
    %v849 = vtanh.pop %v847
    %v850 = vsub.f32 1.0, %v810
    %v851 = vsub.f32 1.0, %v825
    %854 = vrot.lane.b32.xlu0 %v848, 96
    %v855 = vpop.permute.xlu0 %854
    %856 = vrot.lane.b32.xlu0 %v849, 96
    %v857 = vpop.permute.xlu0 %856
    %v860 = vmul.f32 %v850, %v855
    %v861 = vmul.f32 %v851, %v857
    %v862 = vrot.slane %v741, 7
    %v863 = vrot.slane %v742, 7
    %v866 = vmul.f32 %v810, %v862
    %v867 = vmul.f32 %v825, %v863
    %v868 = vadd.f32 %v860, %v866
    %v869 = vadd.f32 %v861, %v867
    %872 = vrot.lane.b32.xlu0 %v868, 96
    %v873 = vpop.permute.xlu0 %872
    %874 = vrot.lane.b32.xlu0 %v869, 96
    %v875 = vpop.permute.xlu0 %874
    %vm878 = vcmask 258052
    %879 = vst.msk [vmem:[#allocation4] sm:$0x10] %vm878, %v873
    %880 = vst.msk [vmem:[#allocation4 + $0x8] sm:$0x10] %vm878, %v875
    %v881 = vrot.slane %v868, 4
    %v882 = vrot.slane %v869, 3
    %v883 = vsel %vm378, %v882, %v881
    %884 = vrot.lane.b32.xlu0 %v883, 96
    %v885 = vpop.permute.xlu0 %884
    %v886 = vsel %vm249, %v885, 0
    %888 = vmatpush.msra.mxu0 0.0
    %889 = vmatpush.msra.mxu0 0.0
    %890 = vmatpush.msra.mxu0 0.0
    %891 = vmatpush.msra.mxu0 0.0
    %892 = vmatpush.msra.mxu0 0.0
    %893 = vmatpush.msra.mxu0 0.0
    %894 = vmatpush.msra.mxu0 0.0
    %895 = vmatpush.msra.mxu0 0.0
    %896 = vmatpush.msra.mxu0 0.0
    %897 = vmatpush.msra.mxu0 0.0
    %898 = vmatpush.msra.mxu0 0.0
    %899 = vmatpush.msra.mxu0 0.0
    %900 = vmatpush.msra.mxu0 %v242
    %901 = vmatpush.msra.mxu0 %v241
    %902 = vmatpush.msra.mxu0 %v240
    %903 = vmatpush.msra.mxu0 %v239
    %904 = vmatmul.f32.gmra.mxu0 %v886
    %v905 = vpop.f32.mrf.mxu0
    %v906 = vadd.f32 0.0, %v905
    %907 = vdwg.mxu0
    %v909 = vrot.slane %v906, 3
    %v910 = vrot.slane %v906, 4
    %v913 = vadd.f32 %v247, %v909
    %v914 = vadd.f32 %v248, %v910
    %v915 = vxor.u32 %v913, 2147483648
    %v916 = vxor.u32 %v914, 2147483648
    %v917 = vmul.f32 %v915, 1.442695
    %v918 = vpow.pop %v917
    %v919 = vmul.f32 %v916, 1.442695
    %v920 = vpow.pop %v919
    %v921 = vadd.f32 %v918, 1.0
    %v922 = vadd.f32 %v920, 1.0
    %v923 = vrcp.pop %v921
    %v924 = vmul.f32 %v921, %v923
    %v925 = vsub.f32 1.0, %v924
    %v926 = vmul.f32 %v923, %v925
    %v927 = vadd.f32 %v923, %v926
    %vm928 = vweird.f32 %v921
    %vm929 = vweird.f32 %v923
    %vm930 = vmor %vm928, %vm929
    %v931 = vsel %vm930, %v923, %v927
    %v932 = vand.u32 2147483647, %v921
    %vm933 = vcmp.eq.f32.partialorder %v932, 8.507059e+37
    %v934 = vand.u32 %v921, 2147483648
    %v935 = vor.u32 1.1754944e-38, %v934
    %v936 = vsel %vm933, %v935, %v931
    %v937 = vmul.f32 1.0, %v936
    %v938 = vrcp.pop %v922
    %v939 = vmul.f32 %v922, %v938
    %v940 = vsub.f32 1.0, %v939
    %v941 = vmul.f32 %v938, %v940
    %v942 = vadd.f32 %v938, %v941
    %vm943 = vweird.f32 %v922
    %vm944 = vweird.f32 %v938
    %vm945 = vmor %vm943, %vm944
    %v946 = vsel %vm945, %v938, %v942
    %v947 = vand.u32 2147483647, %v922
    %vm948 = vcmp.eq.f32.partialorder %v947, 8.507059e+37
    %v949 = vand.u32 %v922, 2147483648
    %v950 = vor.u32 1.1754944e-38, %v949
    %v951 = vsel %vm948, %v950, %v946
    %v952 = vmul.f32 1.0, %v951
    %v953 = vadd.f32 %v906, %v318
    %v955 = vrot.slane %v953, 3
    %v956 = vrot.slane %v953, 4
    %957 = vrot.lane.b32.xlu0 %v955, 64
    %v958 = vpop.permute.xlu0 %957
    %959 = vrot.lane.b32.xlu0 %v956, 64
    %v960 = vpop.permute.xlu0 %959
    %v963 = vmul.f32 %v937, %v958
    %v964 = vmul.f32 %v952, %v960
    %967 = vrot.lane.b32.xlu0 %v963, 64
    %v968 = vpop.permute.xlu0 %967
    %969 = vrot.lane.b32.xlu0 %v964, 64
    %v970 = vpop.permute.xlu0 %969
    %v973 = vadd.f32 %v247, %v968
    %v974 = vadd.f32 %v248, %v970
    %v975 = vtanh.pop %v973
    %v976 = vtanh.pop %v974
    %v977 = vsub.f32 1.0, %v937
    %v978 = vsub.f32 1.0, %v952
    %981 = vrot.lane.b32.xlu0 %v975, 96
    %v982 = vpop.permute.xlu0 %981
    %983 = vrot.lane.b32.xlu0 %v976, 96
    %v984 = vpop.permute.xlu0 %983
    %v987 = vmul.f32 %v977, %v982
    %v988 = vmul.f32 %v978, %v984
    %v989 = vrot.slane %v868, 7
    %v990 = vrot.slane %v869, 7
    %v993 = vmul.f32 %v937, %v989
    %v994 = vmul.f32 %v952, %v990
    %v995 = vadd.f32 %v987, %v993
    %v996 = vadd.f32 %v988, %v994
    %999 = vrot.lane.b32.xlu0 %v995, 96
    %v1000 = vpop.permute.xlu0 %999
    %1001 = vrot.lane.b32.xlu0 %v996, 96
    %v1002 = vpop.permute.xlu0 %1001
    %vm1005 = vcmask 259077
    %1006 = vst.msk [vmem:[#allocation4] sm:$0x20] %vm1005, %v1000
    %1007 = vst.msk [vmem:[#allocation4 + $0x8] sm:$0x20] %vm1005, %v1002
    %v1008 = vrot.slane %v995, 5
    %v1009 = vrot.slane %v996, 4
    %v1010 = vsel %vm378, %v1009, %v1008
    %1011 = vrot.lane.b32.xlu0 %v1010, 96
    %v1012 = vpop.permute.xlu0 %1011
    %v1013 = vsel %vm249, %v1012, 0
    %1015 = vmatpush.msra.mxu0 0.0
    %1016 = vmatpush.msra.mxu0 0.0
    %1017 = vmatpush.msra.mxu0 0.0
    %1018 = vmatpush.msra.mxu0 0.0
    %1019 = vmatpush.msra.mxu0 0.0
    %1020 = vmatpush.msra.mxu0 0.0
    %1021 = vmatpush.msra.mxu0 0.0
    %1022 = vmatpush.msra.mxu0 0.0
    %1023 = vmatpush.msra.mxu0 0.0
    %1024 = vmatpush.msra.mxu0 0.0
    %1025 = vmatpush.msra.mxu0 0.0
    %1026 = vmatpush.msra.mxu0 0.0
    %1027 = vmatpush.msra.mxu0 %v242
    %1028 = vmatpush.msra.mxu0 %v241
    %1029 = vmatpush.msra.mxu0 %v240
    %1030 = vmatpush.msra.mxu0 %v239
    %1031 = vmatmul.f32.gmra.mxu0 %v1013
    %v1032 = vpop.f32.mrf.mxu0
    %v1033 = vadd.f32 0.0, %v1032
    %1034 = vdwg.mxu0
    %v1036 = vrot.slane %v1033, 2
    %v1037 = vrot.slane %v1033, 3
    %v1040 = vadd.f32 %v247, %v1036
    %v1041 = vadd.f32 %v248, %v1037
    %v1042 = vxor.u32 %v1040, 2147483648
    %v1043 = vxor.u32 %v1041, 2147483648
    %v1044 = vmul.f32 %v1042, 1.442695
    %v1045 = vpow.pop %v1044
    %v1046 = vmul.f32 %v1043, 1.442695
    %v1047 = vpow.pop %v1046
    %v1048 = vadd.f32 %v1045, 1.0
    %v1049 = vadd.f32 %v1047, 1.0
    %v1050 = vrcp.pop %v1048
    %v1051 = vmul.f32 %v1048, %v1050
    %v1052 = vsub.f32 1.0, %v1051
    %v1053 = vmul.f32 %v1050, %v1052
    %v1054 = vadd.f32 %v1050, %v1053
    %vm1055 = vweird.f32 %v1048
    %vm1056 = vweird.f32 %v1050
    %vm1057 = vmor %vm1055, %vm1056
    %v1058 = vsel %vm1057, %v1050, %v1054
    %v1059 = vand.u32 2147483647, %v1048
    %vm1060 = vcmp.eq.f32.partialorder %v1059, 8.507059e+37
    %v1061 = vand.u32 %v1048, 2147483648
    %v1062 = vor.u32 1.1754944e-38, %v1061
    %v1063 = vsel %vm1060, %v1062, %v1058
    %v1064 = vmul.f32 1.0, %v1063
    %v1065 = vrcp.pop %v1049
    %v1066 = vmul.f32 %v1049, %v1065
    %v1067 = vsub.f32 1.0, %v1066
    %v1068 = vmul.f32 %v1065, %v1067
    %v1069 = vadd.f32 %v1065, %v1068
    %vm1070 = vweird.f32 %v1049
    %vm1071 = vweird.f32 %v1065
    %vm1072 = vmor %vm1070, %vm1071
    %v1073 = vsel %vm1072, %v1065, %v1069
    %v1074 = vand.u32 2147483647, %v1049
    %vm1075 = vcmp.eq.f32.partialorder %v1074, 8.507059e+37
    %v1076 = vand.u32 %v1049, 2147483648
    %v1077 = vor.u32 1.1754944e-38, %v1076
    %v1078 = vsel %vm1075, %v1077, %v1073
    %v1079 = vmul.f32 1.0, %v1078
    %v1080 = vadd.f32 %v1033, %v318
    %v1082 = vrot.slane %v1080, 2
    %v1083 = vrot.slane %v1080, 3
    %1084 = vrot.lane.b32.xlu0 %v1082, 64
    %v1085 = vpop.permute.xlu0 %1084
    %1086 = vrot.lane.b32.xlu0 %v1083, 64
    %v1087 = vpop.permute.xlu0 %1086
    %v1090 = vmul.f32 %v1064, %v1085
    %v1091 = vmul.f32 %v1079, %v1087
    %1094 = vrot.lane.b32.xlu0 %v1090, 64
    %v1095 = vpop.permute.xlu0 %1094
    %1096 = vrot.lane.b32.xlu0 %v1091, 64
    %v1097 = vpop.permute.xlu0 %1096
    %v1100 = vadd.f32 %v247, %v1095
    %v1101 = vadd.f32 %v248, %v1097
    %v1102 = vtanh.pop %v1100
    %v1103 = vtanh.pop %v1101
    %v1104 = vsub.f32 1.0, %v1064
    %v1105 = vsub.f32 1.0, %v1079
    %1108 = vrot.lane.b32.xlu0 %v1102, 96
    %v1109 = vpop.permute.xlu0 %1108
    %1110 = vrot.lane.b32.xlu0 %v1103, 96
    %v1111 = vpop.permute.xlu0 %1110
    %v1114 = vmul.f32 %v1104, %v1109
    %v1115 = vmul.f32 %v1105, %v1111
    %v1116 = vrot.slane %v995, 7
    %v1117 = vrot.slane %v996, 7
    %v1120 = vmul.f32 %v1064, %v1116
    %v1121 = vmul.f32 %v1079, %v1117
    %v1122 = vadd.f32 %v1114, %v1120
    %v1123 = vadd.f32 %v1115, %v1121
    %1126 = vrot.lane.b32.xlu0 %v1122, 96
    %v1127 = vpop.permute.xlu0 %1126
    %1128 = vrot.lane.b32.xlu0 %v1123, 96
    %v1129 = vpop.permute.xlu0 %1128
    %vm1132 = vcmask 260102
    %1133 = vst.msk [vmem:[#allocation4] sm:$0x40] %vm1132, %v1127
    %1134 = vst.msk [vmem:[#allocation4 + $0x8] sm:$0x40] %vm1132, %v1129
    %v1135 = vrot.slane %v1122, 6
    %v1136 = vrot.slane %v1123, 5
    %v1137 = vsel %vm378, %v1136, %v1135
    %1138 = vrot.lane.b32.xlu0 %v1137, 96
    %v1139 = vpop.permute.xlu0 %1138
    %v1140 = vsel %vm249, %v1139, 0
    %1142 = vmatpush.msra.mxu0 0.0
    %1143 = vmatpush.msra.mxu0 0.0
    %1144 = vmatpush.msra.mxu0 0.0
    %1145 = vmatpush.msra.mxu0 0.0
    %1146 = vmatpush.msra.mxu0 0.0
    %1147 = vmatpush.msra.mxu0 0.0
    %1148 = vmatpush.msra.mxu0 0.0
    %1149 = vmatpush.msra.mxu0 0.0
    %1150 = vmatpush.msra.mxu0 0.0
    %1151 = vmatpush.msra.mxu0 0.0
    %1152 = vmatpush.msra.mxu0 0.0
    %1153 = vmatpush.msra.mxu0 0.0
    %1154 = vmatpush.msra.mxu0 %v242
    %1155 = vmatpush.msra.mxu0 %v241
    %1156 = vmatpush.msra.mxu0 %v240
    %1157 = vmatpush.msra.mxu0 %v239
    %1158 = vmatmul.f32.gmra.mxu0 %v1140
    %v1159 = vpop.f32.mrf.mxu0
    %v1160 = vadd.f32 0.0, %v1159
    %1161 = vdwg.mxu0
    %v1163 = vrot.slane %v1160, 1
    %v1164 = vrot.slane %v1160, 2
    %v1167 = vadd.f32 %v247, %v1163
    %v1168 = vadd.f32 %v248, %v1164
    %v1169 = vxor.u32 %v1167, 2147483648
    %v1170 = vxor.u32 %v1168, 2147483648
    %v1171 = vmul.f32 %v1169, 1.442695
    %v1172 = vpow.pop %v1171
    %v1173 = vmul.f32 %v1170, 1.442695
    %v1174 = vpow.pop %v1173
    %v1175 = vadd.f32 %v1172, 1.0
    %v1176 = vadd.f32 %v1174, 1.0
    %v1177 = vrcp.pop %v1175
    %v1178 = vmul.f32 %v1175, %v1177
    %v1179 = vsub.f32 1.0, %v1178
    %v1180 = vmul.f32 %v1177, %v1179
    %v1181 = vadd.f32 %v1177, %v1180
    %vm1182 = vweird.f32 %v1175
    %vm1183 = vweird.f32 %v1177
    %vm1184 = vmor %vm1182, %vm1183
    %v1185 = vsel %vm1184, %v1177, %v1181
    %v1186 = vand.u32 2147483647, %v1175
    %vm1187 = vcmp.eq.f32.partialorder %v1186, 8.507059e+37
    %v1188 = vand.u32 %v1175, 2147483648
    %v1189 = vor.u32 1.1754944e-38, %v1188
    %v1190 = vsel %vm1187, %v1189, %v1185
    %v1191 = vmul.f32 1.0, %v1190
    %v1192 = vrcp.pop %v1176
    %v1193 = vmul.f32 %v1176, %v1192
    %v1194 = vsub.f32 1.0, %v1193
    %v1195 = vmul.f32 %v1192, %v1194
    %v1196 = vadd.f32 %v1192, %v1195
    %vm1197 = vweird.f32 %v1176
    %vm1198 = vweird.f32 %v1192
    %vm1199 = vmor %vm1197, %vm1198
    %v1200 = vsel %vm1199, %v1192, %v1196
    %v1201 = vand.u32 2147483647, %v1176
    %vm1202 = vcmp.eq.f32.partialorder %v1201, 8.507059e+37
    %v1203 = vand.u32 %v1176, 2147483648
    %v1204 = vor.u32 1.1754944e-38, %v1203
    %v1205 = vsel %vm1202, %v1204, %v1200
    %v1206 = vmul.f32 1.0, %v1205
    %v1207 = vadd.f32 %v1160, %v318
    %v1209 = vrot.slane %v1207, 1
    %v1210 = vrot.slane %v1207, 2
    %1211 = vrot.lane.b32.xlu0 %v1209, 64
    %v1212 = vpop.permute.xlu0 %1211
    %1213 = vrot.lane.b32.xlu0 %v1210, 64
    %v1214 = vpop.permute.xlu0 %1213
    %v1217 = vmul.f32 %v1191, %v1212
    %v1218 = vmul.f32 %v1206, %v1214
    %1221 = vrot.lane.b32.xlu0 %v1217, 64
    %v1222 = vpop.permute.xlu0 %1221
    %1223 = vrot.lane.b32.xlu0 %v1218, 64
    %v1224 = vpop.permute.xlu0 %1223
    %v1227 = vadd.f32 %v247, %v1222
    %v1228 = vadd.f32 %v248, %v1224
    %v1229 = vtanh.pop %v1227
    %v1230 = vtanh.pop %v1228
    %v1231 = vsub.f32 1.0, %v1191
    %v1232 = vsub.f32 1.0, %v1206
    %1235 = vrot.lane.b32.xlu0 %v1229, 96
    %v1236 = vpop.permute.xlu0 %1235
    %1237 = vrot.lane.b32.xlu0 %v1230, 96
    %v1238 = vpop.permute.xlu0 %1237
    %v1241 = vmul.f32 %v1231, %v1236
    %v1242 = vmul.f32 %v1232, %v1238
    %v1243 = vrot.slane %v1122, 7
    %v1244 = vrot.slane %v1123, 7
    %v1247 = vmul.f32 %v1191, %v1243
    %v1248 = vmul.f32 %v1206, %v1244
    %v1249 = vadd.f32 %v1241, %v1247
    %v1250 = vadd.f32 %v1242, %v1248
    %1253 = vrot.lane.b32.xlu0 %v1249, 96
    %v1254 = vpop.permute.xlu0 %1253
    %1255 = vrot.lane.b32.xlu0 %v1250, 96
    %v1256 = vpop.permute.xlu0 %1255
    %vm1259 = vcmask 261127
    %1260 = vst.msk [vmem:[#allocation4] sm:$0x80] %vm1259, %v1254
    %1261 = vst.msk [vmem:[#allocation4 + $0x8] sm:$0x80] %vm1259, %v1256
    %v1262 = vld [vmem:[#allocation4] sm:$0xff]
    %v1263 = vld [vmem:[#allocation4 + $0x8] sm:$0xff]
    %1264 = vst.msk [vmem:[#allocation3] sm:$0xff] %vm249, %v1262
    %1265 = vst.msk [vmem:[#allocation3 + $0x8] sm:$0xff] %vm249, %v1263
    %v1266 = vrot.slane %v1250, 7
    %1267 = vrot.lane.b32.xlu0 %v1266, 96
    %v1268 = vpop.permute.xlu0 %1267
    %1270 = vst.msk [vmem:[#allocation18 - $0x7] sm:$0x80] %vm1259, %v1254
    %1271 = vst.msk [vmem:[#allocation18 + $0x1] sm:$0x1] %vm374, %v1268
    %v1272 = vld [vmem:[#allocation3] sm:$0xff]
    %v1273 = vld [vmem:[#allocation3 + $0x8] sm:$0xff]
    %v1274 = vld [vmem:[#allocation13] sm:$0xff]
    %v1275 = vld [vmem:[#allocation13 + $0x8] sm:$0xff]
    %v1276 = vld [vmem:[#allocation13 + $0x10] sm:$0xff]
    %v1277 = vld [vmem:[#allocation13 + $0x18] sm:$0xff]
    %v1278 = vld [vmem:[%s8] sm:$0x1]
    %v1280 = vperm.slane %v1278, 0
    %v1283 = vsel %vm249, %v1272, 0
    %v1286 = vsel %vm249, %v1273, 0
    %1288 = vmatpush.msra.mxu0 0.0
    %1289 = vmatpush.msra.mxu0 0.0
    %1290 = vmatpush.msra.mxu0 0.0
    %1291 = vmatpush.msra.mxu0 0.0
    %1292 = vmatpush.msra.mxu0 0.0
    %1293 = vmatpush.msra.mxu0 0.0
    %1294 = vmatpush.msra.mxu0 0.0
    %1295 = vmatpush.msra.mxu0 0.0
    %1296 = vmatpush.msra.mxu0 0.0
    %1297 = vmatpush.msra.mxu0 0.0
    %1298 = vmatpush.msra.mxu0 0.0
    %1299 = vmatpush.msra.mxu0 0.0
    %1300 = vmatpush.msra.mxu0 %v1277
    %1301 = vmatpush.msra.mxu0 %v1276
    %1302 = vmatpush.msra.mxu0 %v1275
    %1303 = vmatpush.msra.mxu0 %v1274
    %1304 = vmatmul.f32.gmra.mxu0 %v1283
    %v1305 = vpop.f32.mrf.mxu0
    %v1306 = vadd.f32 %v1280, %v1305
    %1307 = vmatmul.f32.gmra.mxu0 %v1286
    %v1308 = vpop.f32.mrf.mxu0
    %v1309 = vadd.f32 %v1280, %v1308
    %1310 = vdwg.mxu0
    %1311 = vst.msk [vmem:[#allocation2] sm:$0xff] %vm236, %v1306
    %1312 = vst.msk [vmem:[#allocation2 + $0x8] sm:$0xff] %vm236, %v1309
    %v1313 = vld [vmem:[#allocation14] sm:$0xff]
    %v1314 = vld [vmem:[#allocation14 + $0x8] sm:$0xff]
    %v1315 = vld [vmem:[#allocation14 + $0x10] sm:$0xff]
    %v1316 = vld [vmem:[#allocation14 + $0x18] sm:$0xff]
    %v1317 = vld [vmem:[%s9] sm:$0x1]
    %v1319 = vperm.slane %v1317, 0
    %s1320 = scalar_lea.vmem [#allocation8], 2
    %v1321 = vld [vmem:[%s1320] sm:$0x3]
    %v1322 = vld [vmem:[#allocation2] sm:$0xff]
    %v1323 = vld [vmem:[#allocation2 + $0x8] sm:$0xff]
    %v1325 = vsel %vm249, %v1321, 0
    %1327 = vmatpush.msra.mxu0 0.0
    %1328 = vmatpush.msra.mxu0 0.0
    %1329 = vmatpush.msra.mxu0 0.0
    %1330 = vmatpush.msra.mxu0 0.0
    %1331 = vmatpush.msra.mxu0 0.0
    %1332 = vmatpush.msra.mxu0 0.0
    %1333 = vmatpush.msra.mxu0 0.0
    %1334 = vmatpush.msra.mxu0 0.0
    %1335 = vmatpush.msra.mxu0 0.0
    %1336 = vmatpush.msra.mxu0 0.0
    %1337 = vmatpush.msra.mxu0 0.0
    %1338 = vmatpush.msra.mxu0 0.0
    %1339 = vmatpush.msra.mxu0 %v1316
    %1340 = vmatpush.msra.mxu0 %v1315
    %1341 = vmatpush.msra.mxu0 %v1314
    %1342 = vmatpush.msra.mxu0 %v1313
    %1343 = vmatmul.f32.gmra.mxu0 %v1325
    %v1344 = vpop.f32.mrf.mxu0
    %v1345 = vadd.f32 0.0, %v1344
    %1346 = vdwg.mxu0
    %v1348 = vrot.slane %v1345, 1
    %v1351 = vadd.f32 %v1322, %v1345
    %v1352 = vadd.f32 %v1323, %v1348
    %v1353 = vxor.u32 %v1351, 2147483648
    %v1354 = vxor.u32 %v1352, 2147483648
    %v1355 = vmul.f32 %v1353, 1.442695
    %v1356 = vpow.pop %v1355
    %v1357 = vmul.f32 %v1354, 1.442695
    %v1358 = vpow.pop %v1357
    %v1359 = vadd.f32 %v1356, 1.0
    %v1360 = vadd.f32 %v1358, 1.0
    %v1361 = vrcp.pop %v1359
    %v1362 = vmul.f32 %v1359, %v1361
    %v1363 = vsub.f32 1.0, %v1362
    %v1364 = vmul.f32 %v1361, %v1363
    %v1365 = vadd.f32 %v1361, %v1364
    %vm1366 = vweird.f32 %v1359
    %vm1367 = vweird.f32 %v1361
    %vm1368 = vmor %vm1366, %vm1367
    %v1369 = vsel %vm1368, %v1361, %v1365
    %v1370 = vand.u32 2147483647, %v1359
    %vm1371 = vcmp.eq.f32.partialorder %v1370, 8.507059e+37
    %v1372 = vand.u32 %v1359, 2147483648
    %v1373 = vor.u32 1.1754944e-38, %v1372
    %v1374 = vsel %vm1371, %v1373, %v1369
    %v1375 = vmul.f32 1.0, %v1374
    %v1376 = vrcp.pop %v1360
    %v1377 = vmul.f32 %v1360, %v1376
    %v1378 = vsub.f32 1.0, %v1377
    %v1379 = vmul.f32 %v1376, %v1378
    %v1380 = vadd.f32 %v1376, %v1379
    %vm1381 = vweird.f32 %v1360
    %vm1382 = vweird.f32 %v1376
    %vm1383 = vmor %vm1381, %vm1382
    %v1384 = vsel %vm1383, %v1376, %v1380
    %v1385 = vand.u32 2147483647, %v1360
    %vm1386 = vcmp.eq.f32.partialorder %v1385, 8.507059e+37
    %v1387 = vand.u32 %v1360, 2147483648
    %v1388 = vor.u32 1.1754944e-38, %v1387
    %v1389 = vsel %vm1386, %v1388, %v1384
    %v1390 = vmul.f32 1.0, %v1389
    %1391 = vrot.lane.b32.xlu0 %v1319, 64
    %v1392 = vpop.permute.xlu0 %1391
    %v1394 = vadd.f32 %v1345, %v1392
    %v1396 = vrot.slane %v1394, 1
    %1397 = vrot.lane.b32.xlu0 %v1394, 64
    %v1398 = vpop.permute.xlu0 %1397
    %1399 = vrot.lane.b32.xlu0 %v1396, 64
    %v1400 = vpop.permute.xlu0 %1399
    %v1403 = vmul.f32 %v1375, %v1398
    %v1404 = vmul.f32 %v1390, %v1400
    %1407 = vrot.lane.b32.xlu0 %v1403, 64
    %v1408 = vpop.permute.xlu0 %1407
    %1409 = vrot.lane.b32.xlu0 %v1404, 64
    %v1410 = vpop.permute.xlu0 %1409
    %v1413 = vadd.f32 %v1322, %v1408
    %v1414 = vadd.f32 %v1323, %v1410
    %v1415 = vtanh.pop %v1413
    %v1416 = vtanh.pop %v1414
    %v1417 = vsub.f32 1.0, %v1375
    %v1418 = vsub.f32 1.0, %v1390
    %1421 = vrot.lane.b32.xlu0 %v1415, 96
    %v1422 = vpop.permute.xlu0 %1421
    %1423 = vrot.lane.b32.xlu0 %v1416, 96
    %v1424 = vpop.permute.xlu0 %1423
    %v1427 = vmul.f32 %v1417, %v1422
    %v1428 = vmul.f32 %v1418, %v1424
    %v1429 = vrot.slane %v1321, 1
    %1430 = vrot.lane.b32.xlu0 %v1321, 32
    %v1431 = vpop.permute.xlu0 %1430
    %1432 = vrot.lane.b32.xlu0 %v1429, 32
    %v1433 = vpop.permute.xlu0 %1432
    %v1436 = vmul.f32 %v1375, %v1431
    %v1437 = vmul.f32 %v1390, %v1433
    %v1438 = vadd.f32 %v1427, %v1436
    %v1439 = vadd.f32 %v1428, %v1437
    %1442 = vrot.lane.b32.xlu0 %v1438, 96
    %v1443 = vpop.permute.xlu0 %1442
    %1444 = vrot.lane.b32.xlu0 %v1439, 96
    %v1445 = vpop.permute.xlu0 %1444
    %1448 = vst.msk [vmem:[#allocation4] sm:$0x1] %vm374, %v1443
    %1449 = vst.msk [vmem:[#allocation4 + $0x8] sm:$0x1] %vm374, %v1445
    %v1450 = vrot.slane %v1439, 7
    %v1451 = vsel %vm378, %v1450, %v1438
    %1452 = vrot.lane.b32.xlu0 %v1451, 96
    %v1453 = vpop.permute.xlu0 %1452
    %v1454 = vsel %vm249, %v1453, 0
    %1456 = vmatpush.msra.mxu0 0.0
    %1457 = vmatpush.msra.mxu0 0.0
    %1458 = vmatpush.msra.mxu0 0.0
    %1459 = vmatpush.msra.mxu0 0.0
    %1460 = vmatpush.msra.mxu0 0.0
    %1461 = vmatpush.msra.mxu0 0.0
    %1462 = vmatpush.msra.mxu0 0.0
    %1463 = vmatpush.msra.mxu0 0.0
    %1464 = vmatpush.msra.mxu0 0.0
    %1465 = vmatpush.msra.mxu0 0.0
    %1466 = vmatpush.msra.mxu0 0.0
    %1467 = vmatpush.msra.mxu0 0.0
    %1468 = vmatpush.msra.mxu0 %v1316
    %1469 = vmatpush.msra.mxu0 %v1315
    %1470 = vmatpush.msra.mxu0 %v1314
    %1471 = vmatpush.msra.mxu0 %v1313
    %1472 = vmatmul.f32.gmra.mxu0 %v1454
    %v1473 = vpop.f32.mrf.mxu0
    %v1474 = vadd.f32 0.0, %v1473
    %1475 = vdwg.mxu0
    %v1477 = vrot.slane %v1474, 7
    %v1480 = vadd.f32 %v1322, %v1477
    %v1481 = vadd.f32 %v1323, %v1474
    %v1482 = vxor.u32 %v1480, 2147483648
    %v1483 = vxor.u32 %v1481, 2147483648
    %v1484 = vmul.f32 %v1482, 1.442695
    %v1485 = vpow.pop %v1484
    %v1486 = vmul.f32 %v1483, 1.442695
    %v1487 = vpow.pop %v1486
    %v1488 = vadd.f32 %v1485, 1.0
    %v1489 = vadd.f32 %v1487, 1.0
    %v1490 = vrcp.pop %v1488
    %v1491 = vmul.f32 %v1488, %v1490
    %v1492 = vsub.f32 1.0, %v1491
    %v1493 = vmul.f32 %v1490, %v1492
    %v1494 = vadd.f32 %v1490, %v1493
    %vm1495 = vweird.f32 %v1488
    %vm1496 = vweird.f32 %v1490
    %vm1497 = vmor %vm1495, %vm1496
    %v1498 = vsel %vm1497, %v1490, %v1494
    %v1499 = vand.u32 2147483647, %v1488
    %vm1500 = vcmp.eq.f32.partialorder %v1499, 8.507059e+37
    %v1501 = vand.u32 %v1488, 2147483648
    %v1502 = vor.u32 1.1754944e-38, %v1501
    %v1503 = vsel %vm1500, %v1502, %v1498
    %v1504 = vmul.f32 1.0, %v1503
    %v1505 = vrcp.pop %v1489
    %v1506 = vmul.f32 %v1489, %v1505
    %v1507 = vsub.f32 1.0, %v1506
    %v1508 = vmul.f32 %v1505, %v1507
    %v1509 = vadd.f32 %v1505, %v1508
    %vm1510 = vweird.f32 %v1489
    %vm1511 = vweird.f32 %v1505
    %vm1512 = vmor %vm1510, %vm1511
    %v1513 = vsel %vm1512, %v1505, %v1509
    %v1514 = vand.u32 2147483647, %v1489
    %vm1515 = vcmp.eq.f32.partialorder %v1514, 8.507059e+37
    %v1516 = vand.u32 %v1489, 2147483648
    %v1517 = vor.u32 1.1754944e-38, %v1516
    %v1518 = vsel %vm1515, %v1517, %v1513
    %v1519 = vmul.f32 1.0, %v1518
    %v1520 = vadd.f32 %v1474, %v1392
    %v1522 = vrot.slane %v1520, 7
    %1523 = vrot.lane.b32.xlu0 %v1522, 64
    %v1524 = vpop.permute.xlu0 %1523
    %1525 = vrot.lane.b32.xlu0 %v1520, 64
    %v1526 = vpop.permute.xlu0 %1525
    %v1529 = vmul.f32 %v1504, %v1524
    %v1530 = vmul.f32 %v1519, %v1526
    %1533 = vrot.lane.b32.xlu0 %v1529, 64
    %v1534 = vpop.permute.xlu0 %1533
    %1535 = vrot.lane.b32.xlu0 %v1530, 64
    %v1536 = vpop.permute.xlu0 %1535
    %v1539 = vadd.f32 %v1322, %v1534
    %v1540 = vadd.f32 %v1323, %v1536
    %v1541 = vtanh.pop %v1539
    %v1542 = vtanh.pop %v1540
    %v1543 = vsub.f32 1.0, %v1504
    %v1544 = vsub.f32 1.0, %v1519
    %1547 = vrot.lane.b32.xlu0 %v1541, 96
    %v1548 = vpop.permute.xlu0 %1547
    %1549 = vrot.lane.b32.xlu0 %v1542, 96
    %v1550 = vpop.permute.xlu0 %1549
    %v1553 = vmul.f32 %v1543, %v1548
    %v1554 = vmul.f32 %v1544, %v1550
    %v1555 = vrot.slane %v1438, 7
    %v1558 = vmul.f32 %v1504, %v1555
    %v1559 = vmul.f32 %v1519, %v1450
    %v1560 = vadd.f32 %v1553, %v1558
    %v1561 = vadd.f32 %v1554, %v1559
    %1564 = vrot.lane.b32.xlu0 %v1560, 96
    %v1565 = vpop.permute.xlu0 %1564
    %1566 = vrot.lane.b32.xlu0 %v1561, 96
    %v1567 = vpop.permute.xlu0 %1566
    %1570 = vst.msk [vmem:[#allocation4] sm:$0x2] %vm498, %v1565
    %1571 = vst.msk [vmem:[#allocation4 + $0x8] sm:$0x2] %vm498, %v1567
    %v1572 = vrot.slane %v1560, 1
    %v1573 = vsel %vm378, %v1561, %v1572
    %1574 = vrot.lane.b32.xlu0 %v1573, 96
    %v1575 = vpop.permute.xlu0 %1574
    %v1576 = vsel %vm249, %v1575, 0
    %1578 = vmatpush.msra.mxu0 0.0
    %1579 = vmatpush.msra.mxu0 0.0
    %1580 = vmatpush.msra.mxu0 0.0
    %1581 = vmatpush.msra.mxu0 0.0
    %1582 = vmatpush.msra.mxu0 0.0
    %1583 = vmatpush.msra.mxu0 0.0
    %1584 = vmatpush.msra.mxu0 0.0
    %1585 = vmatpush.msra.mxu0 0.0
    %1586 = vmatpush.msra.mxu0 0.0
    %1587 = vmatpush.msra.mxu0 0.0
    %1588 = vmatpush.msra.mxu0 0.0
    %1589 = vmatpush.msra.mxu0 0.0
    %1590 = vmatpush.msra.mxu0 %v1316
    %1591 = vmatpush.msra.mxu0 %v1315
    %1592 = vmatpush.msra.mxu0 %v1314
    %1593 = vmatpush.msra.mxu0 %v1313
    %1594 = vmatmul.f32.gmra.mxu0 %v1576
    %v1595 = vpop.f32.mrf.mxu0
    %v1596 = vadd.f32 0.0, %v1595
    %1597 = vdwg.mxu0
    %v1599 = vrot.slane %v1596, 6
    %v1600 = vrot.slane %v1596, 7
    %v1603 = vadd.f32 %v1322, %v1599
    %v1604 = vadd.f32 %v1323, %v1600
    %v1605 = vxor.u32 %v1603, 2147483648
    %v1606 = vxor.u32 %v1604, 2147483648
    %v1607 = vmul.f32 %v1605, 1.442695
    %v1608 = vpow.pop %v1607
    %v1609 = vmul.f32 %v1606, 1.442695
    %v1610 = vpow.pop %v1609
    %v1611 = vadd.f32 %v1608, 1.0
    %v1612 = vadd.f32 %v1610, 1.0
    %v1613 = vrcp.pop %v1611
    %v1614 = vmul.f32 %v1611, %v1613
    %v1615 = vsub.f32 1.0, %v1614
    %v1616 = vmul.f32 %v1613, %v1615
    %v1617 = vadd.f32 %v1613, %v1616
    %vm1618 = vweird.f32 %v1611
    %vm1619 = vweird.f32 %v1613
    %vm1620 = vmor %vm1618, %vm1619
    %v1621 = vsel %vm1620, %v1613, %v1617
    %v1622 = vand.u32 2147483647, %v1611
    %vm1623 = vcmp.eq.f32.partialorder %v1622, 8.507059e+37
    %v1624 = vand.u32 %v1611, 2147483648
    %v1625 = vor.u32 1.1754944e-38, %v1624
    %v1626 = vsel %vm1623, %v1625, %v1621
    %v1627 = vmul.f32 1.0, %v1626
    %v1628 = vrcp.pop %v1612
    %v1629 = vmul.f32 %v1612, %v1628
    %v1630 = vsub.f32 1.0, %v1629
    %v1631 = vmul.f32 %v1628, %v1630
    %v1632 = vadd.f32 %v1628, %v1631
    %vm1633 = vweird.f32 %v1612
    %vm1634 = vweird.f32 %v1628
    %vm1635 = vmor %vm1633, %vm1634
    %v1636 = vsel %vm1635, %v1628, %v1632
    %v1637 = vand.u32 2147483647, %v1612
    %vm1638 = vcmp.eq.f32.partialorder %v1637, 8.507059e+37
    %v1639 = vand.u32 %v1612, 2147483648
    %v1640 = vor.u32 1.1754944e-38, %v1639
    %v1641 = vsel %vm1638, %v1640, %v1636
    %v1642 = vmul.f32 1.0, %v1641
    %v1643 = vadd.f32 %v1596, %v1392
    %v1645 = vrot.slane %v1643, 6
    %v1646 = vrot.slane %v1643, 7
    %1647 = vrot.lane.b32.xlu0 %v1645, 64
    %v1648 = vpop.permute.xlu0 %1647
    %1649 = vrot.lane.b32.xlu0 %v1646, 64
    %v1650 = vpop.permute.xlu0 %1649
    %v1653 = vmul.f32 %v1627, %v1648
    %v1654 = vmul.f32 %v1642, %v1650
    %1657 = vrot.lane.b32.xlu0 %v1653, 64
    %v1658 = vpop.permute.xlu0 %1657
    %1659 = vrot.lane.b32.xlu0 %v1654, 64
    %v1660 = vpop.permute.xlu0 %1659
    %v1663 = vadd.f32 %v1322, %v1658
    %v1664 = vadd.f32 %v1323, %v1660
    %v1665 = vtanh.pop %v1663
    %v1666 = vtanh.pop %v1664
    %v1667 = vsub.f32 1.0, %v1627
    %v1668 = vsub.f32 1.0, %v1642
    %1671 = vrot.lane.b32.xlu0 %v1665, 96
    %v1672 = vpop.permute.xlu0 %1671
    %1673 = vrot.lane.b32.xlu0 %v1666, 96
    %v1674 = vpop.permute.xlu0 %1673
    %v1677 = vmul.f32 %v1667, %v1672
    %v1678 = vmul.f32 %v1668, %v1674
    %v1679 = vrot.slane %v1560, 7
    %v1680 = vrot.slane %v1561, 7
    %v1683 = vmul.f32 %v1627, %v1679
    %v1684 = vmul.f32 %v1642, %v1680
    %v1685 = vadd.f32 %v1677, %v1683
    %v1686 = vadd.f32 %v1678, %v1684
    %1689 = vrot.lane.b32.xlu0 %v1685, 96
    %v1690 = vpop.permute.xlu0 %1689
    %1691 = vrot.lane.b32.xlu0 %v1686, 96
    %v1692 = vpop.permute.xlu0 %1691
    %1695 = vst.msk [vmem:[#allocation4] sm:$0x4] %vm624, %v1690
    %1696 = vst.msk [vmem:[#allocation4 + $0x8] sm:$0x4] %vm624, %v1692
    %v1697 = vrot.slane %v1685, 2
    %v1698 = vrot.slane %v1686, 1
    %v1699 = vsel %vm378, %v1698, %v1697
    %1700 = vrot.lane.b32.xlu0 %v1699, 96
    %v1701 = vpop.permute.xlu0 %1700
    %v1702 = vsel %vm249, %v1701, 0
    %1704 = vmatpush.msra.mxu0 0.0
    %1705 = vmatpush.msra.mxu0 0.0
    %1706 = vmatpush.msra.mxu0 0.0
    %1707 = vmatpush.msra.mxu0 0.0
    %1708 = vmatpush.msra.mxu0 0.0
    %1709 = vmatpush.msra.mxu0 0.0
    %1710 = vmatpush.msra.mxu0 0.0
    %1711 = vmatpush.msra.mxu0 0.0
    %1712 = vmatpush.msra.mxu0 0.0
    %1713 = vmatpush.msra.mxu0 0.0
    %1714 = vmatpush.msra.mxu0 0.0
    %1715 = vmatpush.msra.mxu0 0.0
    %1716 = vmatpush.msra.mxu0 %v1316
    %1717 = vmatpush.msra.mxu0 %v1315
    %1718 = vmatpush.msra.mxu0 %v1314
    %1719 = vmatpush.msra.mxu0 %v1313
    %1720 = vmatmul.f32.gmra.mxu0 %v1702
    %v1721 = vpop.f32.mrf.mxu0
    %v1722 = vadd.f32 0.0, %v1721
    %1723 = vdwg.mxu0
    %v1725 = vrot.slane %v1722, 5
    %v1726 = vrot.slane %v1722, 6
    %v1729 = vadd.f32 %v1322, %v1725
    %v1730 = vadd.f32 %v1323, %v1726
    %v1731 = vxor.u32 %v1729, 2147483648
    %v1732 = vxor.u32 %v1730, 2147483648
    %v1733 = vmul.f32 %v1731, 1.442695
    %v1734 = vpow.pop %v1733
    %v1735 = vmul.f32 %v1732, 1.442695
    %v1736 = vpow.pop %v1735
    %v1737 = vadd.f32 %v1734, 1.0
    %v1738 = vadd.f32 %v1736, 1.0
    %v1739 = vrcp.pop %v1737
    %v1740 = vmul.f32 %v1737, %v1739
    %v1741 = vsub.f32 1.0, %v1740
    %v1742 = vmul.f32 %v1739, %v1741
    %v1743 = vadd.f32 %v1739, %v1742
    %vm1744 = vweird.f32 %v1737
    %vm1745 = vweird.f32 %v1739
    %vm1746 = vmor %vm1744, %vm1745
    %v1747 = vsel %vm1746, %v1739, %v1743
    %v1748 = vand.u32 2147483647, %v1737
    %vm1749 = vcmp.eq.f32.partialorder %v1748, 8.507059e+37
    %v1750 = vand.u32 %v1737, 2147483648
    %v1751 = vor.u32 1.1754944e-38, %v1750
    %v1752 = vsel %vm1749, %v1751, %v1747
    %v1753 = vmul.f32 1.0, %v1752
    %v1754 = vrcp.pop %v1738
    %v1755 = vmul.f32 %v1738, %v1754
    %v1756 = vsub.f32 1.0, %v1755
    %v1757 = vmul.f32 %v1754, %v1756
    %v1758 = vadd.f32 %v1754, %v1757
    %vm1759 = vweird.f32 %v1738
    %vm1760 = vweird.f32 %v1754
    %vm1761 = vmor %vm1759, %vm1760
    %v1762 = vsel %vm1761, %v1754, %v1758
    %v1763 = vand.u32 2147483647, %v1738
    %vm1764 = vcmp.eq.f32.partialorder %v1763, 8.507059e+37
    %v1765 = vand.u32 %v1738, 2147483648
    %v1766 = vor.u32 1.1754944e-38, %v1765
    %v1767 = vsel %vm1764, %v1766, %v1762
    %v1768 = vmul.f32 1.0, %v1767
    %v1769 = vadd.f32 %v1722, %v1392
    %v1771 = vrot.slane %v1769, 5
    %v1772 = vrot.slane %v1769, 6
    %1773 = vrot.lane.b32.xlu0 %v1771, 64
    %v1774 = vpop.permute.xlu0 %1773
    %1775 = vrot.lane.b32.xlu0 %v1772, 64
    %v1776 = vpop.permute.xlu0 %1775
    %v1779 = vmul.f32 %v1753, %v1774
    %v1780 = vmul.f32 %v1768, %v1776
    %1783 = vrot.lane.b32.xlu0 %v1779, 64
    %v1784 = vpop.permute.xlu0 %1783
    %1785 = vrot.lane.b32.xlu0 %v1780, 64
    %v1786 = vpop.permute.xlu0 %1785
    %v1789 = vadd.f32 %v1322, %v1784
    %v1790 = vadd.f32 %v1323, %v1786
    %v1791 = vtanh.pop %v1789
    %v1792 = vtanh.pop %v1790
    %v1793 = vsub.f32 1.0, %v1753
    %v1794 = vsub.f32 1.0, %v1768
    %1797 = vrot.lane.b32.xlu0 %v1791, 96
    %v1798 = vpop.permute.xlu0 %1797
    %1799 = vrot.lane.b32.xlu0 %v1792, 96
    %v1800 = vpop.permute.xlu0 %1799
    %v1803 = vmul.f32 %v1793, %v1798
    %v1804 = vmul.f32 %v1794, %v1800
    %v1805 = vrot.slane %v1685, 7
    %v1806 = vrot.slane %v1686, 7
    %v1809 = vmul.f32 %v1753, %v1805
    %v1810 = vmul.f32 %v1768, %v1806
    %v1811 = vadd.f32 %v1803, %v1809
    %v1812 = vadd.f32 %v1804, %v1810
    %1815 = vrot.lane.b32.xlu0 %v1811, 96
    %v1816 = vpop.permute.xlu0 %1815
    %1817 = vrot.lane.b32.xlu0 %v1812, 96
    %v1818 = vpop.permute.xlu0 %1817
    %1821 = vst.msk [vmem:[#allocation4] sm:$0x8] %vm751, %v1816
    %1822 = vst.msk [vmem:[#allocation4 + $0x8] sm:$0x8] %vm751, %v1818
    %v1823 = vrot.slane %v1811, 3
    %v1824 = vrot.slane %v1812, 2
    %v1825 = vsel %vm378, %v1824, %v1823
    %1826 = vrot.lane.b32.xlu0 %v1825, 96
    %v1827 = vpop.permute.xlu0 %1826
    %v1828 = vsel %vm249, %v1827, 0
    %1830 = vmatpush.msra.mxu0 0.0
    %1831 = vmatpush.msra.mxu0 0.0
    %1832 = vmatpush.msra.mxu0 0.0
    %1833 = vmatpush.msra.mxu0 0.0
    %1834 = vmatpush.msra.mxu0 0.0
    %1835 = vmatpush.msra.mxu0 0.0
    %1836 = vmatpush.msra.mxu0 0.0
    %1837 = vmatpush.msra.mxu0 0.0
    %1838 = vmatpush.msra.mxu0 0.0
    %1839 = vmatpush.msra.mxu0 0.0
    %1840 = vmatpush.msra.mxu0 0.0
    %1841 = vmatpush.msra.mxu0 0.0
    %1842 = vmatpush.msra.mxu0 %v1316
    %1843 = vmatpush.msra.mxu0 %v1315
    %1844 = vmatpush.msra.mxu0 %v1314
    %1845 = vmatpush.msra.mxu0 %v1313
    %1846 = vmatmul.f32.gmra.mxu0 %v1828
    %v1847 = vpop.f32.mrf.mxu0
    %v1848 = vadd.f32 0.0, %v1847
    %1849 = vdwg.mxu0
    %v1851 = vrot.slane %v1848, 4
    %v1852 = vrot.slane %v1848, 5
    %v1855 = vadd.f32 %v1322, %v1851
    %v1856 = vadd.f32 %v1323, %v1852
    %v1857 = vxor.u32 %v1855, 2147483648
    %v1858 = vxor.u32 %v1856, 2147483648
    %v1859 = vmul.f32 %v1857, 1.442695
    %v1860 = vpow.pop %v1859
    %v1861 = vmul.f32 %v1858, 1.442695
    %v1862 = vpow.pop %v1861
    %v1863 = vadd.f32 %v1860, 1.0
    %v1864 = vadd.f32 %v1862, 1.0
    %v1865 = vrcp.pop %v1863
    %v1866 = vmul.f32 %v1863, %v1865
    %v1867 = vsub.f32 1.0, %v1866
    %v1868 = vmul.f32 %v1865, %v1867
    %v1869 = vadd.f32 %v1865, %v1868
    %vm1870 = vweird.f32 %v1863
    %vm1871 = vweird.f32 %v1865
    %vm1872 = vmor %vm1870, %vm1871
    %v1873 = vsel %vm1872, %v1865, %v1869
    %v1874 = vand.u32 2147483647, %v1863
    %vm1875 = vcmp.eq.f32.partialorder %v1874, 8.507059e+37
    %v1876 = vand.u32 %v1863, 2147483648
    %v1877 = vor.u32 1.1754944e-38, %v1876
    %v1878 = vsel %vm1875, %v1877, %v1873
    %v1879 = vmul.f32 1.0, %v1878
    %v1880 = vrcp.pop %v1864
    %v1881 = vmul.f32 %v1864, %v1880
    %v1882 = vsub.f32 1.0, %v1881
    %v1883 = vmul.f32 %v1880, %v1882
    %v1884 = vadd.f32 %v1880, %v1883
    %vm1885 = vweird.f32 %v1864
    %vm1886 = vweird.f32 %v1880
    %vm1887 = vmor %vm1885, %vm1886
    %v1888 = vsel %vm1887, %v1880, %v1884
    %v1889 = vand.u32 2147483647, %v1864
    %vm1890 = vcmp.eq.f32.partialorder %v1889, 8.507059e+37
    %v1891 = vand.u32 %v1864, 2147483648
    %v1892 = vor.u32 1.1754944e-38, %v1891
    %v1893 = vsel %vm1890, %v1892, %v1888
    %v1894 = vmul.f32 1.0, %v1893
    %v1895 = vadd.f32 %v1848, %v1392
    %v1897 = vrot.slane %v1895, 4
    %v1898 = vrot.slane %v1895, 5
    %1899 = vrot.lane.b32.xlu0 %v1897, 64
    %v1900 = vpop.permute.xlu0 %1899
    %1901 = vrot.lane.b32.xlu0 %v1898, 64
    %v1902 = vpop.permute.xlu0 %1901
    %v1905 = vmul.f32 %v1879, %v1900
    %v1906 = vmul.f32 %v1894, %v1902
    %1909 = vrot.lane.b32.xlu0 %v1905, 64
    %v1910 = vpop.permute.xlu0 %1909
    %1911 = vrot.lane.b32.xlu0 %v1906, 64
    %v1912 = vpop.permute.xlu0 %1911
    %v1915 = vadd.f32 %v1322, %v1910
    %v1916 = vadd.f32 %v1323, %v1912
    %v1917 = vtanh.pop %v1915
    %v1918 = vtanh.pop %v1916
    %v1919 = vsub.f32 1.0, %v1879
    %v1920 = vsub.f32 1.0, %v1894
    %1923 = vrot.lane.b32.xlu0 %v1917, 96
    %v1924 = vpop.permute.xlu0 %1923
    %1925 = vrot.lane.b32.xlu0 %v1918, 96
    %v1926 = vpop.permute.xlu0 %1925
    %v1929 = vmul.f32 %v1919, %v1924
    %v1930 = vmul.f32 %v1920, %v1926
    %v1931 = vrot.slane %v1811, 7
    %v1932 = vrot.slane %v1812, 7
    %v1935 = vmul.f32 %v1879, %v1931
    %v1936 = vmul.f32 %v1894, %v1932
    %v1937 = vadd.f32 %v1929, %v1935
    %v1938 = vadd.f32 %v1930, %v1936
    %1941 = vrot.lane.b32.xlu0 %v1937, 96
    %v1942 = vpop.permute.xlu0 %1941
    %1943 = vrot.lane.b32.xlu0 %v1938, 96
    %v1944 = vpop.permute.xlu0 %1943
    %1947 = vst.msk [vmem:[#allocation4] sm:$0x10] %vm878, %v1942
    %1948 = vst.msk [vmem:[#allocation4 + $0x8] sm:$0x10] %vm878, %v1944
    %v1949 = vrot.slane %v1937, 4
    %v1950 = vrot.slane %v1938, 3
    %v1951 = vsel %vm378, %v1950, %v1949
    %1952 = vrot.lane.b32.xlu0 %v1951, 96
    %v1953 = vpop.permute.xlu0 %1952
    %v1954 = vsel %vm249, %v1953, 0
    %1956 = vmatpush.msra.mxu0 0.0
    %1957 = vmatpush.msra.mxu0 0.0
    %1958 = vmatpush.msra.mxu0 0.0
    %1959 = vmatpush.msra.mxu0 0.0
    %1960 = vmatpush.msra.mxu0 0.0
    %1961 = vmatpush.msra.mxu0 0.0
    %1962 = vmatpush.msra.mxu0 0.0
    %1963 = vmatpush.msra.mxu0 0.0
    %1964 = vmatpush.msra.mxu0 0.0
    %1965 = vmatpush.msra.mxu0 0.0
    %1966 = vmatpush.msra.mxu0 0.0
    %1967 = vmatpush.msra.mxu0 0.0
    %1968 = vmatpush.msra.mxu0 %v1316
    %1969 = vmatpush.msra.mxu0 %v1315
    %1970 = vmatpush.msra.mxu0 %v1314
    %1971 = vmatpush.msra.mxu0 %v1313
    %1972 = vmatmul.f32.gmra.mxu0 %v1954
    %v1973 = vpop.f32.mrf.mxu0
    %v1974 = vadd.f32 0.0, %v1973
    %1975 = vdwg.mxu0
    %v1977 = vrot.slane %v1974, 3
    %v1978 = vrot.slane %v1974, 4
    %v1981 = vadd.f32 %v1322, %v1977
    %v1982 = vadd.f32 %v1323, %v1978
    %v1983 = vxor.u32 %v1981, 2147483648
    %v1984 = vxor.u32 %v1982, 2147483648
    %v1985 = vmul.f32 %v1983, 1.442695
    %v1986 = vpow.pop %v1985
    %v1987 = vmul.f32 %v1984, 1.442695
    %v1988 = vpow.pop %v1987
    %v1989 = vadd.f32 %v1986, 1.0
    %v1990 = vadd.f32 %v1988, 1.0
    %v1991 = vrcp.pop %v1989
    %v1992 = vmul.f32 %v1989, %v1991
    %v1993 = vsub.f32 1.0, %v1992
    %v1994 = vmul.f32 %v1991, %v1993
    %v1995 = vadd.f32 %v1991, %v1994
    %vm1996 = vweird.f32 %v1989
    %vm1997 = vweird.f32 %v1991
    %vm1998 = vmor %vm1996, %vm1997
    %v1999 = vsel %vm1998, %v1991, %v1995
    %v2000 = vand.u32 2147483647, %v1989
    %vm2001 = vcmp.eq.f32.partialorder %v2000, 8.507059e+37
    %v2002 = vand.u32 %v1989, 2147483648
    %v2003 = vor.u32 1.1754944e-38, %v2002
    %v2004 = vsel %vm2001, %v2003, %v1999
    %v2005 = vmul.f32 1.0, %v2004
    %v2006 = vrcp.pop %v1990
    %v2007 = vmul.f32 %v1990, %v2006
    %v2008 = vsub.f32 1.0, %v2007
    %v2009 = vmul.f32 %v2006, %v2008
    %v2010 = vadd.f32 %v2006, %v2009
    %vm2011 = vweird.f32 %v1990
    %vm2012 = vweird.f32 %v2006
    %vm2013 = vmor %vm2011, %vm2012
    %v2014 = vsel %vm2013, %v2006, %v2010
    %v2015 = vand.u32 2147483647, %v1990
    %vm2016 = vcmp.eq.f32.partialorder %v2015, 8.507059e+37
    %v2017 = vand.u32 %v1990, 2147483648
    %v2018 = vor.u32 1.1754944e-38, %v2017
    %v2019 = vsel %vm2016, %v2018, %v2014
    %v2020 = vmul.f32 1.0, %v2019
    %v2021 = vadd.f32 %v1974, %v1392
    %v2023 = vrot.slane %v2021, 3
    %v2024 = vrot.slane %v2021, 4
    %2025 = vrot.lane.b32.xlu0 %v2023, 64
    %v2026 = vpop.permute.xlu0 %2025
    %2027 = vrot.lane.b32.xlu0 %v2024, 64
    %v2028 = vpop.permute.xlu0 %2027
    %v2031 = vmul.f32 %v2005, %v2026
    %v2032 = vmul.f32 %v2020, %v2028
    %2035 = vrot.lane.b32.xlu0 %v2031, 64
    %v2036 = vpop.permute.xlu0 %2035
    %2037 = vrot.lane.b32.xlu0 %v2032, 64
    %v2038 = vpop.permute.xlu0 %2037
    %v2041 = vadd.f32 %v1322, %v2036
    %v2042 = vadd.f32 %v1323, %v2038
    %v2043 = vtanh.pop %v2041
    %v2044 = vtanh.pop %v2042
    %v2045 = vsub.f32 1.0, %v2005
    %v2046 = vsub.f32 1.0, %v2020
    %2049 = vrot.lane.b32.xlu0 %v2043, 96
    %v2050 = vpop.permute.xlu0 %2049
    %2051 = vrot.lane.b32.xlu0 %v2044, 96
    %v2052 = vpop.permute.xlu0 %2051
    %v2055 = vmul.f32 %v2045, %v2050
    %v2056 = vmul.f32 %v2046, %v2052
    %v2057 = vrot.slane %v1937, 7
    %v2058 = vrot.slane %v1938, 7
    %v2061 = vmul.f32 %v2005, %v2057
    %v2062 = vmul.f32 %v2020, %v2058
    %v2063 = vadd.f32 %v2055, %v2061
    %v2064 = vadd.f32 %v2056, %v2062
    %2067 = vrot.lane.b32.xlu0 %v2063, 96
    %v2068 = vpop.permute.xlu0 %2067
    %2069 = vrot.lane.b32.xlu0 %v2064, 96
    %v2070 = vpop.permute.xlu0 %2069
    %2073 = vst.msk [vmem:[#allocation4] sm:$0x20] %vm1005, %v2068
    %2074 = vst.msk [vmem:[#allocation4 + $0x8] sm:$0x20] %vm1005, %v2070
    %v2075 = vrot.slane %v2063, 5
    %v2076 = vrot.slane %v2064, 4
    %v2077 = vsel %vm378, %v2076, %v2075
    %2078 = vrot.lane.b32.xlu0 %v2077, 96
    %v2079 = vpop.permute.xlu0 %2078
    %v2080 = vsel %vm249, %v2079, 0
    %2082 = vmatpush.msra.mxu0 0.0
    %2083 = vmatpush.msra.mxu0 0.0
    %2084 = vmatpush.msra.mxu0 0.0
    %2085 = vmatpush.msra.mxu0 0.0
    %2086 = vmatpush.msra.mxu0 0.0
    %2087 = vmatpush.msra.mxu0 0.0
    %2088 = vmatpush.msra.mxu0 0.0
    %2089 = vmatpush.msra.mxu0 0.0
    %2090 = vmatpush.msra.mxu0 0.0
    %2091 = vmatpush.msra.mxu0 0.0
    %2092 = vmatpush.msra.mxu0 0.0
    %2093 = vmatpush.msra.mxu0 0.0
    %2094 = vmatpush.msra.mxu0 %v1316
    %2095 = vmatpush.msra.mxu0 %v1315
    %2096 = vmatpush.msra.mxu0 %v1314
    %2097 = vmatpush.msra.mxu0 %v1313
    %2098 = vmatmul.f32.gmra.mxu0 %v2080
    %v2099 = vpop.f32.mrf.mxu0
    %v2100 = vadd.f32 0.0, %v2099
    %2101 = vdwg.mxu0
    %v2103 = vrot.slane %v2100, 2
    %v2104 = vrot.slane %v2100, 3
    %v2107 = vadd.f32 %v1322, %v2103
    %v2108 = vadd.f32 %v1323, %v2104
    %v2109 = vxor.u32 %v2107, 2147483648
    %v2110 = vxor.u32 %v2108, 2147483648
    %v2111 = vmul.f32 %v2109, 1.442695
    %v2112 = vpow.pop %v2111
    %v2113 = vmul.f32 %v2110, 1.442695
    %v2114 = vpow.pop %v2113
    %v2115 = vadd.f32 %v2112, 1.0
    %v2116 = vadd.f32 %v2114, 1.0
    %v2117 = vrcp.pop %v2115
    %v2118 = vmul.f32 %v2115, %v2117
    %v2119 = vsub.f32 1.0, %v2118
    %v2120 = vmul.f32 %v2117, %v2119
    %v2121 = vadd.f32 %v2117, %v2120
    %vm2122 = vweird.f32 %v2115
    %vm2123 = vweird.f32 %v2117
    %vm2124 = vmor %vm2122, %vm2123
    %v2125 = vsel %vm2124, %v2117, %v2121
    %v2126 = vand.u32 2147483647, %v2115
    %vm2127 = vcmp.eq.f32.partialorder %v2126, 8.507059e+37
    %v2128 = vand.u32 %v2115, 2147483648
    %v2129 = vor.u32 1.1754944e-38, %v2128
    %v2130 = vsel %vm2127, %v2129, %v2125
    %v2131 = vmul.f32 1.0, %v2130
    %v2132 = vrcp.pop %v2116
    %v2133 = vmul.f32 %v2116, %v2132
    %v2134 = vsub.f32 1.0, %v2133
    %v2135 = vmul.f32 %v2132, %v2134
    %v2136 = vadd.f32 %v2132, %v2135
    %vm2137 = vweird.f32 %v2116
    %vm2138 = vweird.f32 %v2132
    %vm2139 = vmor %vm2137, %vm2138
    %v2140 = vsel %vm2139, %v2132, %v2136
    %v2141 = vand.u32 2147483647, %v2116
    %vm2142 = vcmp.eq.f32.partialorder %v2141, 8.507059e+37
    %v2143 = vand.u32 %v2116, 2147483648
    %v2144 = vor.u32 1.1754944e-38, %v2143
    %v2145 = vsel %vm2142, %v2144, %v2140
    %v2146 = vmul.f32 1.0, %v2145
    %v2147 = vadd.f32 %v2100, %v1392
    %v2149 = vrot.slane %v2147, 2
    %v2150 = vrot.slane %v2147, 3
    %2151 = vrot.lane.b32.xlu0 %v2149, 64
    %v2152 = vpop.permute.xlu0 %2151
    %2153 = vrot.lane.b32.xlu0 %v2150, 64
    %v2154 = vpop.permute.xlu0 %2153
    %v2157 = vmul.f32 %v2131, %v2152
    %v2158 = vmul.f32 %v2146, %v2154
    %2161 = vrot.lane.b32.xlu0 %v2157, 64
    %v2162 = vpop.permute.xlu0 %2161
    %2163 = vrot.lane.b32.xlu0 %v2158, 64
    %v2164 = vpop.permute.xlu0 %2163
    %v2167 = vadd.f32 %v1322, %v2162
    %v2168 = vadd.f32 %v1323, %v2164
    %v2169 = vtanh.pop %v2167
    %v2170 = vtanh.pop %v2168
    %v2171 = vsub.f32 1.0, %v2131
    %v2172 = vsub.f32 1.0, %v2146
    %2175 = vrot.lane.b32.xlu0 %v2169, 96
    %v2176 = vpop.permute.xlu0 %2175
    %2177 = vrot.lane.b32.xlu0 %v2170, 96
    %v2178 = vpop.permute.xlu0 %2177
    %v2181 = vmul.f32 %v2171, %v2176
    %v2182 = vmul.f32 %v2172, %v2178
    %v2183 = vrot.slane %v2063, 7
    %v2184 = vrot.slane %v2064, 7
    %v2187 = vmul.f32 %v2131, %v2183
    %v2188 = vmul.f32 %v2146, %v2184
    %v2189 = vadd.f32 %v2181, %v2187
    %v2190 = vadd.f32 %v2182, %v2188
    %2193 = vrot.lane.b32.xlu0 %v2189, 96
    %v2194 = vpop.permute.xlu0 %2193
    %2195 = vrot.lane.b32.xlu0 %v2190, 96
    %v2196 = vpop.permute.xlu0 %2195
    %2199 = vst.msk [vmem:[#allocation4] sm:$0x40] %vm1132, %v2194
    %2200 = vst.msk [vmem:[#allocation4 + $0x8] sm:$0x40] %vm1132, %v2196
    %v2201 = vrot.slane %v2189, 6
    %v2202 = vrot.slane %v2190, 5
    %v2203 = vsel %vm378, %v2202, %v2201
    %2204 = vrot.lane.b32.xlu0 %v2203, 96
    %v2205 = vpop.permute.xlu0 %2204
    %v2206 = vsel %vm249, %v2205, 0
    %2208 = vmatpush.msra.mxu0 0.0
    %2209 = vmatpush.msra.mxu0 0.0
    %2210 = vmatpush.msra.mxu0 0.0
    %2211 = vmatpush.msra.mxu0 0.0
    %2212 = vmatpush.msra.mxu0 0.0
    %2213 = vmatpush.msra.mxu0 0.0
    %2214 = vmatpush.msra.mxu0 0.0
    %2215 = vmatpush.msra.mxu0 0.0
    %2216 = vmatpush.msra.mxu0 0.0
    %2217 = vmatpush.msra.mxu0 0.0
    %2218 = vmatpush.msra.mxu0 0.0
    %2219 = vmatpush.msra.mxu0 0.0
    %2220 = vmatpush.msra.mxu0 %v1316
    %2221 = vmatpush.msra.mxu0 %v1315
    %2222 = vmatpush.msra.mxu0 %v1314
    %2223 = vmatpush.msra.mxu0 %v1313
    %2224 = vmatmul.f32.gmra.mxu0 %v2206
    %v2225 = vpop.f32.mrf.mxu0
    %v2226 = vadd.f32 0.0, %v2225
    %2227 = vdwg.mxu0
    %v2229 = vrot.slane %v2226, 1
    %v2230 = vrot.slane %v2226, 2
    %v2233 = vadd.f32 %v1322, %v2229
    %v2234 = vadd.f32 %v1323, %v2230
    %v2235 = vxor.u32 %v2233, 2147483648
    %v2236 = vxor.u32 %v2234, 2147483648
    %v2237 = vmul.f32 %v2235, 1.442695
    %v2238 = vpow.pop %v2237
    %v2239 = vmul.f32 %v2236, 1.442695
    %v2240 = vpow.pop %v2239
    %v2241 = vadd.f32 %v2238, 1.0
    %v2242 = vadd.f32 %v2240, 1.0
    %v2243 = vrcp.pop %v2241
    %v2244 = vmul.f32 %v2241, %v2243
    %v2245 = vsub.f32 1.0, %v2244
    %v2246 = vmul.f32 %v2243, %v2245
    %v2247 = vadd.f32 %v2243, %v2246
    %vm2248 = vweird.f32 %v2241
    %vm2249 = vweird.f32 %v2243
    %vm2250 = vmor %vm2248, %vm2249
    %v2251 = vsel %vm2250, %v2243, %v2247
    %v2252 = vand.u32 2147483647, %v2241
    %vm2253 = vcmp.eq.f32.partialorder %v2252, 8.507059e+37
    %v2254 = vand.u32 %v2241, 2147483648
    %v2255 = vor.u32 1.1754944e-38, %v2254
    %v2256 = vsel %vm2253, %v2255, %v2251
    %v2257 = vmul.f32 1.0, %v2256
    %v2258 = vrcp.pop %v2242
    %v2259 = vmul.f32 %v2242, %v2258
    %v2260 = vsub.f32 1.0, %v2259
    %v2261 = vmul.f32 %v2258, %v2260
    %v2262 = vadd.f32 %v2258, %v2261
    %vm2263 = vweird.f32 %v2242
    %vm2264 = vweird.f32 %v2258
    %vm2265 = vmor %vm2263, %vm2264
    %v2266 = vsel %vm2265, %v2258, %v2262
    %v2267 = vand.u32 2147483647, %v2242
    %vm2268 = vcmp.eq.f32.partialorder %v2267, 8.507059e+37
    %v2269 = vand.u32 %v2242, 2147483648
    %v2270 = vor.u32 1.1754944e-38, %v2269
    %v2271 = vsel %vm2268, %v2270, %v2266
    %v2272 = vmul.f32 1.0, %v2271
    %v2273 = vadd.f32 %v2226, %v1392
    %v2275 = vrot.slane %v2273, 1
    %v2276 = vrot.slane %v2273, 2
    %2277 = vrot.lane.b32.xlu0 %v2275, 64
    %v2278 = vpop.permute.xlu0 %2277
    %2279 = vrot.lane.b32.xlu0 %v2276, 64
    %v2280 = vpop.permute.xlu0 %2279
    %v2283 = vmul.f32 %v2257, %v2278
    %v2284 = vmul.f32 %v2272, %v2280
    %2287 = vrot.lane.b32.xlu0 %v2283, 64
    %v2288 = vpop.permute.xlu0 %2287
    %2289 = vrot.lane.b32.xlu0 %v2284, 64
    %v2290 = vpop.permute.xlu0 %2289
    %v2293 = vadd.f32 %v1322, %v2288
    %v2294 = vadd.f32 %v1323, %v2290
    %v2295 = vtanh.pop %v2293
    %v2296 = vtanh.pop %v2294
    %v2297 = vsub.f32 1.0, %v2257
    %v2298 = vsub.f32 1.0, %v2272
    %2301 = vrot.lane.b32.xlu0 %v2295, 96
    %v2302 = vpop.permute.xlu0 %2301
    %2303 = vrot.lane.b32.xlu0 %v2296, 96
    %v2304 = vpop.permute.xlu0 %2303
    %v2307 = vmul.f32 %v2297, %v2302
    %v2308 = vmul.f32 %v2298, %v2304
    %v2309 = vrot.slane %v2189, 7
    %v2310 = vrot.slane %v2190, 7
    %v2313 = vmul.f32 %v2257, %v2309
    %v2314 = vmul.f32 %v2272, %v2310
    %v2315 = vadd.f32 %v2307, %v2313
    %v2316 = vadd.f32 %v2308, %v2314
    %2319 = vrot.lane.b32.xlu0 %v2315, 96
    %v2320 = vpop.permute.xlu0 %2319
    %2321 = vrot.lane.b32.xlu0 %v2316, 96
    %v2322 = vpop.permute.xlu0 %2321
    %2325 = vst.msk [vmem:[#allocation4] sm:$0x80] %vm1259, %v2320
    %2326 = vst.msk [vmem:[#allocation4 + $0x8] sm:$0x80] %vm1259, %v2322
    %v2327 = vld [vmem:[#allocation4] sm:$0xff]
    %v2328 = vld [vmem:[#allocation4 + $0x8] sm:$0xff]
    %2329 = vst.msk [vmem:[#allocation3] sm:$0xff] %vm249, %v2327
    %2330 = vst.msk [vmem:[#allocation3 + $0x8] sm:$0xff] %vm249, %v2328
    %v2331 = vrot.slane %v2316, 7
    %2332 = vrot.lane.b32.xlu0 %v2331, 96
    %v2333 = vpop.permute.xlu0 %2332
    %s2335 = scalar_lea.vmem [#allocation18], 2
    %2336 = vst.msk [vmem:[%s2335 - $0x7] sm:$0x80] %vm1259, %v2320
    %2337 = vst.msk [vmem:[%s2335 + $0x1] sm:$0x1] %vm374, %v2333
    %v2338 = vld [vmem:[#allocation3] sm:$0xff]
    %v2339 = vld [vmem:[#allocation3 + $0x8] sm:$0xff]
    %v2340 = vld [vmem:[#allocation16] sm:$0xff]
    %v2341 = vld [vmem:[#allocation16 + $0x8] sm:$0xff]
    %v2342 = vld [vmem:[#allocation16 + $0x10] sm:$0xff]
    %v2343 = vld [vmem:[#allocation16 + $0x18] sm:$0xff]
    %v2344 = vld [vmem:[#allocation16 + $0x20] sm:$0xff]
    %v2345 = vld [vmem:[#allocation16 + $0x28] sm:$0xff]
    %v2346 = vld [vmem:[#allocation16 + $0x30] sm:$0xff]
    %v2347 = vld [vmem:[#allocation16 + $0x38] sm:$0xff]
    %v2348 = vld [vmem:[%s11] sm:$0x3]
    %v2350 = vperm.slane %v2348, 0
    %v2351 = vperm.slane %v2348, 1
    %v2355 = vsel %vm249, %v2338, 0
    %v2358 = vsel %vm249, %v2339, 0
    %2360 = vmatpush.msra.mxu0 0.0
    %2361 = vmatpush.msra.mxu0 0.0
    %2362 = vmatpush.msra.mxu0 0.0
    %2363 = vmatpush.msra.mxu0 0.0
    %2364 = vmatpush.msra.mxu0 0.0
    %2365 = vmatpush.msra.mxu0 0.0
    %2366 = vmatpush.msra.mxu0 0.0
    %2367 = vmatpush.msra.mxu0 0.0
    %2368 = vmatpush.msra.mxu0 0.0
    %2369 = vmatpush.msra.mxu0 0.0
    %2370 = vmatpush.msra.mxu0 0.0
    %2371 = vmatpush.msra.mxu0 0.0
    %2372 = vmatpush.msra.mxu0 %v2346
    %2373 = vmatpush.msra.mxu0 %v2344
    %2374 = vmatpush.msra.mxu0 %v2342
    %2375 = vmatpush.msra.mxu0 %v2340
    %2376 = vmatmul.f32.gmra.mxu0 %v2355
    %v2377 = vpop.f32.mrf.mxu0
    %v2378 = vadd.f32 %v2350, %v2377
    %2379 = vmatmul.f32.gmra.mxu0 %v2358
    %v2380 = vpop.f32.mrf.mxu0
    %v2381 = vadd.f32 %v2350, %v2380
    %2382 = vdwg.mxu0
    %2383 = vmatpush.msra.mxu0 0.0
    %2384 = vmatpush.msra.mxu0 0.0
    %2385 = vmatpush.msra.mxu0 0.0
    %2386 = vmatpush.msra.mxu0 0.0
    %2387 = vmatpush.msra.mxu0 0.0
    %2388 = vmatpush.msra.mxu0 0.0
    %2389 = vmatpush.msra.mxu0 0.0
    %2390 = vmatpush.msra.mxu0 0.0
    %2391 = vmatpush.msra.mxu0 0.0
    %2392 = vmatpush.msra.mxu0 0.0
    %2393 = vmatpush.msra.mxu0 0.0
    %2394 = vmatpush.msra.mxu0 0.0
    %2395 = vmatpush.msra.mxu0 %v2347
    %2396 = vmatpush.msra.mxu0 %v2345
    %2397 = vmatpush.msra.mxu0 %v2343
    %2398 = vmatpush.msra.mxu0 %v2341
    %2399 = vmatmul.f32.gmra.mxu0 %v2355
    %v2400 = vpop.f32.mrf.mxu0
    %v2401 = vadd.f32 %v2351, %v2400
    %2402 = vmatmul.f32.gmra.mxu0 %v2358
    %v2403 = vpop.f32.mrf.mxu0
    %v2404 = vadd.f32 %v2351, %v2403
    %2405 = vdwg.mxu0
    %2406 = vst [vmem:[#allocation17] sm:$0xff] %v2378
    %2407 = vst [vmem:[#allocation17 + $0x8] sm:$0xff] %v2401
    %2408 = vst [vmem:[#allocation17 + $0x10] sm:$0xff] %v2381
    %2409 = vst [vmem:[#allocation17 + $0x18] sm:$0xff] %v2404
    // Predicated region
    $region78: #{tpu_custom_call.1} parent=1 // pred_check
      _
    $region79: #{tpu_custom_call.1} parent=1 // pred_check_branch
      %2411 = sbr.rel (0) target = $region81
    $region80: #{tpu_custom_call.1} parent=1 // pred_region
      %2413 = vsyncadd [#allocation7], 0
      %s2414 = sshll.u32 [#allocation17], 4
      %s2415 = int_to_ptr.vmem [resolvable:$true] %s2414
      %s2416 = sshll.u32 %s12, 4
      %s2417 = int_to_ptr.hbm [resolvable:$true] %s2416
      %2422 = dma.vmem_to_hbm [thread:$0]  %s2415, 512, %s2417, [#allocation7], 256, 256, 16
    $region81: #{tpu_custom_call.1} parent=1 // pred_fallthru
      _
    // Predicated region
    $region82: #{tpu_custom_call.1} parent=1 // pred_check
      _
    $region83: #{tpu_custom_call.1} parent=1 // pred_check_branch
      %2424 = sbr.rel (0) target = $region85
    $region84: #{tpu_custom_call.1} parent=1 // pred_region
      %2426 = vsyncadd [#allocation19], 0
      %s2427 = sshll.u32 [#allocation18], 4
      %s2428 = int_to_ptr.vmem [resolvable:$true] %s2427
      %s2429 = sshll.u32 %s13, 4
      %s2430 = int_to_ptr.hbm [resolvable:$true] %s2429
      %2435 = dma.vmem_to_hbm [thread:$0]  %s2428, 64, %s2430, [#allocation19], 32, 32, 2
    $region85: #{tpu_custom_call.1} parent=1 // pred_fallthru
      _
    // Predicated region
    $region86: #{tpu_custom_call.1} parent=1 // pred_check
      _
    $region87: #{tpu_custom_call.1} parent=1 // pred_check_branch
      %2437 = sbr.rel (0) target = $region89
    $region88: #{tpu_custom_call.1} parent=1 // pred_region
      %2439 = dma.done [#allocation7], 512
    $region89: #{tpu_custom_call.1} parent=1 // pred_fallthru
      _
    // Predicated region
    $region90: #{tpu_custom_call.1} parent=1 // pred_check
      _
    $region91: #{tpu_custom_call.1} parent=1 // pred_check_branch
      %2441 = sbr.rel (0) target = $region93
    $region92: #{tpu_custom_call.1} parent=1 // pred_region
      %2443 = dma.done [#allocation19], 64
    $region93: #{tpu_custom_call.1} parent=1 // pred_fallthru
      _
    %2444 = vsyncpa [#allocation6], 1
    %2445 = vsyncpa [#allocation9], 1
    %2446 = vsyncpa [#allocation12], 1
    %2447 = vsyncpa [#allocation15], 1
    %2448 = vsyncpa [#allocation7], 1
    %2449 = vsyncpa [#allocation19], 1

</llo_original>
